<compile_context>
chip_gen: v7x
topology: tpu7x:2x2x1
jax: 0.10.0
libtpu: 0.0.40
codegen_flags: <defaults>
</compile_context>

<pallas_src>
import functools

import jax
import jax.numpy as jnp
from jax.experimental import pallas as pl
from jax.experimental.pallas import tpu as pltpu


# ----------------------------- in-kernel helpers -----------------------------

def _conv3x3_im2col(x_val, patch_ref, w_ref, b_ref, *, H, W, Cin):
    """3x3 / stride-1 / pad-1 conv of an in-VMEM activation as one MXU matmul.

    x_val:     (H, W, Cin) f32 value (caller applies ReLU beforehand if needed)
    patch_ref: (H, W, 9*Cin) f32 scratch; its never-written border regions are
               zero, which implements the zero padding of the conv.
    w_ref:     (9*Cin, Cout) weights, row order (dy, dx, cin)
    b_ref:     (1, Cout) bias
    returns:   (H, W, Cout) f32 value
    """
    for dy in range(3):
        for dx in range(3):
            k = dy * 3 + dx
            oy, ox = dy - 1, dx - 1
            y0, y1 = max(0, -oy), H - max(0, oy)
            x0, x1 = max(0, -ox), W - max(0, ox)
            patch_ref[y0:y1, x0:x1, k * Cin:(k + 1) * Cin] = (
                x_val[y0 + oy:y1 + oy, x0 + ox:x1 + ox, :])
    patches = patch_ref[...].reshape(H * W, 9 * Cin)
    out = jnp.dot(patches, w_ref[...], preferred_element_type=jnp.float32)
    out = out + b_ref[...]
    Cout = w_ref.shape[-1]
    return out.reshape(H, W, Cout)


def _impala_seq_kernel(x_ref, cw_ref, cb_ref,
                       w11_ref, b11_ref, w12_ref, b12_ref,
                       w21_ref, b21_ref, w22_ref, b22_ref,
                       o_ref,
                       patch1_ref, patch2_ref, pool_ref, rowp_ref,
                       *, H, W, Cin, Cout):
    """Processes one batch image (grid axis 0 = batch)."""
    Ho, Wo = H // 2, W // 2

    # Zero the im2col scratches (re-done every step so the kernel stays correct
    # under any grid-execution order / megacore split).  Every conv rewrites the
    # interior tap regions; the border (padding) regions stay zero.
    patch1_ref[...] = jnp.zeros_like(patch1_ref)
    patch2_ref[...] = jnp.zeros_like(patch2_ref)

    # ---- conv: Cin -> Cout, 3x3, stride 1, pad 1 -------------------------------
    x = x_ref[...].astype(jnp.float32)
    c1 = _conv3x3_im2col(x, patch1_ref, cw_ref, cb_ref, H=H, W=W, Cin=Cin)

    # ---- maxpool 3x3 / stride 2 / pad 1 : (H,W,C) -> (Ho,Wo,C) -----------------
    pool_ref[...] = jnp.full(pool_ref.shape, -jnp.inf, jnp.float32)
    pool_ref[1:H + 1, 1:W + 1, :] = c1
    # rows: output window i covers padded rows {2i, 2i+1, 2i+2}
    ev = pool_ref[pl.ds(0, Ho + 1, 2), :, :]            # padded rows 0,2,...,H
    od = pool_ref[pl.ds(1, Ho + 1, 2), :, :]            # padded rows 1,3,...,H+1
    rmax = jnp.maximum(ev, od)
    rowp_ref[...] = jnp.maximum(rmax[:Ho], ev[1:])      # (Ho, W+2, C)
    # cols: same pair-max decomposition along W
    evc = rowp_ref[:, pl.ds(0, Wo + 1, 2), :]
    odc = rowp_ref[:, pl.ds(1, Wo + 1, 2), :]
    cmax = jnp.maximum(evc, odc)
    p = jnp.maximum(cmax[:, :Wo, :], evc[:, 1:, :])     # (Ho, Wo, C)

    # ---- residual block 1 ------------------------------------------------------
    h = _conv3x3_im2col(jnp.maximum(p, 0.0), patch2_ref, w11_ref, b11_ref,
                        H=Ho, W=Wo, Cin=Cout)
    r1 = _conv3x3_im2col(jnp.maximum(h, 0.0), patch2_ref, w12_ref, b12_ref,
                         H=Ho, W=Wo, Cin=Cout) + p

    # ---- residual block 2 ------------------------------------------------------
    h = _conv3x3_im2col(jnp.maximum(r1, 0.0), patch2_ref, w21_ref, b21_ref,
                        H=Ho, W=Wo, Cin=Cout)
    r2 = _conv3x3_im2col(jnp.maximum(h, 0.0), patch2_ref, w22_ref, b22_ref,
                         H=Ho, W=Wo, Cin=Cout) + r1

    o_ref[...] = r2.astype(o_ref.dtype)


# ----------------------------- module forward --------------------------------

def impala_conv_sequence(x_nchw, params):
    N, Cin, H, W = x_nchw.shape
    Cout = params["conv_w"].shape[-1]
    assert H % 2 == 0 and W % 2 == 0, "maxpool decomposition assumes even H, W"
    Ho, Wo = H // 2, W // 2

    # Boundary relayout only (tiny); all compute happens NHWC inside the kernel.
    x = jnp.transpose(x_nchw, (0, 2, 3, 1))

    def flat_w(w):   # HWIO (3,3,Ci,Co) -> (9*Ci, Co), row order (dy, dx, ci)
        return w.reshape(9 * w.shape[2], w.shape[3])

    def flat_b(b):
        return b.reshape(1, -1)

    kernel = functools.partial(_impala_seq_kernel, H=H, W=W, Cin=Cin, Cout=Cout)

    # Weights / biases: full blocks with constant index maps -> fetched once,
    # resident in VMEM across all batch steps.
    def resident(shape):
        return pl.BlockSpec(shape, lambda n: (0,) * len(shape))

    w_spec_in = resident((9 * Cin, Cout))
    w_spec_res = resident((9 * Cout, Cout))
    b_spec = resident((1, Cout))

    flops = 2 * 9 * N * (Cin * Cout * H * W + 4 * Cout * Cout * Ho * Wo)
    bytes_accessed = 4 * (N * Cin * H * W + N * Cout * Ho * Wo
                          + 9 * (Cin + 4 * Cout) * Cout + 5 * Cout)

    out_nhwc = pl.pallas_call(
        kernel,
        out_shape=jax.ShapeDtypeStruct((N, Ho, Wo, Cout), x_nchw.dtype),
        grid=(N,),
        in_specs=[
            pl.BlockSpec((None, H, W, Cin), lambda n: (n, 0, 0, 0)),
            w_spec_in, b_spec,
            w_spec_res, b_spec, w_spec_res, b_spec,
            w_spec_res, b_spec, w_spec_res, b_spec,
        ],
        out_specs=pl.BlockSpec((None, Ho, Wo, Cout), lambda n: (n, 0, 0, 0)),
        scratch_shapes=[
            pltpu.VMEM((H, W, 9 * Cin), jnp.float32),        # conv1 im2col patches
            pltpu.VMEM((Ho, Wo, 9 * Cout), jnp.float32),     # residual-conv patches
            pltpu.VMEM((H + 2, W + 2, Cout), jnp.float32),   # -inf padded pool input
            pltpu.VMEM((Ho, W + 2, Cout), jnp.float32),      # row-pooled intermediate
        ],
        compiler_params=pltpu.CompilerParams(
            dimension_semantics=("parallel",)),
        cost_estimate=pl.CostEstimate(flops=flops, transcendentals=0,
                                      bytes_accessed=bytes_accessed),
    )(x,
      flat_w(params["conv_w"]), flat_b(params["conv_b"]),
      flat_w(params["res1"]["w1"]), flat_b(params["res1"]["b1"]),
      flat_w(params["res1"]["w2"]), flat_b(params["res1"]["b2"]),
      flat_w(params["res2"]["w1"]), flat_b(params["res2"]["b1"]),
      flat_w(params["res2"]["w2"]), flat_b(params["res2"]["b2"]))

    return jnp.transpose(out_nhwc, (0, 3, 1, 2))   # NHWC -> NCHW


# ----------------------------- params / reference ----------------------------

def init_params(key, in_channels, out_channels):
    def conv_init(k, cin, cout):
        kw, kb = jax.random.split(k)
        fan_in = cin * 9
        bound = 1.0 / jnp.sqrt(jnp.float32(fan_in))
        # stored as HWIO (3, 3, Cin, Cout)
        w = jax.random.uniform(kw, (3, 3, cin, cout), jnp.float32, -bound, bound)
        b = jax.random.uniform(kb, (cout,), jnp.float32, -bound, bound)
        return w, b

    ks = jax.random.split(key, 5)
    conv_w, conv_b = conv_init(ks[0], in_channels, out_channels)
    r1w1, r1b1 = conv_init(ks[1], out_channels, out_channels)
    r1w2, r1b2 = conv_init(ks[2], out_channels, out_channels)
    r2w1, r2b1 = conv_init(ks[3], out_channels, out_channels)
    r2w2, r2b2 = conv_init(ks[4], out_channels, out_channels)
    return {
        "conv_w": conv_w, "conv_b": conv_b,
        "res1": {"w1": r1w1, "b1": r1b1, "w2": r1w2, "b2": r1b2},
        "res2": {"w1": r2w1, "b1": r2b1, "w2": r2w2, "b2": r2b2},
    }


def _conv_ref(x, w, b):
    out = jax.lax.conv_general_dilated(
        x, w, window_strides=(1, 1), padding=((1, 1), (1, 1)),
        dimension_numbers=("NHWC", "HWIO", "NHWC"))
    return out + b[None, None, None, :]


def _ref_forward(x_nchw, params):
    x = jnp.transpose(x_nchw, (0, 2, 3, 1))
    out = _conv_ref(x, params["conv_w"], params["conv_b"])
    out = jax.lax.reduce_window(
        out, -jnp.inf, jax.lax.max,
        window_dimensions=(1, 3, 3, 1), window_strides=(1, 2, 2, 1),
        padding=((0, 0), (1, 1), (1, 1), (0, 0)))
    for rp in (params["res1"], params["res2"]):
        h = _conv_ref(jax.nn.relu(out), rp["w1"], rp["b1"])
        out = _conv_ref(jax.nn.relu(h), rp["w2"], rp["b2"]) + out
    return jnp.transpose(out, (0, 3, 1, 2))


if __name__ == "__main__":
    key = jax.random.PRNGKey(0)
    kx, kp = jax.random.split(key)

    in_channels, out_channels = 4, 8
    x = jax.random.normal(kx, (2, in_channels, 16, 16), jnp.float32)  # NCHW
    params = init_params(kp, in_channels, out_channels)

    out = jax.jit(impala_conv_sequence)(x, params)
    out = jax.block_until_ready(out)

    assert out.shape == (2, out_channels, 8, 8), out.shape
    ref = _ref_forward(x, params)
    assert jnp.allclose(out, ref, atol=1e-3, rtol=1e-3), float(
        jnp.max(jnp.abs(out - ref)))

    print("KERNEL_OK")
</pallas_src>

<mosaic_0001>
module attributes {stable_mosaic.version = 11 : i64} {
  func.func @_impala_seq_kernel(%arg0: i32, %arg1: memref<1x16x16x4xf32, #tpu.memory_space<vmem>>, %arg2: memref<36x8xf32, #tpu.memory_space<vmem>>, %arg3: memref<1x8xf32, #tpu.memory_space<vmem>>, %arg4: memref<72x8xf32, #tpu.memory_space<vmem>>, %arg5: memref<1x8xf32, #tpu.memory_space<vmem>>, %arg6: memref<72x8xf32, #tpu.memory_space<vmem>>, %arg7: memref<1x8xf32, #tpu.memory_space<vmem>>, %arg8: memref<72x8xf32, #tpu.memory_space<vmem>>, %arg9: memref<1x8xf32, #tpu.memory_space<vmem>>, %arg10: memref<72x8xf32, #tpu.memory_space<vmem>>, %arg11: memref<1x8xf32, #tpu.memory_space<vmem>>, %arg12: memref<1x8x8x8xf32, #tpu.memory_space<vmem>>, %arg13: memref<16x16x36xf32, #tpu.memory_space<vmem>>, %arg14: memref<8x8x72xf32, #tpu.memory_space<vmem>>, %arg15: memref<18x18x8xf32, #tpu.memory_space<vmem>>, %arg16: memref<8x18x8xf32, #tpu.memory_space<vmem>>) attributes {dimension_semantics = [#tpu.dimension_semantics<parallel>], iteration_bounds = array<i64: 2>, scalar_prefetch = 0 : i64, scratch_operands = 4 : i64, tpu.core_type = #tpu.core_type<tc>, window_params = [{transform_indices = @transform_0, window_bounds = array<i64: 1, 16, 16, 4>}, {pipeline_mode = #tpu.pipeline_mode<synchronous>, transform_indices = @transform_1, window_bounds = array<i64: 36, 8>}, {pipeline_mode = #tpu.pipeline_mode<synchronous>, transform_indices = @transform_2, window_bounds = array<i64: 1, 8>}, {pipeline_mode = #tpu.pipeline_mode<synchronous>, transform_indices = @transform_3, window_bounds = array<i64: 72, 8>}, {pipeline_mode = #tpu.pipeline_mode<synchronous>, transform_indices = @transform_4, window_bounds = array<i64: 1, 8>}, {pipeline_mode = #tpu.pipeline_mode<synchronous>, transform_indices = @transform_5, window_bounds = array<i64: 72, 8>}, {pipeline_mode = #tpu.pipeline_mode<synchronous>, transform_indices = @transform_6, window_bounds = array<i64: 1, 8>}, {pipeline_mode = #tpu.pipeline_mode<synchronous>, transform_indices = @transform_7, window_bounds = array<i64: 72, 8>}, {pipeline_mode = #tpu.pipeline_mode<synchronous>, transform_indices = @transform_8, window_bounds = array<i64: 1, 8>}, {pipeline_mode = #tpu.pipeline_mode<synchronous>, transform_indices = @transform_9, window_bounds = array<i64: 72, 8>}, {pipeline_mode = #tpu.pipeline_mode<synchronous>, transform_indices = @transform_10, window_bounds = array<i64: 1, 8>}, {transform_indices = @transform_11, window_bounds = array<i64: 1, 8, 8, 8>}]} {
    %cst = arith.constant 0.000000e+00 : f32
    %0 = vector.broadcast %cst : f32 to vector<16x16x36xf32>
    %c0 = arith.constant 0 : index
    %c0_0 = arith.constant 0 : index
    %c0_1 = arith.constant 0 : index
    %1 = vector.load %arg13[%c0, %c0_0, %c0_1] : memref<16x16x36xf32, #tpu.memory_space<vmem>>, vector<16x16x36xf32>
    tpu.vector_store %arg13[%c0, %c0_0, %c0_1], %0 {strides = array<i32>} : memref<16x16x36xf32, #tpu.memory_space<vmem>>, vector<16x16x36xf32>,
    %cst_2 = arith.constant 0.000000e+00 : f32
    %2 = vector.broadcast %cst_2 : f32 to vector<8x8x72xf32>
    %c0_3 = arith.constant 0 : index
    %c0_4 = arith.constant 0 : index
    %c0_5 = arith.constant 0 : index
    %3 = vector.load %arg14[%c0_3, %c0_4, %c0_5] : memref<8x8x72xf32, #tpu.memory_space<vmem>>, vector<8x8x72xf32>
    tpu.vector_store %arg14[%c0_3, %c0_4, %c0_5], %2 {strides = array<i32>} : memref<8x8x72xf32, #tpu.memory_space<vmem>>, vector<8x8x72xf32>,
    %c0_6 = arith.constant 0 : index
    %c0_7 = arith.constant 0 : index
    %c0_8 = arith.constant 0 : index
    %c0_9 = arith.constant 0 : index
    %4 = vector.load %arg1[%c0_6, %c0_7, %c0_8, %c0_9] : memref<1x16x16x4xf32, #tpu.memory_space<vmem>>, vector<1x16x16x4xf32>
    %5 = vector.shape_cast %4 : vector<1x16x16x4xf32> to vector<16x16x4xf32>
    %6 = vector.extract_strided_slice %5 {offsets = [0, 0, 0], sizes = [15, 15, 4], strides = [1, 1, 1]} : vector<16x16x4xf32> to vector<15x15x4xf32>
    %c1 = arith.constant 1 : index
    %c1_10 = arith.constant 1 : index
    %c0_11 = arith.constant 0 : index
    %7 = vector.load %arg13[%c1, %c1_10, %c0_11] : memref<16x16x36xf32, #tpu.memory_space<vmem>>, vector<15x15x4xf32>
    tpu.vector_store %arg13[%c1, %c1_10, %c0_11], %6 {strides = array<i32>} : memref<16x16x36xf32, #tpu.memory_space<vmem>>, vector<15x15x4xf32>,
    %8 = vector.extract_strided_slice %5 {offsets = [0, 0, 0], sizes = [15, 16, 4], strides = [1, 1, 1]} : vector<16x16x4xf32> to vector<15x16x4xf32>
    %c1_12 = arith.constant 1 : index
    %c0_13 = arith.constant 0 : index
    %c4 = arith.constant 4 : index
    %9 = vector.load %arg13[%c1_12, %c0_13, %c4] : memref<16x16x36xf32, #tpu.memory_space<vmem>>, vector<15x16x4xf32>
    tpu.vector_store %arg13[%c1_12, %c0_13, %c4], %8 {strides = array<i32>} : memref<16x16x36xf32, #tpu.memory_space<vmem>>, vector<15x16x4xf32>,
    %10 = vector.extract_strided_slice %5 {offsets = [0, 1, 0], sizes = [15, 15, 4], strides = [1, 1, 1]} : vector<16x16x4xf32> to vector<15x15x4xf32>
    %c1_14 = arith.constant 1 : index
    %c0_15 = arith.constant 0 : index
    %c8 = arith.constant 8 : index
    %11 = vector.load %arg13[%c1_14, %c0_15, %c8] : memref<16x16x36xf32, #tpu.memory_space<vmem>>, vector<15x15x4xf32>
    tpu.vector_store %arg13[%c1_14, %c0_15, %c8], %10 {strides = array<i32>} : memref<16x16x36xf32, #tpu.memory_space<vmem>>, vector<15x15x4xf32>,
    %12 = vector.extract_strided_slice %5 {offsets = [0, 0, 0], sizes = [16, 15, 4], strides = [1, 1, 1]} : vector<16x16x4xf32> to vector<16x15x4xf32>
    %c0_16 = arith.constant 0 : index
    %c1_17 = arith.constant 1 : index
    %c12 = arith.constant 12 : index
    %13 = vector.load %arg13[%c0_16, %c1_17, %c12] : memref<16x16x36xf32, #tpu.memory_space<vmem>>, vector<16x15x4xf32>
    tpu.vector_store %arg13[%c0_16, %c1_17, %c12], %12 {strides = array<i32>} : memref<16x16x36xf32, #tpu.memory_space<vmem>>, vector<16x15x4xf32>,
    %c0_18 = arith.constant 0 : index
    %c0_19 = arith.constant 0 : index
    %c16 = arith.constant 16 : index
    %14 = vector.load %arg13[%c0_18, %c0_19, %c16] : memref<16x16x36xf32, #tpu.memory_space<vmem>>, vector<16x16x4xf32>
    tpu.vector_store %arg13[%c0_18, %c0_19, %c16], %5 {strides = array<i32>} : memref<16x16x36xf32, #tpu.memory_space<vmem>>, vector<16x16x4xf32>,
    %15 = vector.extract_strided_slice %5 {offsets = [0, 1, 0], sizes = [16, 15, 4], strides = [1, 1, 1]} : vector<16x16x4xf32> to vector<16x15x4xf32>
    %c0_20 = arith.constant 0 : index
    %c0_21 = arith.constant 0 : index
    %c20 = arith.constant 20 : index
    %16 = vector.load %arg13[%c0_20, %c0_21, %c20] : memref<16x16x36xf32, #tpu.memory_space<vmem>>, vector<16x15x4xf32>
    tpu.vector_store %arg13[%c0_20, %c0_21, %c20], %15 {strides = array<i32>} : memref<16x16x36xf32, #tpu.memory_space<vmem>>, vector<16x15x4xf32>,
    %17 = vector.extract_strided_slice %5 {offsets = [1, 0, 0], sizes = [15, 15, 4], strides = [1, 1, 1]} : vector<16x16x4xf32> to vector<15x15x4xf32>
    %c0_22 = arith.constant 0 : index
    %c1_23 = arith.constant 1 : index
    %c24 = arith.constant 24 : index
    %18 = vector.load %arg13[%c0_22, %c1_23, %c24] : memref<16x16x36xf32, #tpu.memory_space<vmem>>, vector<15x15x4xf32>
    tpu.vector_store %arg13[%c0_22, %c1_23, %c24], %17 {strides = array<i32>} : memref<16x16x36xf32, #tpu.memory_space<vmem>>, vector<15x15x4xf32>,
    %19 = vector.extract_strided_slice %5 {offsets = [1, 0, 0], sizes = [15, 16, 4], strides = [1, 1, 1]} : vector<16x16x4xf32> to vector<15x16x4xf32>
    %c0_24 = arith.constant 0 : index
    %c0_25 = arith.constant 0 : index
    %c28 = arith.constant 28 : index
    %20 = vector.load %arg13[%c0_24, %c0_25, %c28] : memref<16x16x36xf32, #tpu.memory_space<vmem>>, vector<15x16x4xf32>
    tpu.vector_store %arg13[%c0_24, %c0_25, %c28], %19 {strides = array<i32>} : memref<16x16x36xf32, #tpu.memory_space<vmem>>, vector<15x16x4xf32>,
    %21 = vector.extract_strided_slice %5 {offsets = [1, 1, 0], sizes = [15, 15, 4], strides = [1, 1, 1]} : vector<16x16x4xf32> to vector<15x15x4xf32>
    %c0_26 = arith.constant 0 : index
    %c0_27 = arith.constant 0 : index
    %c32 = arith.constant 32 : index
    %22 = vector.load %arg13[%c0_26, %c0_27, %c32] : memref<16x16x36xf32, #tpu.memory_space<vmem>>, vector<15x15x4xf32>
    tpu.vector_store %arg13[%c0_26, %c0_27, %c32], %21 {strides = array<i32>} : memref<16x16x36xf32, #tpu.memory_space<vmem>>, vector<15x15x4xf32>,
    %c0_28 = arith.constant 0 : index
    %c0_29 = arith.constant 0 : index
    %c0_30 = arith.constant 0 : index
    %23 = vector.load %arg13[%c0_28, %c0_29, %c0_30] : memref<16x16x36xf32, #tpu.memory_space<vmem>>, vector<16x16x36xf32>
    %24 = vector.shape_cast %23 : vector<16x16x36xf32> to vector<256x36xf32>
    %c0_31 = arith.constant 0 : index
    %c0_32 = arith.constant 0 : index
    %25 = vector.load %arg2[%c0_31, %c0_32] : memref<36x8xf32, #tpu.memory_space<vmem>>, vector<36x8xf32>
    %cst_33 = arith.constant dense<0.000000e+00> : vector<256x8xf32>
    %26 = tpu.matmul %24, %25, %cst_33 {dimension_numbers = #tpu.dot_dimension_numbers<[1], [0], [0], [1], [0, 0, 1, 1], [], []>} : vector<256x36xf32>, vector<36x8xf32>, vector<256x8xf32> -> vector<256x8xf32>
    %c0_34 = arith.constant 0 : index
    %c0_35 = arith.constant 0 : index
    %27 = vector.load %arg3[%c0_34, %c0_35] : memref<1x8xf32, #tpu.memory_space<vmem>>, vector<1x8xf32>
    %28 = vector.broadcast %27 : vector<1x8xf32> to vector<256x8xf32>
    %29 = arith.addf %26, %28 : vector<256x8xf32>
    %30 = vector.shape_cast %29 : vector<256x8xf32> to vector<16x16x8xf32>
    %cst_36 = arith.constant 0xFF800000 : f32
    %31 = vector.broadcast %cst_36 : f32 to vector<18x18x8xf32>
    %c0_37 = arith.constant 0 : index
    %c0_38 = arith.constant 0 : index
    %c0_39 = arith.constant 0 : index
    %32 = vector.load %arg15[%c0_37, %c0_38, %c0_39] : memref<18x18x8xf32, #tpu.memory_space<vmem>>, vector<18x18x8xf32>
    tpu.vector_store %arg15[%c0_37, %c0_38, %c0_39], %31 {strides = array<i32>} : memref<18x18x8xf32, #tpu.memory_space<vmem>>, vector<18x18x8xf32>,
    %c1_40 = arith.constant 1 : index
    %c1_41 = arith.constant 1 : index
    %c0_42 = arith.constant 0 : index
    %33 = vector.load %arg15[%c1_40, %c1_41, %c0_42] : memref<18x18x8xf32, #tpu.memory_space<vmem>>, vector<16x16x8xf32>
    tpu.vector_store %arg15[%c1_40, %c1_41, %c0_42], %30 {strides = array<i32>} : memref<18x18x8xf32, #tpu.memory_space<vmem>>, vector<16x16x8xf32>,
    %c0_43 = arith.constant 0 : index
    %c0_44 = arith.constant 0 : index
    %c0_45 = arith.constant 0 : index
    %34 = tpu.strided_load %arg15[%c0_43, %c0_44, %c0_45] {strides = array<i32: 2, 1, 1>} : memref<18x18x8xf32, #tpu.memory_space<vmem>>, vector<9x18x8xf32>
    %c1_46 = arith.constant 1 : index
    %c0_47 = arith.constant 0 : index
    %c0_48 = arith.constant 0 : index
    %35 = tpu.strided_load %arg15[%c1_46, %c0_47, %c0_48] {strides = array<i32: 2, 1, 1>} : memref<18x18x8xf32, #tpu.memory_space<vmem>>, vector<9x18x8xf32>
    %36 = arith.maximumf %34, %35 : vector<9x18x8xf32>
    %37 = vector.extract_strided_slice %36 {offsets = [0, 0, 0], sizes = [8, 18, 8], strides = [1, 1, 1]} : vector<9x18x8xf32> to vector<8x18x8xf32>
    %38 = vector.extract_strided_slice %34 {offsets = [1, 0, 0], sizes = [8, 18, 8], strides = [1, 1, 1]} : vector<9x18x8xf32> to vector<8x18x8xf32>
    %39 = arith.maximumf %37, %38 : vector<8x18x8xf32>
    %c0_49 = arith.constant 0 : index
    %c0_50 = arith.constant 0 : index
    %c0_51 = arith.constant 0 : index
    %40 = vector.load %arg16[%c0_49, %c0_50, %c0_51] : memref<8x18x8xf32, #tpu.memory_space<vmem>>, vector<8x18x8xf32>
    tpu.vector_store %arg16[%c0_49, %c0_50, %c0_51], %39 {strides = array<i32>} : memref<8x18x8xf32, #tpu.memory_space<vmem>>, vector<8x18x8xf32>,
    %c0_52 = arith.constant 0 : index
    %c0_53 = arith.constant 0 : index
    %c0_54 = arith.constant 0 : index
    %41 = tpu.strided_load %arg16[%c0_52, %c0_53, %c0_54] {strides = array<i32: 1, 2, 1>} : memref<8x18x8xf32, #tpu.memory_space<vmem>>, vector<8x9x8xf32>
    %c0_55 = arith.constant 0 : index
    %c1_56 = arith.constant 1 : index
    %c0_57 = arith.constant 0 : index
    %42 = tpu.strided_load %arg16[%c0_55, %c1_56, %c0_57] {strides = array<i32: 1, 2, 1>} : memref<8x18x8xf32, #tpu.memory_space<vmem>>, vector<8x9x8xf32>
    %43 = arith.maximumf %41, %42 : vector<8x9x8xf32>
    %44 = vector.extract_strided_slice %43 {offsets = [0, 0, 0], sizes = [8, 8, 8], strides = [1, 1, 1]} : vector<8x9x8xf32> to vector<8x8x8xf32>
    %45 = vector.extract_strided_slice %41 {offsets = [0, 1, 0], sizes = [8, 8, 8], strides = [1, 1, 1]} : vector<8x9x8xf32> to vector<8x8x8xf32>
    %46 = arith.maximumf %44, %45 : vector<8x8x8xf32>
    %cst_58 = arith.constant 0.000000e+00 : f32
    %47 = vector.broadcast %cst_58 : f32 to vector<8x8x8xf32>
    %48 = arith.maximumf %46, %47 : vector<8x8x8xf32>
    %49 = vector.extract_strided_slice %48 {offsets = [0, 0, 0], sizes = [7, 7, 8], strides = [1, 1, 1]} : vector<8x8x8xf32> to vector<7x7x8xf32>
    %c1_59 = arith.constant 1 : index
    %c1_60 = arith.constant 1 : index
    %c0_61 = arith.constant 0 : index
    %50 = vector.load %arg14[%c1_59, %c1_60, %c0_61] : memref<8x8x72xf32, #tpu.memory_space<vmem>>, vector<7x7x8xf32>
    tpu.vector_store %arg14[%c1_59, %c1_60, %c0_61], %49 {strides = array<i32>} : memref<8x8x72xf32, #tpu.memory_space<vmem>>, vector<7x7x8xf32>,
    %51 = vector.extract_strided_slice %48 {offsets = [0, 0, 0], sizes = [7, 8, 8], strides = [1, 1, 1]} : vector<8x8x8xf32> to vector<7x8x8xf32>
    %c1_62 = arith.constant 1 : index
    %c0_63 = arith.constant 0 : index
    %c8_64 = arith.constant 8 : index
    %52 = vector.load %arg14[%c1_62, %c0_63, %c8_64] : memref<8x8x72xf32, #tpu.memory_space<vmem>>, vector<7x8x8xf32>
    tpu.vector_store %arg14[%c1_62, %c0_63, %c8_64], %51 {strides = array<i32>} : memref<8x8x72xf32, #tpu.memory_space<vmem>>, vector<7x8x8xf32>,
    %53 = vector.extract_strided_slice %48 {offsets = [0, 1, 0], sizes = [7, 7, 8], strides = [1, 1, 1]} : vector<8x8x8xf32> to vector<7x7x8xf32>
    %c1_65 = arith.constant 1 : index
    %c0_66 = arith.constant 0 : index
    %c16_67 = arith.constant 16 : index
    %54 = vector.load %arg14[%c1_65, %c0_66, %c16_67] : memref<8x8x72xf32, #tpu.memory_space<vmem>>, vector<7x7x8xf32>
    tpu.vector_store %arg14[%c1_65, %c0_66, %c16_67], %53 {strides = array<i32>} : memref<8x8x72xf32, #tpu.memory_space<vmem>>, vector<7x7x8xf32>,
    %55 = vector.extract_strided_slice %48 {offsets = [0, 0, 0], sizes = [8, 7, 8], strides = [1, 1, 1]} : vector<8x8x8xf32> to vector<8x7x8xf32>
    %c0_68 = arith.constant 0 : index
    %c1_69 = arith.constant 1 : index
    %c24_70 = arith.constant 24 : index
    %56 = vector.load %arg14[%c0_68, %c1_69, %c24_70] : memref<8x8x72xf32, #tpu.memory_space<vmem>>, vector<8x7x8xf32>
    tpu.vector_store %arg14[%c0_68, %c1_69, %c24_70], %55 {strides = array<i32>} : memref<8x8x72xf32, #tpu.memory_space<vmem>>, vector<8x7x8xf32>,
    %c0_71 = arith.constant 0 : index
    %c0_72 = arith.constant 0 : index
    %c32_73 = arith.constant 32 : index
    %57 = vector.load %arg14[%c0_71, %c0_72, %c32_73] : memref<8x8x72xf32, #tpu.memory_space<vmem>>, vector<8x8x8xf32>
    tpu.vector_store %arg14[%c0_71, %c0_72, %c32_73], %48 {strides = array<i32>} : memref<8x8x72xf32, #tpu.memory_space<vmem>>, vector<8x8x8xf32>,
    %58 = vector.extract_strided_slice %48 {offsets = [0, 1, 0], sizes = [8, 7, 8], strides = [1, 1, 1]} : vector<8x8x8xf32> to vector<8x7x8xf32>
    %c0_74 = arith.constant 0 : index
    %c0_75 = arith.constant 0 : index
    %c40 = arith.constant 40 : index
    %59 = vector.load %arg14[%c0_74, %c0_75, %c40] : memref<8x8x72xf32, #tpu.memory_space<vmem>>, vector<8x7x8xf32>
    tpu.vector_store %arg14[%c0_74, %c0_75, %c40], %58 {strides = array<i32>} : memref<8x8x72xf32, #tpu.memory_space<vmem>>, vector<8x7x8xf32>,
    %60 = vector.extract_strided_slice %48 {offsets = [1, 0, 0], sizes = [7, 7, 8], strides = [1, 1, 1]} : vector<8x8x8xf32> to vector<7x7x8xf32>
    %c0_76 = arith.constant 0 : index
    %c1_77 = arith.constant 1 : index
    %c48 = arith.constant 48 : index
    %61 = vector.load %arg14[%c0_76, %c1_77, %c48] : memref<8x8x72xf32, #tpu.memory_space<vmem>>, vector<7x7x8xf32>
    tpu.vector_store %arg14[%c0_76, %c1_77, %c48], %60 {strides = array<i32>} : memref<8x8x72xf32, #tpu.memory_space<vmem>>, vector<7x7x8xf32>,
    %62 = vector.extract_strided_slice %48 {offsets = [1, 0, 0], sizes = [7, 8, 8], strides = [1, 1, 1]} : vector<8x8x8xf32> to vector<7x8x8xf32>
    %c0_78 = arith.constant 0 : index
    %c0_79 = arith.constant 0 : index
    %c56 = arith.constant 56 : index
    %63 = vector.load %arg14[%c0_78, %c0_79, %c56] : memref<8x8x72xf32, #tpu.memory_space<vmem>>, vector<7x8x8xf32>
    tpu.vector_store %arg14[%c0_78, %c0_79, %c56], %62 {strides = array<i32>} : memref<8x8x72xf32, #tpu.memory_space<vmem>>, vector<7x8x8xf32>,
    %64 = vector.extract_strided_slice %48 {offsets = [1, 1, 0], sizes = [7, 7, 8], strides = [1, 1, 1]} : vector<8x8x8xf32> to vector<7x7x8xf32>
    %c0_80 = arith.constant 0 : index
    %c0_81 = arith.constant 0 : index
    %c64 = arith.constant 64 : index
    %65 = vector.load %arg14[%c0_80, %c0_81, %c64] : memref<8x8x72xf32, #tpu.memory_space<vmem>>, vector<7x7x8xf32>
    tpu.vector_store %arg14[%c0_80, %c0_81, %c64], %64 {strides = array<i32>} : memref<8x8x72xf32, #tpu.memory_space<vmem>>, vector<7x7x8xf32>,
    %c0_82 = arith.constant 0 : index
    %c0_83 = arith.constant 0 : index
    %c0_84 = arith.constant 0 : index
    %66 = vector.load %arg14[%c0_82, %c0_83, %c0_84] : memref<8x8x72xf32, #tpu.memory_space<vmem>>, vector<8x8x72xf32>
    %67 = vector.shape_cast %66 : vector<8x8x72xf32> to vector<64x72xf32>
    %c0_85 = arith.constant 0 : index
    %c0_86 = arith.constant 0 : index
    %68 = vector.load %arg4[%c0_85, %c0_86] : memref<72x8xf32, #tpu.memory_space<vmem>>, vector<72x8xf32>
    %cst_87 = arith.constant dense<0.000000e+00> : vector<64x8xf32>
    %69 = tpu.matmul %67, %68, %cst_87 {dimension_numbers = #tpu.dot_dimension_numbers<[1], [0], [0], [1], [0, 0, 1, 1], [], []>} : vector<64x72xf32>, vector<72x8xf32>, vector<64x8xf32> -> vector<64x8xf32>
    %c0_88 = arith.constant 0 : index
    %c0_89 = arith.constant 0 : index
    %70 = vector.load %arg5[%c0_88, %c0_89] : memref<1x8xf32, #tpu.memory_space<vmem>>, vector<1x8xf32>
    %71 = vector.broadcast %70 : vector<1x8xf32> to vector<64x8xf32>
    %72 = arith.addf %69, %71 : vector<64x8xf32>
    %73 = vector.shape_cast %72 : vector<64x8xf32> to vector<8x8x8xf32>
    %cst_90 = arith.constant 0.000000e+00 : f32
    %74 = vector.broadcast %cst_90 : f32 to vector<8x8x8xf32>
    %75 = arith.maximumf %73, %74 : vector<8x8x8xf32>
    %76 = vector.extract_strided_slice %75 {offsets = [0, 0, 0], sizes = [7, 7, 8], strides = [1, 1, 1]} : vector<8x8x8xf32> to vector<7x7x8xf32>
    %c1_91 = arith.constant 1 : index
    %c1_92 = arith.constant 1 : index
    %c0_93 = arith.constant 0 : index
    %77 = vector.load %arg14[%c1_91, %c1_92, %c0_93] : memref<8x8x72xf32, #tpu.memory_space<vmem>>, vector<7x7x8xf32>
    tpu.vector_store %arg14[%c1_91, %c1_92, %c0_93], %76 {strides = array<i32>} : memref<8x8x72xf32, #tpu.memory_space<vmem>>, vector<7x7x8xf32>,
    %78 = vector.extract_strided_slice %75 {offsets = [0, 0, 0], sizes = [7, 8, 8], strides = [1, 1, 1]} : vector<8x8x8xf32> to vector<7x8x8xf32>
    %c1_94 = arith.constant 1 : index
    %c0_95 = arith.constant 0 : index
    %c8_96 = arith.constant 8 : index
    %79 = vector.load %arg14[%c1_94, %c0_95, %c8_96] : memref<8x8x72xf32, #tpu.memory_space<vmem>>, vector<7x8x8xf32>
    tpu.vector_store %arg14[%c1_94, %c0_95, %c8_96], %78 {strides = array<i32>} : memref<8x8x72xf32, #tpu.memory_space<vmem>>, vector<7x8x8xf32>,
    %80 = vector.extract_strided_slice %75 {offsets = [0, 1, 0], sizes = [7, 7, 8], strides = [1, 1, 1]} : vector<8x8x8xf32> to vector<7x7x8xf32>
    %c1_97 = arith.constant 1 : index
    %c0_98 = arith.constant 0 : index
    %c16_99 = arith.constant 16 : index
    %81 = vector.load %arg14[%c1_97, %c0_98, %c16_99] : memref<8x8x72xf32, #tpu.memory_space<vmem>>, vector<7x7x8xf32>
    tpu.vector_store %arg14[%c1_97, %c0_98, %c16_99], %80 {strides = array<i32>} : memref<8x8x72xf32, #tpu.memory_space<vmem>>, vector<7x7x8xf32>,
    %82 = vector.extract_strided_slice %75 {offsets = [0, 0, 0], sizes = [8, 7, 8], strides = [1, 1, 1]} : vector<8x8x8xf32> to vector<8x7x8xf32>
    %c0_100 = arith.constant 0 : index
    %c1_101 = arith.constant 1 : index
    %c24_102 = arith.constant 24 : index
    %83 = vector.load %arg14[%c0_100, %c1_101, %c24_102] : memref<8x8x72xf32, #tpu.memory_space<vmem>>, vector<8x7x8xf32>
    tpu.vector_store %arg14[%c0_100, %c1_101, %c24_102], %82 {strides = array<i32>} : memref<8x8x72xf32, #tpu.memory_space<vmem>>, vector<8x7x8xf32>,
    %c0_103 = arith.constant 0 : index
    %c0_104 = arith.constant 0 : index
    %c32_105 = arith.constant 32 : index
    %84 = vector.load %arg14[%c0_103, %c0_104, %c32_105] : memref<8x8x72xf32, #tpu.memory_space<vmem>>, vector<8x8x8xf32>
    tpu.vector_store %arg14[%c0_103, %c0_104, %c32_105], %75 {strides = array<i32>} : memref<8x8x72xf32, #tpu.memory_space<vmem>>, vector<8x8x8xf32>,
    %85 = vector.extract_strided_slice %75 {offsets = [0, 1, 0], sizes = [8, 7, 8], strides = [1, 1, 1]} : vector<8x8x8xf32> to vector<8x7x8xf32>
    %c0_106 = arith.constant 0 : index
    %c0_107 = arith.constant 0 : index
    %c40_108 = arith.constant 40 : index
    %86 = vector.load %arg14[%c0_106, %c0_107, %c40_108] : memref<8x8x72xf32, #tpu.memory_space<vmem>>, vector<8x7x8xf32>
    tpu.vector_store %arg14[%c0_106, %c0_107, %c40_108], %85 {strides = array<i32>} : memref<8x8x72xf32, #tpu.memory_space<vmem>>, vector<8x7x8xf32>,
    %87 = vector.extract_strided_slice %75 {offsets = [1, 0, 0], sizes = [7, 7, 8], strides = [1, 1, 1]} : vector<8x8x8xf32> to vector<7x7x8xf32>
    %c0_109 = arith.constant 0 : index
    %c1_110 = arith.constant 1 : index
    %c48_111 = arith.constant 48 : index
    %88 = vector.load %arg14[%c0_109, %c1_110, %c48_111] : memref<8x8x72xf32, #tpu.memory_space<vmem>>, vector<7x7x8xf32>
    tpu.vector_store %arg14[%c0_109, %c1_110, %c48_111], %87 {strides = array<i32>} : memref<8x8x72xf32, #tpu.memory_space<vmem>>, vector<7x7x8xf32>,
    %89 = vector.extract_strided_slice %75 {offsets = [1, 0, 0], sizes = [7, 8, 8], strides = [1, 1, 1]} : vector<8x8x8xf32> to vector<7x8x8xf32>
    %c0_112 = arith.constant 0 : index
    %c0_113 = arith.constant 0 : index
    %c56_114 = arith.constant 56 : index
    %90 = vector.load %arg14[%c0_112, %c0_113, %c56_114] : memref<8x8x72xf32, #tpu.memory_space<vmem>>, vector<7x8x8xf32>
    tpu.vector_store %arg14[%c0_112, %c0_113, %c56_114], %89 {strides = array<i32>} : memref<8x8x72xf32, #tpu.memory_space<vmem>>, vector<7x8x8xf32>,
    %91 = vector.extract_strided_slice %75 {offsets = [1, 1, 0], sizes = [7, 7, 8], strides = [1, 1, 1]} : vector<8x8x8xf32> to vector<7x7x8xf32>
    %c0_115 = arith.constant 0 : index
    %c0_116 = arith.constant 0 : index
    %c64_117 = arith.constant 64 : index
    %92 = vector.load %arg14[%c0_115, %c0_116, %c64_117] : memref<8x8x72xf32, #tpu.memory_space<vmem>>, vector<7x7x8xf32>
    tpu.vector_store %arg14[%c0_115, %c0_116, %c64_117], %91 {strides = array<i32>} : memref<8x8x72xf32, #tpu.memory_space<vmem>>, vector<7x7x8xf32>,
    %c0_118 = arith.constant 0 : index
    %c0_119 = arith.constant 0 : index
    %c0_120 = arith.constant 0 : index
    %93 = vector.load %arg14[%c0_118, %c0_119, %c0_120] : memref<8x8x72xf32, #tpu.memory_space<vmem>>, vector<8x8x72xf32>
    %94 = vector.shape_cast %93 : vector<8x8x72xf32> to vector<64x72xf32>
    %c0_121 = arith.constant 0 : index
    %c0_122 = arith.constant 0 : index
    %95 = vector.load %arg6[%c0_121, %c0_122] : memref<72x8xf32, #tpu.memory_space<vmem>>, vector<72x8xf32>
    %cst_123 = arith.constant dense<0.000000e+00> : vector<64x8xf32>
    %96 = tpu.matmul %94, %95, %cst_123 {dimension_numbers = #tpu.dot_dimension_numbers<[1], [0], [0], [1], [0, 0, 1, 1], [], []>} : vector<64x72xf32>, vector<72x8xf32>, vector<64x8xf32> -> vector<64x8xf32>
    %c0_124 = arith.constant 0 : index
    %c0_125 = arith.constant 0 : index
    %97 = vector.load %arg7[%c0_124, %c0_125] : memref<1x8xf32, #tpu.memory_space<vmem>>, vector<1x8xf32>
    %98 = vector.broadcast %97 : vector<1x8xf32> to vector<64x8xf32>
    %99 = arith.addf %96, %98 : vector<64x8xf32>
    %100 = vector.shape_cast %99 : vector<64x8xf32> to vector<8x8x8xf32>
    %101 = arith.addf %100, %46 : vector<8x8x8xf32>
    %cst_126 = arith.constant 0.000000e+00 : f32
    %102 = vector.broadcast %cst_126 : f32 to vector<8x8x8xf32>
    %103 = arith.maximumf %101, %102 : vector<8x8x8xf32>
    %104 = vector.extract_strided_slice %103 {offsets = [0, 0, 0], sizes = [7, 7, 8], strides = [1, 1, 1]} : vector<8x8x8xf32> to vector<7x7x8xf32>
    %c1_127 = arith.constant 1 : index
    %c1_128 = arith.constant 1 : index
    %c0_129 = arith.constant 0 : index
    %105 = vector.load %arg14[%c1_127, %c1_128, %c0_129] : memref<8x8x72xf32, #tpu.memory_space<vmem>>, vector<7x7x8xf32>
    tpu.vector_store %arg14[%c1_127, %c1_128, %c0_129], %104 {strides = array<i32>} : memref<8x8x72xf32, #tpu.memory_space<vmem>>, vector<7x7x8xf32>,
    %106 = vector.extract_strided_slice %103 {offsets = [0, 0, 0], sizes = [7, 8, 8], strides = [1, 1, 1]} : vector<8x8x8xf32> to vector<7x8x8xf32>
    %c1_130 = arith.constant 1 : index
    %c0_131 = arith.constant 0 : index
    %c8_132 = arith.constant 8 : index
    %107 = vector.load %arg14[%c1_130, %c0_131, %c8_132] : memref<8x8x72xf32, #tpu.memory_space<vmem>>, vector<7x8x8xf32>
    tpu.vector_store %arg14[%c1_130, %c0_131, %c8_132], %106 {strides = array<i32>} : memref<8x8x72xf32, #tpu.memory_space<vmem>>, vector<7x8x8xf32>,
    %108 = vector.extract_strided_slice %103 {offsets = [0, 1, 0], sizes = [7, 7, 8], strides = [1, 1, 1]} : vector<8x8x8xf32> to vector<7x7x8xf32>
    %c1_133 = arith.constant 1 : index
    %c0_134 = arith.constant 0 : index
    %c16_135 = arith.constant 16 : index
    %109 = vector.load %arg14[%c1_133, %c0_134, %c16_135] : memref<8x8x72xf32, #tpu.memory_space<vmem>>, vector<7x7x8xf32>
    tpu.vector_store %arg14[%c1_133, %c0_134, %c16_135], %108 {strides = array<i32>} : memref<8x8x72xf32, #tpu.memory_space<vmem>>, vector<7x7x8xf32>,
    %110 = vector.extract_strided_slice %103 {offsets = [0, 0, 0], sizes = [8, 7, 8], strides = [1, 1, 1]} : vector<8x8x8xf32> to vector<8x7x8xf32>
    %c0_136 = arith.constant 0 : index
    %c1_137 = arith.constant 1 : index
    %c24_138 = arith.constant 24 : index
    %111 = vector.load %arg14[%c0_136, %c1_137, %c24_138] : memref<8x8x72xf32, #tpu.memory_space<vmem>>, vector<8x7x8xf32>
    tpu.vector_store %arg14[%c0_136, %c1_137, %c24_138], %110 {strides = array<i32>} : memref<8x8x72xf32, #tpu.memory_space<vmem>>, vector<8x7x8xf32>,
    %c0_139 = arith.constant 0 : index
    %c0_140 = arith.constant 0 : index
    %c32_141 = arith.constant 32 : index
    %112 = vector.load %arg14[%c0_139, %c0_140, %c32_141] : memref<8x8x72xf32, #tpu.memory_space<vmem>>, vector<8x8x8xf32>
    tpu.vector_store %arg14[%c0_139, %c0_140, %c32_141], %103 {strides = array<i32>} : memref<8x8x72xf32, #tpu.memory_space<vmem>>, vector<8x8x8xf32>,
    %113 = vector.extract_strided_slice %103 {offsets = [0, 1, 0], sizes = [8, 7, 8], strides = [1, 1, 1]} : vector<8x8x8xf32> to vector<8x7x8xf32>
    %c0_142 = arith.constant 0 : index
    %c0_143 = arith.constant 0 : index
    %c40_144 = arith.constant 40 : index
    %114 = vector.load %arg14[%c0_142, %c0_143, %c40_144] : memref<8x8x72xf32, #tpu.memory_space<vmem>>, vector<8x7x8xf32>
    tpu.vector_store %arg14[%c0_142, %c0_143, %c40_144], %113 {strides = array<i32>} : memref<8x8x72xf32, #tpu.memory_space<vmem>>, vector<8x7x8xf32>,
    %115 = vector.extract_strided_slice %103 {offsets = [1, 0, 0], sizes = [7, 7, 8], strides = [1, 1, 1]} : vector<8x8x8xf32> to vector<7x7x8xf32>
    %c0_145 = arith.constant 0 : index
    %c1_146 = arith.constant 1 : index
    %c48_147 = arith.constant 48 : index
    %116 = vector.load %arg14[%c0_145, %c1_146, %c48_147] : memref<8x8x72xf32, #tpu.memory_space<vmem>>, vector<7x7x8xf32>
    tpu.vector_store %arg14[%c0_145, %c1_146, %c48_147], %115 {strides = array<i32>} : memref<8x8x72xf32, #tpu.memory_space<vmem>>, vector<7x7x8xf32>,
    %117 = vector.extract_strided_slice %103 {offsets = [1, 0, 0], sizes = [7, 8, 8], strides = [1, 1, 1]} : vector<8x8x8xf32> to vector<7x8x8xf32>
    %c0_148 = arith.constant 0 : index
    %c0_149 = arith.constant 0 : index
    %c56_150 = arith.constant 56 : index
    %118 = vector.load %arg14[%c0_148, %c0_149, %c56_150] : memref<8x8x72xf32, #tpu.memory_space<vmem>>, vector<7x8x8xf32>
    tpu.vector_store %arg14[%c0_148, %c0_149, %c56_150], %117 {strides = array<i32>} : memref<8x8x72xf32, #tpu.memory_space<vmem>>, vector<7x8x8xf32>,
    %119 = vector.extract_strided_slice %103 {offsets = [1, 1, 0], sizes = [7, 7, 8], strides = [1, 1, 1]} : vector<8x8x8xf32> to vector<7x7x8xf32>
    %c0_151 = arith.constant 0 : index
    %c0_152 = arith.constant 0 : index
    %c64_153 = arith.constant 64 : index
    %120 = vector.load %arg14[%c0_151, %c0_152, %c64_153] : memref<8x8x72xf32, #tpu.memory_space<vmem>>, vector<7x7x8xf32>
    tpu.vector_store %arg14[%c0_151, %c0_152, %c64_153], %119 {strides = array<i32>} : memref<8x8x72xf32, #tpu.memory_space<vmem>>, vector<7x7x8xf32>,
    %c0_154 = arith.constant 0 : index
    %c0_155 = arith.constant 0 : index
    %c0_156 = arith.constant 0 : index
    %121 = vector.load %arg14[%c0_154, %c0_155, %c0_156] : memref<8x8x72xf32, #tpu.memory_space<vmem>>, vector<8x8x72xf32>
    %122 = vector.shape_cast %121 : vector<8x8x72xf32> to vector<64x72xf32>
    %c0_157 = arith.constant 0 : index
    %c0_158 = arith.constant 0 : index
    %123 = vector.load %arg8[%c0_157, %c0_158] : memref<72x8xf32, #tpu.memory_space<vmem>>, vector<72x8xf32>
    %cst_159 = arith.constant dense<0.000000e+00> : vector<64x8xf32>
    %124 = tpu.matmul %122, %123, %cst_159 {dimension_numbers = #tpu.dot_dimension_numbers<[1], [0], [0], [1], [0, 0, 1, 1], [], []>} : vector<64x72xf32>, vector<72x8xf32>, vector<64x8xf32> -> vector<64x8xf32>
    %c0_160 = arith.constant 0 : index
    %c0_161 = arith.constant 0 : index
    %125 = vector.load %arg9[%c0_160, %c0_161] : memref<1x8xf32, #tpu.memory_space<vmem>>, vector<1x8xf32>
    %126 = vector.broadcast %125 : vector<1x8xf32> to vector<64x8xf32>
    %127 = arith.addf %124, %126 : vector<64x8xf32>
    %128 = vector.shape_cast %127 : vector<64x8xf32> to vector<8x8x8xf32>
    %cst_162 = arith.constant 0.000000e+00 : f32
    %129 = vector.broadcast %cst_162 : f32 to vector<8x8x8xf32>
    %130 = arith.maximumf %128, %129 : vector<8x8x8xf32>
    %131 = vector.extract_strided_slice %130 {offsets = [0, 0, 0], sizes = [7, 7, 8], strides = [1, 1, 1]} : vector<8x8x8xf32> to vector<7x7x8xf32>
    %c1_163 = arith.constant 1 : index
    %c1_164 = arith.constant 1 : index
    %c0_165 = arith.constant 0 : index
    %132 = vector.load %arg14[%c1_163, %c1_164, %c0_165] : memref<8x8x72xf32, #tpu.memory_space<vmem>>, vector<7x7x8xf32>
    tpu.vector_store %arg14[%c1_163, %c1_164, %c0_165], %131 {strides = array<i32>} : memref<8x8x72xf32, #tpu.memory_space<vmem>>, vector<7x7x8xf32>,
    %133 = vector.extract_strided_slice %130 {offsets = [0, 0, 0], sizes = [7, 8, 8], strides = [1, 1, 1]} : vector<8x8x8xf32> to vector<7x8x8xf32>
    %c1_166 = arith.constant 1 : index
    %c0_167 = arith.constant 0 : index
    %c8_168 = arith.constant 8 : index
    %134 = vector.load %arg14[%c1_166, %c0_167, %c8_168] : memref<8x8x72xf32, #tpu.memory_space<vmem>>, vector<7x8x8xf32>
    tpu.vector_store %arg14[%c1_166, %c0_167, %c8_168], %133 {strides = array<i32>} : memref<8x8x72xf32, #tpu.memory_space<vmem>>, vector<7x8x8xf32>,
    %135 = vector.extract_strided_slice %130 {offsets = [0, 1, 0], sizes = [7, 7, 8], strides = [1, 1, 1]} : vector<8x8x8xf32> to vector<7x7x8xf32>
    %c1_169 = arith.constant 1 : index
    %c0_170 = arith.constant 0 : index
    %c16_171 = arith.constant 16 : index
    %136 = vector.load %arg14[%c1_169, %c0_170, %c16_171] : memref<8x8x72xf32, #tpu.memory_space<vmem>>, vector<7x7x8xf32>
    tpu.vector_store %arg14[%c1_169, %c0_170, %c16_171], %135 {strides = array<i32>} : memref<8x8x72xf32, #tpu.memory_space<vmem>>, vector<7x7x8xf32>,
    %137 = vector.extract_strided_slice %130 {offsets = [0, 0, 0], sizes = [8, 7, 8], strides = [1, 1, 1]} : vector<8x8x8xf32> to vector<8x7x8xf32>
    %c0_172 = arith.constant 0 : index
    %c1_173 = arith.constant 1 : index
    %c24_174 = arith.constant 24 : index
    %138 = vector.load %arg14[%c0_172, %c1_173, %c24_174] : memref<8x8x72xf32, #tpu.memory_space<vmem>>, vector<8x7x8xf32>
    tpu.vector_store %arg14[%c0_172, %c1_173, %c24_174], %137 {strides = array<i32>} : memref<8x8x72xf32, #tpu.memory_space<vmem>>, vector<8x7x8xf32>,
    %c0_175 = arith.constant 0 : index
    %c0_176 = arith.constant 0 : index
    %c32_177 = arith.constant 32 : index
    %139 = vector.load %arg14[%c0_175, %c0_176, %c32_177] : memref<8x8x72xf32, #tpu.memory_space<vmem>>, vector<8x8x8xf32>
    tpu.vector_store %arg14[%c0_175, %c0_176, %c32_177], %130 {strides = array<i32>} : memref<8x8x72xf32, #tpu.memory_space<vmem>>, vector<8x8x8xf32>,
    %140 = vector.extract_strided_slice %130 {offsets = [0, 1, 0], sizes = [8, 7, 8], strides = [1, 1, 1]} : vector<8x8x8xf32> to vector<8x7x8xf32>
    %c0_178 = arith.constant 0 : index
    %c0_179 = arith.constant 0 : index
    %c40_180 = arith.constant 40 : index
    %141 = vector.load %arg14[%c0_178, %c0_179, %c40_180] : memref<8x8x72xf32, #tpu.memory_space<vmem>>, vector<8x7x8xf32>
    tpu.vector_store %arg14[%c0_178, %c0_179, %c40_180], %140 {strides = array<i32>} : memref<8x8x72xf32, #tpu.memory_space<vmem>>, vector<8x7x8xf32>,
    %142 = vector.extract_strided_slice %130 {offsets = [1, 0, 0], sizes = [7, 7, 8], strides = [1, 1, 1]} : vector<8x8x8xf32> to vector<7x7x8xf32>
    %c0_181 = arith.constant 0 : index
    %c1_182 = arith.constant 1 : index
    %c48_183 = arith.constant 48 : index
    %143 = vector.load %arg14[%c0_181, %c1_182, %c48_183] : memref<8x8x72xf32, #tpu.memory_space<vmem>>, vector<7x7x8xf32>
    tpu.vector_store %arg14[%c0_181, %c1_182, %c48_183], %142 {strides = array<i32>} : memref<8x8x72xf32, #tpu.memory_space<vmem>>, vector<7x7x8xf32>,
    %144 = vector.extract_strided_slice %130 {offsets = [1, 0, 0], sizes = [7, 8, 8], strides = [1, 1, 1]} : vector<8x8x8xf32> to vector<7x8x8xf32>
    %c0_184 = arith.constant 0 : index
    %c0_185 = arith.constant 0 : index
    %c56_186 = arith.constant 56 : index
    %145 = vector.load %arg14[%c0_184, %c0_185, %c56_186] : memref<8x8x72xf32, #tpu.memory_space<vmem>>, vector<7x8x8xf32>
    tpu.vector_store %arg14[%c0_184, %c0_185, %c56_186], %144 {strides = array<i32>} : memref<8x8x72xf32, #tpu.memory_space<vmem>>, vector<7x8x8xf32>,
    %146 = vector.extract_strided_slice %130 {offsets = [1, 1, 0], sizes = [7, 7, 8], strides = [1, 1, 1]} : vector<8x8x8xf32> to vector<7x7x8xf32>
    %c0_187 = arith.constant 0 : index
    %c0_188 = arith.constant 0 : index
    %c64_189 = arith.constant 64 : index
    %147 = vector.load %arg14[%c0_187, %c0_188, %c64_189] : memref<8x8x72xf32, #tpu.memory_space<vmem>>, vector<7x7x8xf32>
    tpu.vector_store %arg14[%c0_187, %c0_188, %c64_189], %146 {strides = array<i32>} : memref<8x8x72xf32, #tpu.memory_space<vmem>>, vector<7x7x8xf32>,
    %c0_190 = arith.constant 0 : index
    %c0_191 = arith.constant 0 : index
    %c0_192 = arith.constant 0 : index
    %148 = vector.load %arg14[%c0_190, %c0_191, %c0_192] : memref<8x8x72xf32, #tpu.memory_space<vmem>>, vector<8x8x72xf32>
    %149 = vector.shape_cast %148 : vector<8x8x72xf32> to vector<64x72xf32>
    %c0_193 = arith.constant 0 : index
    %c0_194 = arith.constant 0 : index
    %150 = vector.load %arg10[%c0_193, %c0_194] : memref<72x8xf32, #tpu.memory_space<vmem>>, vector<72x8xf32>
    %cst_195 = arith.constant dense<0.000000e+00> : vector<64x8xf32>
    %151 = tpu.matmul %149, %150, %cst_195 {dimension_numbers = #tpu.dot_dimension_numbers<[1], [0], [0], [1], [0, 0, 1, 1], [], []>} : vector<64x72xf32>, vector<72x8xf32>, vector<64x8xf32> -> vector<64x8xf32>
    %c0_196 = arith.constant 0 : index
    %c0_197 = arith.constant 0 : index
    %152 = vector.load %arg11[%c0_196, %c0_197] : memref<1x8xf32, #tpu.memory_space<vmem>>, vector<1x8xf32>
    %153 = vector.broadcast %152 : vector<1x8xf32> to vector<64x8xf32>
    %154 = arith.addf %151, %153 : vector<64x8xf32>
    %155 = vector.shape_cast %154 : vector<64x8xf32> to vector<8x8x8xf32>
    %156 = arith.addf %155, %101 : vector<8x8x8xf32>
    %c0_198 = arith.constant 0 : index
    %c0_199 = arith.constant 0 : index
    %c0_200 = arith.constant 0 : index
    %c0_201 = arith.constant 0 : index
    %157 = vector.load %arg12[%c0_198, %c0_199, %c0_200, %c0_201] : memref<1x8x8x8xf32, #tpu.memory_space<vmem>>, vector<1x8x8x8xf32>
    %158 = vector.shape_cast %157 : vector<1x8x8x8xf32> to vector<8x8x8xf32>
    %159 = vector.shape_cast %156 : vector<8x8x8xf32> to vector<1x8x8x8xf32>
    tpu.vector_store %arg12[%c0_198, %c0_199, %c0_200, %c0_201], %159 {strides = array<i32>} : memref<1x8x8x8xf32, #tpu.memory_space<vmem>>, vector<1x8x8x8xf32>,
    return
  }
  func.func @transform_0(%arg0: i32) -> (i32, i32, i32, i32) {
    %c0_i32 = arith.constant 0 : i32
    %c0_i32_0 = arith.constant 0 : i32
    %c0_i32_1 = arith.constant 0 : i32
    %c0_i32_2 = arith.constant 0 : i32
    return %arg0, %c0_i32, %c0_i32_0, %c0_i32_1 : i32, i32, i32, i32
  }
  func.func @transform_1(%arg0: i32) -> (i32, i32) {
    %c0_i32 = arith.constant 0 : i32
    %c0_i32_0 = arith.constant 0 : i32
    %c0_i32_1 = arith.constant 0 : i32
    return %c0_i32, %c0_i32_0 : i32, i32
  }
  func.func @transform_2(%arg0: i32) -> (i32, i32) {
    %c0_i32 = arith.constant 0 : i32
    %c0_i32_0 = arith.constant 0 : i32
    %c0_i32_1 = arith.constant 0 : i32
    return %c0_i32, %c0_i32_0 : i32, i32
  }
  func.func @transform_3(%arg0: i32) -> (i32, i32) {
    %c0_i32 = arith.constant 0 : i32
    %c0_i32_0 = arith.constant 0 : i32
    %c0_i32_1 = arith.constant 0 : i32
    return %c0_i32, %c0_i32_0 : i32, i32
  }
  func.func @transform_4(%arg0: i32) -> (i32, i32) {
    %c0_i32 = arith.constant 0 : i32
    %c0_i32_0 = arith.constant 0 : i32
    %c0_i32_1 = arith.constant 0 : i32
    return %c0_i32, %c0_i32_0 : i32, i32
  }
  func.func @transform_5(%arg0: i32) -> (i32, i32) {
    %c0_i32 = arith.constant 0 : i32
    %c0_i32_0 = arith.constant 0 : i32
    %c0_i32_1 = arith.constant 0 : i32
    return %c0_i32, %c0_i32_0 : i32, i32
  }
  func.func @transform_6(%arg0: i32) -> (i32, i32) {
    %c0_i32 = arith.constant 0 : i32
    %c0_i32_0 = arith.constant 0 : i32
    %c0_i32_1 = arith.constant 0 : i32
    return %c0_i32, %c0_i32_0 : i32, i32
  }
  func.func @transform_7(%arg0: i32) -> (i32, i32) {
    %c0_i32 = arith.constant 0 : i32
    %c0_i32_0 = arith.constant 0 : i32
    %c0_i32_1 = arith.constant 0 : i32
    return %c0_i32, %c0_i32_0 : i32, i32
  }
  func.func @transform_8(%arg0: i32) -> (i32, i32) {
    %c0_i32 = arith.constant 0 : i32
    %c0_i32_0 = arith.constant 0 : i32
    %c0_i32_1 = arith.constant 0 : i32
    return %c0_i32, %c0_i32_0 : i32, i32
  }
  func.func @transform_9(%arg0: i32) -> (i32, i32) {
    %c0_i32 = arith.constant 0 : i32
    %c0_i32_0 = arith.constant 0 : i32
    %c0_i32_1 = arith.constant 0 : i32
    return %c0_i32, %c0_i32_0 : i32, i32
  }
  func.func @transform_10(%arg0: i32) -> (i32, i32) {
    %c0_i32 = arith.constant 0 : i32
    %c0_i32_0 = arith.constant 0 : i32
    %c0_i32_1 = arith.constant 0 : i32
    return %c0_i32, %c0_i32_0 : i32, i32
  }
  func.func @transform_11(%arg0: i32) -> (i32, i32, i32, i32) {
    %c0_i32 = arith.constant 0 : i32
    %c0_i32_0 = arith.constant 0 : i32
    %c0_i32_1 = arith.constant 0 : i32
    %c0_i32_2 = arith.constant 0 : i32
    return %arg0, %c0_i32, %c0_i32_0, %c0_i32_1 : i32, i32, i32, i32
  }
}

</mosaic_0001>

<llo_original>
// kernel: impala_conv_sequence.1
$region0: #{impala_conv_sequence.1}
  #allocation0 [shape = 'u32[]', space=smem, size = 0x4, offset = 0x4, fixed_abs, tag = 'smem constant byte address 0x4 - core index']
  #allocation1 [shape = 'u32[144,128]{1,0:T(1,128)}', space=vmem, size = 0x12000, scoped, tag = 'internal scratch']
  #allocation2 [shape = 'f32[16,16,36]{2,1,0:T(8,128)}', space=vmem, size = 0x20000, scoped, tag = 'scratch operand']
  #allocation3 [shape = 'f32[8,8,72]{2,1,0:T(8,128)}', space=vmem, size = 0x8000, scoped, tag = 'scratch operand']
  #allocation4 [shape = 'f32[18,18,8]{2,1,0:T(8,128)}', space=vmem, size = 0x36000, scoped, tag = 'scratch operand']
  #allocation5 [shape = 'f32[8,18,8]{2,1,0:T(8,128)}', space=vmem, size = 0x18000, scoped, tag = 'scratch operand']
  %s0 = inlined_call_operand.vmem [shape: f32[2,16,16,4], index: 0, kind: input, shape index: {}]
  %s1 = inlined_call_operand.vmem [shape: f32[36,8], index: 1, kind: input, shape index: {}]
  %s2 = inlined_call_operand.vmem [shape: f32[1,8], index: 2, kind: input, shape index: {}]
  %s3 = inlined_call_operand.vmem [shape: f32[72,8], index: 3, kind: input, shape index: {}]
  %s4 = inlined_call_operand.vmem [shape: f32[1,8], index: 4, kind: input, shape index: {}]
  %s5 = inlined_call_operand.vmem [shape: f32[72,8], index: 5, kind: input, shape index: {}]
  %s6 = inlined_call_operand.vmem [shape: f32[1,8], index: 6, kind: input, shape index: {}]
  %s7 = inlined_call_operand.vmem [shape: f32[72,8], index: 7, kind: input, shape index: {}]
  %s8 = inlined_call_operand.vmem [shape: f32[1,8], index: 8, kind: input, shape index: {}]
  %s9 = inlined_call_operand.vmem [shape: f32[72,8], index: 9, kind: input, shape index: {}]
  %s10 = inlined_call_operand.vmem [shape: f32[1,8], index: 10, kind: input, shape index: {}]
  %s11 = inlined_call_operand.vmem [shape: f32[2,8,8,8], index: 11, kind: output, shape index: {}]
  %s12 = sld [smem:[#allocation0]]
  $region77: #{impala_conv_sequence.1} parent=0
    _
  %s14 = ssub.s32 1, %s12
  %s15 = scalar_select 0, %s14, %s12
  loop: start=0, step=1, limit=4
  $region2: #{impala_conv_sequence.1} parent=0 // loop_pre_header
    _
  $region3: #{impala_conv_sequence.1} parent=0 // loop_header
    %s17 = sphi 0, %s21
    %p18 = scmp.ge.s32.totalorder %s17, 4
    %s27 = sphi 0, %s29
    %s30 = sphi 0, %s27
    %s31 = sphi 0, %s30
    %s47 = sphi 0, %s31
    %s51 = sphi 0, %s51
    %s53 = sphi 0, %s51
    %s54 = sphi 0, %s53
    %s68 = sphi 0, %s54
    %s72 = sphi 0, %s72
    %s74 = sphi 0, %s72
    %s75 = sphi 0, %s74
    %s89 = sphi 0, %s75
    %s93 = sphi 0, %s93
    %s95 = sphi 0, %s93
    %s96 = sphi 0, %s95
    %s110 = sphi 0, %s96
    %s114 = sphi 0, %s114
    %s116 = sphi 0, %s114
    %s117 = sphi 0, %s116
    %s131 = sphi 0, %s117
    %s135 = sphi 0, %s135
    %s137 = sphi 0, %s135
    %s138 = sphi 0, %s137
    %s152 = sphi 0, %s138
    %s156 = sphi 0, %s156
    %s158 = sphi 0, %s156
    %s159 = sphi 0, %s158
    %s173 = sphi 0, %s159
    %s177 = sphi 0, %s177
    %s179 = sphi 0, %s177
    %s180 = sphi 0, %s179
    %s194 = sphi 0, %s180
    %s198 = sphi 0, %s198
    %s200 = sphi 0, %s198
    %s201 = sphi 0, %s200
    %s215 = sphi 0, %s201
    %s219 = sphi 0, %s219
    %s221 = sphi 0, %s219
    %s222 = sphi 0, %s221
    %s236 = sphi 0, %s222
    %s240 = sphi 0, %s240
    %s242 = sphi 0, %s240
    %s243 = sphi 0, %s242
    %s257 = sphi 0, %s243
    %s263 = sphi 0, %s265
    %s266 = sphi 0, %s263
    %s267 = sphi 0, %s266
    %s283 = sphi 0, %s267
  $region4: #{impala_conv_sequence.1} parent=0 // loop_header_branch
    %20 = sbr.rel (%p18) target = $region8
  $region5: #{impala_conv_sequence.1} parent=0 // loop_body
    %s22 = ssub.s32 %s17, 1
    %s23 = ssub.s32 %s17, 2
    %s24 = sadd.s32 %s17, 1
    %s25 = ssub.s32 %s17, %s24
    %p26 = scmp.eq.s32.totalorder %s25, 0
    %s28 = sadd.s32 %s27, 1
    %s29 = scalar_select %p26, %s27, %s28
    %p32 = pneg %p26
    %p33 = scmp.eq.s32.totalorder %s17, 1
    %p34 = por %p32, %p33
    %p35 = scmp.ne.s32.totalorder %s27, %s30
    %p36 = scmp.eq.s32.totalorder %s17, 0
    %p37 = por %p35, %p36
    %p38 = scmp.ne.s32.totalorder %s27, %s30
    %p39 = scmp.eq.s32.totalorder %s22, 1
    %p40 = por %p38, %p39
    %p41 = scmp.ne.s32.totalorder %s30, %s31
    %p42 = scmp.eq.s32.totalorder %s22, 0
    %p43 = por %p41, %p42
    %p44 = scmp.ne.s32.totalorder %s30, %s31
    %p45 = scmp.eq.s32.totalorder %s23, 1
    %p46 = por %p44, %p45
    %p48 = scmp.ne.s32.totalorder %s31, %s47
    %p49 = scmp.eq.s32.totalorder %s23, 0
    %p50 = por %p48, %p49
    %s52 = sadd.s32 %s51, 1
    %p55 = scmp.eq.s32.totalorder %s17, 1
    %p56 = scmp.ne.s32.totalorder %s51, %s53
    %p57 = scmp.eq.s32.totalorder %s17, 0
    %p58 = por %p56, %p57
    %p59 = scmp.ne.s32.totalorder %s51, %s53
    %p60 = scmp.eq.s32.totalorder %s22, 1
    %p61 = por %p59, %p60
    %p62 = scmp.ne.s32.totalorder %s53, %s54
    %p63 = scmp.eq.s32.totalorder %s22, 0
    %p64 = por %p62, %p63
    %p65 = scmp.ne.s32.totalorder %s53, %s54
    %p66 = scmp.eq.s32.totalorder %s23, 1
    %p67 = por %p65, %p66
    %p69 = scmp.ne.s32.totalorder %s54, %s68
    %p70 = scmp.eq.s32.totalorder %s23, 0
    %p71 = por %p69, %p70
    %s73 = sadd.s32 %s72, 1
    %p76 = scmp.eq.s32.totalorder %s17, 1
    %p77 = scmp.ne.s32.totalorder %s72, %s74
    %p78 = scmp.eq.s32.totalorder %s17, 0
    %p79 = por %p77, %p78
    %p80 = scmp.ne.s32.totalorder %s72, %s74
    %p81 = scmp.eq.s32.totalorder %s22, 1
    %p82 = por %p80, %p81
    %p83 = scmp.ne.s32.totalorder %s74, %s75
    %p84 = scmp.eq.s32.totalorder %s22, 0
    %p85 = por %p83, %p84
    %p86 = scmp.ne.s32.totalorder %s74, %s75
    %p87 = scmp.eq.s32.totalorder %s23, 1
    %p88 = por %p86, %p87
    %p90 = scmp.ne.s32.totalorder %s75, %s89
    %p91 = scmp.eq.s32.totalorder %s23, 0
    %p92 = por %p90, %p91
    %s94 = sadd.s32 %s93, 1
    %p97 = scmp.eq.s32.totalorder %s17, 1
    %p98 = scmp.ne.s32.totalorder %s93, %s95
    %p99 = scmp.eq.s32.totalorder %s17, 0
    %p100 = por %p98, %p99
    %p101 = scmp.ne.s32.totalorder %s93, %s95
    %p102 = scmp.eq.s32.totalorder %s22, 1
    %p103 = por %p101, %p102
    %p104 = scmp.ne.s32.totalorder %s95, %s96
    %p105 = scmp.eq.s32.totalorder %s22, 0
    %p106 = por %p104, %p105
    %p107 = scmp.ne.s32.totalorder %s95, %s96
    %p108 = scmp.eq.s32.totalorder %s23, 1
    %p109 = por %p107, %p108
    %p111 = scmp.ne.s32.totalorder %s96, %s110
    %p112 = scmp.eq.s32.totalorder %s23, 0
    %p113 = por %p111, %p112
    %s115 = sadd.s32 %s114, 1
    %p118 = scmp.eq.s32.totalorder %s17, 1
    %p119 = scmp.ne.s32.totalorder %s114, %s116
    %p120 = scmp.eq.s32.totalorder %s17, 0
    %p121 = por %p119, %p120
    %p122 = scmp.ne.s32.totalorder %s114, %s116
    %p123 = scmp.eq.s32.totalorder %s22, 1
    %p124 = por %p122, %p123
    %p125 = scmp.ne.s32.totalorder %s116, %s117
    %p126 = scmp.eq.s32.totalorder %s22, 0
    %p127 = por %p125, %p126
    %p128 = scmp.ne.s32.totalorder %s116, %s117
    %p129 = scmp.eq.s32.totalorder %s23, 1
    %p130 = por %p128, %p129
    %p132 = scmp.ne.s32.totalorder %s117, %s131
    %p133 = scmp.eq.s32.totalorder %s23, 0
    %p134 = por %p132, %p133
    %s136 = sadd.s32 %s135, 1
    %p139 = scmp.eq.s32.totalorder %s17, 1
    %p140 = scmp.ne.s32.totalorder %s135, %s137
    %p141 = scmp.eq.s32.totalorder %s17, 0
    %p142 = por %p140, %p141
    %p143 = scmp.ne.s32.totalorder %s135, %s137
    %p144 = scmp.eq.s32.totalorder %s22, 1
    %p145 = por %p143, %p144
    %p146 = scmp.ne.s32.totalorder %s137, %s138
    %p147 = scmp.eq.s32.totalorder %s22, 0
    %p148 = por %p146, %p147
    %p149 = scmp.ne.s32.totalorder %s137, %s138
    %p150 = scmp.eq.s32.totalorder %s23, 1
    %p151 = por %p149, %p150
    %p153 = scmp.ne.s32.totalorder %s138, %s152
    %p154 = scmp.eq.s32.totalorder %s23, 0
    %p155 = por %p153, %p154
    %s157 = sadd.s32 %s156, 1
    %p160 = scmp.eq.s32.totalorder %s17, 1
    %p161 = scmp.ne.s32.totalorder %s156, %s158
    %p162 = scmp.eq.s32.totalorder %s17, 0
    %p163 = por %p161, %p162
    %p164 = scmp.ne.s32.totalorder %s156, %s158
    %p165 = scmp.eq.s32.totalorder %s22, 1
    %p166 = por %p164, %p165
    %p167 = scmp.ne.s32.totalorder %s158, %s159
    %p168 = scmp.eq.s32.totalorder %s22, 0
    %p169 = por %p167, %p168
    %p170 = scmp.ne.s32.totalorder %s158, %s159
    %p171 = scmp.eq.s32.totalorder %s23, 1
    %p172 = por %p170, %p171
    %p174 = scmp.ne.s32.totalorder %s159, %s173
    %p175 = scmp.eq.s32.totalorder %s23, 0
    %p176 = por %p174, %p175
    %s178 = sadd.s32 %s177, 1
    %p181 = scmp.eq.s32.totalorder %s17, 1
    %p182 = scmp.ne.s32.totalorder %s177, %s179
    %p183 = scmp.eq.s32.totalorder %s17, 0
    %p184 = por %p182, %p183
    %p185 = scmp.ne.s32.totalorder %s177, %s179
    %p186 = scmp.eq.s32.totalorder %s22, 1
    %p187 = por %p185, %p186
    %p188 = scmp.ne.s32.totalorder %s179, %s180
    %p189 = scmp.eq.s32.totalorder %s22, 0
    %p190 = por %p188, %p189
    %p191 = scmp.ne.s32.totalorder %s179, %s180
    %p192 = scmp.eq.s32.totalorder %s23, 1
    %p193 = por %p191, %p192
    %p195 = scmp.ne.s32.totalorder %s180, %s194
    %p196 = scmp.eq.s32.totalorder %s23, 0
    %p197 = por %p195, %p196
    %s199 = sadd.s32 %s198, 1
    %p202 = scmp.eq.s32.totalorder %s17, 1
    %p203 = scmp.ne.s32.totalorder %s198, %s200
    %p204 = scmp.eq.s32.totalorder %s17, 0
    %p205 = por %p203, %p204
    %p206 = scmp.ne.s32.totalorder %s198, %s200
    %p207 = scmp.eq.s32.totalorder %s22, 1
    %p208 = por %p206, %p207
    %p209 = scmp.ne.s32.totalorder %s200, %s201
    %p210 = scmp.eq.s32.totalorder %s22, 0
    %p211 = por %p209, %p210
    %p212 = scmp.ne.s32.totalorder %s200, %s201
    %p213 = scmp.eq.s32.totalorder %s23, 1
    %p214 = por %p212, %p213
    %p216 = scmp.ne.s32.totalorder %s201, %s215
    %p217 = scmp.eq.s32.totalorder %s23, 0
    %p218 = por %p216, %p217
    %s220 = sadd.s32 %s219, 1
    %p223 = scmp.eq.s32.totalorder %s17, 1
    %p224 = scmp.ne.s32.totalorder %s219, %s221
    %p225 = scmp.eq.s32.totalorder %s17, 0
    %p226 = por %p224, %p225
    %p227 = scmp.ne.s32.totalorder %s219, %s221
    %p228 = scmp.eq.s32.totalorder %s22, 1
    %p229 = por %p227, %p228
    %p230 = scmp.ne.s32.totalorder %s221, %s222
    %p231 = scmp.eq.s32.totalorder %s22, 0
    %p232 = por %p230, %p231
    %p233 = scmp.ne.s32.totalorder %s221, %s222
    %p234 = scmp.eq.s32.totalorder %s23, 1
    %p235 = por %p233, %p234
    %p237 = scmp.ne.s32.totalorder %s222, %s236
    %p238 = scmp.eq.s32.totalorder %s23, 0
    %p239 = por %p237, %p238
    %s241 = sadd.s32 %s240, 1
    %p244 = scmp.eq.s32.totalorder %s17, 1
    %p245 = scmp.ne.s32.totalorder %s240, %s242
    %p246 = scmp.eq.s32.totalorder %s17, 0
    %p247 = por %p245, %p246
    %p248 = scmp.ne.s32.totalorder %s240, %s242
    %p249 = scmp.eq.s32.totalorder %s22, 1
    %p250 = por %p248, %p249
    %p251 = scmp.ne.s32.totalorder %s242, %s243
    %p252 = scmp.eq.s32.totalorder %s22, 0
    %p253 = por %p251, %p252
    %p254 = scmp.ne.s32.totalorder %s242, %s243
    %p255 = scmp.eq.s32.totalorder %s23, 1
    %p256 = por %p254, %p255
    %p258 = scmp.ne.s32.totalorder %s243, %s257
    %p259 = scmp.eq.s32.totalorder %s23, 0
    %p260 = por %p258, %p259
    %s261 = ssub.s32 %s17, %s24
    %p262 = scmp.eq.s32.totalorder %s261, 0
    %s264 = sadd.s32 %s263, 1
    %s265 = scalar_select %p262, %s263, %s264
    %p268 = pneg %p262
    %p269 = scmp.eq.s32.totalorder %s17, 1
    %p270 = por %p268, %p269
    %p271 = scmp.ne.s32.totalorder %s263, %s266
    %p272 = scmp.eq.s32.totalorder %s17, 0
    %p273 = por %p271, %p272
    %p274 = scmp.ne.s32.totalorder %s263, %s266
    %p275 = scmp.eq.s32.totalorder %s22, 1
    %p276 = por %p274, %p275
    %p277 = scmp.ne.s32.totalorder %s266, %s267
    %p278 = scmp.eq.s32.totalorder %s22, 0
    %p279 = por %p277, %p278
    %p280 = scmp.ne.s32.totalorder %s266, %s267
    %p281 = scmp.eq.s32.totalorder %s23, 1
    %p282 = por %p280, %p281
    %p284 = scmp.ne.s32.totalorder %s267, %s283
    %p285 = scmp.eq.s32.totalorder %s23, 0
    %p286 = por %p284, %p285
    %p287 = scmp.le.s32.totalorder 1, %s17
    %p288 = scmp.lt.s32.totalorder %s17, 3
    %p289 = pnand %p287, %p288
    %p290 = pneg %p289
    // Predicated region
    $region9: #{impala_conv_sequence.1} parent=5 // pred_check
      _
    $region10: #{impala_conv_sequence.1} parent=5 // pred_check_branch
      %292 = sbr.rel (%p289) target = $region12
    $region11: #{impala_conv_sequence.1} parent=5 // pred_region
      %s293 = ssub.s32 %s17, 1
      // Predicated region
      $region13: #{impala_conv_sequence.1} parent=11 // pred_check
        %p294 = pneg %p64
      $region14: #{impala_conv_sequence.1} parent=11 // pred_check_branch
        %296 = sbr.rel (%p294) target = $region16
      $region15: #{impala_conv_sequence.1} parent=11 // pred_region
        _
      $region16: #{impala_conv_sequence.1} parent=11 // pred_fallthru
        _
      // Predicated region
      $region17: #{impala_conv_sequence.1} parent=11 // pred_check
        %p297 = pneg %p85
      $region18: #{impala_conv_sequence.1} parent=11 // pred_check_branch
        %299 = sbr.rel (%p297) target = $region20
      $region19: #{impala_conv_sequence.1} parent=11 // pred_region
        _
      $region20: #{impala_conv_sequence.1} parent=11 // pred_fallthru
        _
      // Predicated region
      $region21: #{impala_conv_sequence.1} parent=11 // pred_check
        %p300 = pneg %p106
      $region22: #{impala_conv_sequence.1} parent=11 // pred_check_branch
        %302 = sbr.rel (%p300) target = $region24
      $region23: #{impala_conv_sequence.1} parent=11 // pred_region
        _
      $region24: #{impala_conv_sequence.1} parent=11 // pred_fallthru
        _
      // Predicated region
      $region25: #{impala_conv_sequence.1} parent=11 // pred_check
        %p303 = pneg %p127
      $region26: #{impala_conv_sequence.1} parent=11 // pred_check_branch
        %305 = sbr.rel (%p303) target = $region28
      $region27: #{impala_conv_sequence.1} parent=11 // pred_region
        _
      $region28: #{impala_conv_sequence.1} parent=11 // pred_fallthru
        _
      // Predicated region
      $region29: #{impala_conv_sequence.1} parent=11 // pred_check
        %p306 = pneg %p148
      $region30: #{impala_conv_sequence.1} parent=11 // pred_check_branch
        %308 = sbr.rel (%p306) target = $region32
      $region31: #{impala_conv_sequence.1} parent=11 // pred_region
        _
      $region32: #{impala_conv_sequence.1} parent=11 // pred_fallthru
        _
      // Predicated region
      $region33: #{impala_conv_sequence.1} parent=11 // pred_check
        %p309 = pneg %p169
      $region34: #{impala_conv_sequence.1} parent=11 // pred_check_branch
        %311 = sbr.rel (%p309) target = $region36
      $region35: #{impala_conv_sequence.1} parent=11 // pred_region
        _
      $region36: #{impala_conv_sequence.1} parent=11 // pred_fallthru
        _
      // Predicated region
      $region37: #{impala_conv_sequence.1} parent=11 // pred_check
        %p312 = pneg %p190
      $region38: #{impala_conv_sequence.1} parent=11 // pred_check_branch
        %314 = sbr.rel (%p312) target = $region40
      $region39: #{impala_conv_sequence.1} parent=11 // pred_region
        _
      $region40: #{impala_conv_sequence.1} parent=11 // pred_fallthru
        _
      // Predicated region
      $region41: #{impala_conv_sequence.1} parent=11 // pred_check
        %p315 = pneg %p211
      $region42: #{impala_conv_sequence.1} parent=11 // pred_check_branch
        %317 = sbr.rel (%p315) target = $region44
      $region43: #{impala_conv_sequence.1} parent=11 // pred_region
        _
      $region44: #{impala_conv_sequence.1} parent=11 // pred_fallthru
        _
      // Predicated region
      $region45: #{impala_conv_sequence.1} parent=11 // pred_check
        %p318 = pneg %p232
      $region46: #{impala_conv_sequence.1} parent=11 // pred_check_branch
        %320 = sbr.rel (%p318) target = $region48
      $region47: #{impala_conv_sequence.1} parent=11 // pred_region
        _
      $region48: #{impala_conv_sequence.1} parent=11 // pred_fallthru
        _
      // Predicated region
      $region49: #{impala_conv_sequence.1} parent=11 // pred_check
        %p321 = pneg %p253
      $region50: #{impala_conv_sequence.1} parent=11 // pred_check_branch
        %323 = sbr.rel (%p321) target = $region52
      $region51: #{impala_conv_sequence.1} parent=11 // pred_region
        _
      $region52: #{impala_conv_sequence.1} parent=11 // pred_fallthru
        _
    $region12: #{impala_conv_sequence.1} parent=5 // pred_fallthru
      _
    %p324 = scmp.lt.s32.totalorder %s17, 2
    // Predicated region
    $region53: #{impala_conv_sequence.1} parent=5 // pred_check
      %p325 = pneg %p324
    $region54: #{impala_conv_sequence.1} parent=5 // pred_check_branch
      %327 = sbr.rel (%p325) target = $region56
    $region55: #{impala_conv_sequence.1} parent=5 // pred_region
      // Predicated region
      $region57: #{impala_conv_sequence.1} parent=55 // pred_check
        %p328 = pneg %p37
      $region58: #{impala_conv_sequence.1} parent=55 // pred_check_branch
        %330 = sbr.rel (%p328) target = $region60
      $region59: #{impala_conv_sequence.1} parent=55 // pred_region
        %p331 = scmp.lt.s32.totalorder %s17, 1
        %s332 = scalar_select %p331, %s17, 1
        %s333 = smul.addr %s332, 32
        %s334 = smul.addr %s333, 8
        %s335 = scalar_lea.vmem %s0, %s334
      $region60: #{impala_conv_sequence.1} parent=55 // pred_fallthru
        _
    $region56: #{impala_conv_sequence.1} parent=5 // pred_fallthru
      _
    %p336 = scmp.le.s32.totalorder 1, %s17
    %p337 = scmp.lt.s32.totalorder %s17, 3
    %p338 = pnand %p336, %p337
    %p339 = pneg %p338
    // Predicated region
    $region61: #{impala_conv_sequence.1} parent=5 // pred_check
      _
    $region62: #{impala_conv_sequence.1} parent=5 // pred_check_branch
      %341 = sbr.rel (%p338) target = $region64
    $region63: #{impala_conv_sequence.1} parent=5 // pred_region
      %s342 = ssub.s32 %s17, 1
      %p343 = scmp.lt.s32.totalorder %s22, 1
      %s344 = scalar_select %p343, %s22, 1
      %s345 = smul.addr %s344, 32
      %s346 = smul.addr %s345, 8
      %s347 = scalar_lea.vmem %s0, %s346
      %p348 = pneg %p43
      %p349 = pneg %p40
      %p350 = pneg %p64
      %p351 = pneg %p61
      %p352 = pneg %p85
      %p353 = pneg %p82
      %p354 = pneg %p106
      %p355 = pneg %p103
      %p356 = pneg %p127
      %p357 = pneg %p124
      %p358 = pneg %p148
      %p359 = pneg %p145
      %p360 = pneg %p169
      %p361 = pneg %p166
      %p362 = pneg %p190
      %p363 = pneg %p187
      %p364 = pneg %p211
      %p365 = pneg %p208
      %p366 = pneg %p232
      %p367 = pneg %p229
      %p368 = pneg %p253
      %p369 = pneg %p250
      %p370 = pneg %p279
      %p371 = pneg %p276
      %p372 = scmp.lt.s32.totalorder %s22, 1
      %s373 = scalar_select %p372, %s22, 1
      %s374 = smul.addr %s373, 8
      %s375 = smul.addr %s374, 8
      %s376 = scalar_lea.vmem %s11, %s375
      %p377 = scmp.lt.s32.totalorder %s22, 1
      %s378 = scalar_select %p377, %s22, 1
      %s379 = smul.addr %s378, 32
      %s380 = smul.addr %s379, 8
      %s381 = scalar_lea.vmem %s0, %s380
      %p382 = scmp.lt.s32.totalorder %s22, 1
      %s383 = scalar_select %p382, %s22, 1
      %s384 = smul.addr %s383, 8
      %s385 = smul.addr %s384, 8
      %s386 = scalar_lea.vmem %s11, %s385
      %vm387 = vcmask 293888
      %388 = vst.msk [vmem:[#allocation2] sm:$0xff] %vm387, 0.0
      %389 = vst.msk [vmem:[#allocation2 + $0x8] sm:$0xff] %vm387, 0.0
      %390 = vst.msk [vmem:[#allocation2 + $0x10] sm:$0xff] %vm387, 0.0
      %391 = vst.msk [vmem:[#allocation2 + $0x18] sm:$0xff] %vm387, 0.0
      %392 = vst.msk [vmem:[#allocation2 + $0x20] sm:$0xff] %vm387, 0.0
      %393 = vst.msk [vmem:[#allocation2 + $0x28] sm:$0xff] %vm387, 0.0
      %394 = vst.msk [vmem:[#allocation2 + $0x30] sm:$0xff] %vm387, 0.0
      %395 = vst.msk [vmem:[#allocation2 + $0x38] sm:$0xff] %vm387, 0.0
      %396 = vst.msk [vmem:[#allocation2 + $0x40] sm:$0xff] %vm387, 0.0
      %397 = vst.msk [vmem:[#allocation2 + $0x48] sm:$0xff] %vm387, 0.0
      %398 = vst.msk [vmem:[#allocation2 + $0x50] sm:$0xff] %vm387, 0.0
      %399 = vst.msk [vmem:[#allocation2 + $0x58] sm:$0xff] %vm387, 0.0
      %400 = vst.msk [vmem:[#allocation2 + $0x60] sm:$0xff] %vm387, 0.0
      %401 = vst.msk [vmem:[#allocation2 + $0x68] sm:$0xff] %vm387, 0.0
      %402 = vst.msk [vmem:[#allocation2 + $0x70] sm:$0xff] %vm387, 0.0
      %403 = vst.msk [vmem:[#allocation2 + $0x78] sm:$0xff] %vm387, 0.0
      %404 = vst.msk [vmem:[#allocation2 + $0x80] sm:$0xff] %vm387, 0.0
      %405 = vst.msk [vmem:[#allocation2 + $0x88] sm:$0xff] %vm387, 0.0
      %406 = vst.msk [vmem:[#allocation2 + $0x90] sm:$0xff] %vm387, 0.0
      %407 = vst.msk [vmem:[#allocation2 + $0x98] sm:$0xff] %vm387, 0.0
      %408 = vst.msk [vmem:[#allocation2 + $0xa0] sm:$0xff] %vm387, 0.0
      %409 = vst.msk [vmem:[#allocation2 + $0xa8] sm:$0xff] %vm387, 0.0
      %410 = vst.msk [vmem:[#allocation2 + $0xb0] sm:$0xff] %vm387, 0.0
      %411 = vst.msk [vmem:[#allocation2 + $0xb8] sm:$0xff] %vm387, 0.0
      %412 = vst.msk [vmem:[#allocation2 + $0xc0] sm:$0xff] %vm387, 0.0
      %413 = vst.msk [vmem:[#allocation2 + $0xc8] sm:$0xff] %vm387, 0.0
      %414 = vst.msk [vmem:[#allocation2 + $0xd0] sm:$0xff] %vm387, 0.0
      %415 = vst.msk [vmem:[#allocation2 + $0xd8] sm:$0xff] %vm387, 0.0
      %416 = vst.msk [vmem:[#allocation2 + $0xe0] sm:$0xff] %vm387, 0.0
      %417 = vst.msk [vmem:[#allocation2 + $0xe8] sm:$0xff] %vm387, 0.0
      %418 = vst.msk [vmem:[#allocation2 + $0xf0] sm:$0xff] %vm387, 0.0
      %419 = vst.msk [vmem:[#allocation2 + $0xf8] sm:$0xff] %vm387, 0.0
      %vm420 = vcmask 588800
      %421 = vst.msk [vmem:[#allocation3] sm:$0xff] %vm420, 0.0
      %422 = vst.msk [vmem:[#allocation3 + $0x8] sm:$0xff] %vm420, 0.0
      %423 = vst.msk [vmem:[#allocation3 + $0x10] sm:$0xff] %vm420, 0.0
      %424 = vst.msk [vmem:[#allocation3 + $0x18] sm:$0xff] %vm420, 0.0
      %425 = vst.msk [vmem:[#allocation3 + $0x20] sm:$0xff] %vm420, 0.0
      %426 = vst.msk [vmem:[#allocation3 + $0x28] sm:$0xff] %vm420, 0.0
      %427 = vst.msk [vmem:[#allocation3 + $0x30] sm:$0xff] %vm420, 0.0
      %428 = vst.msk [vmem:[#allocation3 + $0x38] sm:$0xff] %vm420, 0.0
      %v429 = vld [vmem:[%s381] sm:$0xff]
      %v430 = vld [vmem:[%s381 + $0x8] sm:$0xff]
      %v431 = vld [vmem:[%s381 + $0x10] sm:$0xff]
      %v432 = vld [vmem:[%s381 + $0x18] sm:$0xff]
      %v433 = vld [vmem:[%s381 + $0x20] sm:$0xff]
      %v434 = vld [vmem:[%s381 + $0x28] sm:$0xff]
      %v435 = vld [vmem:[%s381 + $0x30] sm:$0xff]
      %v436 = vld [vmem:[%s381 + $0x38] sm:$0xff]
      %v437 = vld [vmem:[%s381 + $0x40] sm:$0xff]
      %v438 = vld [vmem:[%s381 + $0x48] sm:$0xff]
      %v439 = vld [vmem:[%s381 + $0x50] sm:$0xff]
      %v440 = vld [vmem:[%s381 + $0x58] sm:$0xff]
      %v441 = vld [vmem:[%s381 + $0x60] sm:$0xff]
      %v442 = vld [vmem:[%s381 + $0x68] sm:$0xff]
      %v443 = vld [vmem:[%s381 + $0x70] sm:$0xff]
      %v444 = vld [vmem:[%s381 + $0x78] sm:$0xff]
      %v445 = vld [vmem:[%s381 + $0x80] sm:$0xff]
      %v446 = vld [vmem:[%s381 + $0x88] sm:$0xff]
      %v447 = vld [vmem:[%s381 + $0x90] sm:$0xff]
      %v448 = vld [vmem:[%s381 + $0x98] sm:$0xff]
      %v449 = vld [vmem:[%s381 + $0xa0] sm:$0xff]
      %v450 = vld [vmem:[%s381 + $0xa8] sm:$0xff]
      %v451 = vld [vmem:[%s381 + $0xb0] sm:$0xff]
      %v452 = vld [vmem:[%s381 + $0xb8] sm:$0xff]
      %v453 = vld [vmem:[%s381 + $0xc0] sm:$0xff]
      %v454 = vld [vmem:[%s381 + $0xc8] sm:$0xff]
      %v455 = vld [vmem:[%s381 + $0xd0] sm:$0xff]
      %v456 = vld [vmem:[%s381 + $0xd8] sm:$0xff]
      %v457 = vld [vmem:[%s381 + $0xe0] sm:$0xff]
      %v458 = vld [vmem:[%s381 + $0xe8] sm:$0xff]
      %v459 = vld [vmem:[%s381 + $0xf0] sm:$0xff]
      %v460 = vld [vmem:[%s381 + $0xf8] sm:$0xff]
      %s461 = scalar_lea.vmem [#allocation2], 16
      %vm462 = vcmask 31744
      %463 = vst.msk [vmem:[%s461 + $0x1] sm:$0xff] %vm462, %v429
      %vm464 = vcmask 30720
      %465 = vst.msk [vmem:[%s461 + $0x9] sm:$0x7f] %vm464, %v430
      %466 = vst.msk [vmem:[%s461 + $0x11] sm:$0xff] %vm462, %v431
      %467 = vst.msk [vmem:[%s461 + $0x19] sm:$0x7f] %vm464, %v432
      %468 = vst.msk [vmem:[%s461 + $0x21] sm:$0xff] %vm462, %v433
      %469 = vst.msk [vmem:[%s461 + $0x29] sm:$0x7f] %vm464, %v434
      %470 = vst.msk [vmem:[%s461 + $0x31] sm:$0xff] %vm462, %v435
      %471 = vst.msk [vmem:[%s461 + $0x39] sm:$0x7f] %vm464, %v436
      %472 = vst.msk [vmem:[%s461 + $0x41] sm:$0xff] %vm462, %v437
      %473 = vst.msk [vmem:[%s461 + $0x49] sm:$0x7f] %vm464, %v438
      %474 = vst.msk [vmem:[%s461 + $0x51] sm:$0xff] %vm462, %v439
      %475 = vst.msk [vmem:[%s461 + $0x59] sm:$0x7f] %vm464, %v440
      %476 = vst.msk [vmem:[%s461 + $0x61] sm:$0xff] %vm462, %v441
      %477 = vst.msk [vmem:[%s461 + $0x69] sm:$0x7f] %vm464, %v442
      %478 = vst.msk [vmem:[%s461 + $0x71] sm:$0xff] %vm462, %v443
      %479 = vst.msk [vmem:[%s461 + $0x79] sm:$0x7f] %vm464, %v444
      %480 = vst.msk [vmem:[%s461 + $0x81] sm:$0xff] %vm462, %v445
      %481 = vst.msk [vmem:[%s461 + $0x89] sm:$0x7f] %vm464, %v446
      %482 = vst.msk [vmem:[%s461 + $0x91] sm:$0xff] %vm462, %v447
      %483 = vst.msk [vmem:[%s461 + $0x99] sm:$0x7f] %vm464, %v448
      %484 = vst.msk [vmem:[%s461 + $0xa1] sm:$0xff] %vm462, %v449
      %485 = vst.msk [vmem:[%s461 + $0xa9] sm:$0x7f] %vm464, %v450
      %486 = vst.msk [vmem:[%s461 + $0xb1] sm:$0xff] %vm462, %v451
      %487 = vst.msk [vmem:[%s461 + $0xb9] sm:$0x7f] %vm464, %v452
      %488 = vst.msk [vmem:[%s461 + $0xc1] sm:$0xff] %vm462, %v453
      %489 = vst.msk [vmem:[%s461 + $0xc9] sm:$0x7f] %vm464, %v454
      %490 = vst.msk [vmem:[%s461 + $0xd1] sm:$0xff] %vm462, %v455
      %491 = vst.msk [vmem:[%s461 + $0xd9] sm:$0x7f] %vm464, %v456
      %492 = vst.msk [vmem:[%s461 + $0xe1] sm:$0xff] %vm462, %v457
      %493 = vst.msk [vmem:[%s461 + $0xe9] sm:$0x7f] %vm464, %v458
      %524 = vrot.lane.b32.xlu0 %v429, 4
      %v525 = vpop.permute.xlu0 %524
      %526 = vrot.lane.b32.xlu0 %v430, 4
      %v527 = vpop.permute.xlu0 %526
      %528 = vrot.lane.b32.xlu0 %v431, 4
      %v529 = vpop.permute.xlu0 %528
      %530 = vrot.lane.b32.xlu0 %v432, 4
      %v531 = vpop.permute.xlu0 %530
      %532 = vrot.lane.b32.xlu0 %v433, 4
      %v533 = vpop.permute.xlu0 %532
      %534 = vrot.lane.b32.xlu0 %v434, 4
      %v535 = vpop.permute.xlu0 %534
      %536 = vrot.lane.b32.xlu0 %v435, 4
      %v537 = vpop.permute.xlu0 %536
      %538 = vrot.lane.b32.xlu0 %v436, 4
      %v539 = vpop.permute.xlu0 %538
      %540 = vrot.lane.b32.xlu0 %v437, 4
      %v541 = vpop.permute.xlu0 %540
      %542 = vrot.lane.b32.xlu0 %v438, 4
      %v543 = vpop.permute.xlu0 %542
      %544 = vrot.lane.b32.xlu0 %v439, 4
      %v545 = vpop.permute.xlu0 %544
      %546 = vrot.lane.b32.xlu0 %v440, 4
      %v547 = vpop.permute.xlu0 %546
      %548 = vrot.lane.b32.xlu0 %v441, 4
      %v549 = vpop.permute.xlu0 %548
      %550 = vrot.lane.b32.xlu0 %v442, 4
      %v551 = vpop.permute.xlu0 %550
      %552 = vrot.lane.b32.xlu0 %v443, 4
      %v553 = vpop.permute.xlu0 %552
      %554 = vrot.lane.b32.xlu0 %v444, 4
      %v555 = vpop.permute.xlu0 %554
      %556 = vrot.lane.b32.xlu0 %v445, 4
      %v557 = vpop.permute.xlu0 %556
      %558 = vrot.lane.b32.xlu0 %v446, 4
      %v559 = vpop.permute.xlu0 %558
      %560 = vrot.lane.b32.xlu0 %v447, 4
      %v561 = vpop.permute.xlu0 %560
      %562 = vrot.lane.b32.xlu0 %v448, 4
      %v563 = vpop.permute.xlu0 %562
      %564 = vrot.lane.b32.xlu0 %v449, 4
      %v565 = vpop.permute.xlu0 %564
      %566 = vrot.lane.b32.xlu0 %v450, 4
      %v567 = vpop.permute.xlu0 %566
      %568 = vrot.lane.b32.xlu0 %v451, 4
      %v569 = vpop.permute.xlu0 %568
      %570 = vrot.lane.b32.xlu0 %v452, 4
      %v571 = vpop.permute.xlu0 %570
      %572 = vrot.lane.b32.xlu0 %v453, 4
      %v573 = vpop.permute.xlu0 %572
      %574 = vrot.lane.b32.xlu0 %v454, 4
      %v575 = vpop.permute.xlu0 %574
      %576 = vrot.lane.b32.xlu0 %v455, 4
      %v577 = vpop.permute.xlu0 %576
      %578 = vrot.lane.b32.xlu0 %v456, 4
      %v579 = vpop.permute.xlu0 %578
      %580 = vrot.lane.b32.xlu0 %v457, 4
      %v581 = vpop.permute.xlu0 %580
      %582 = vrot.lane.b32.xlu0 %v458, 4
      %v583 = vpop.permute.xlu0 %582
      %vm614 = vcmask 64544
      %615 = vst.msk [vmem:[%s461] sm:$0xff] %vm614, %v525
      %616 = vst.msk [vmem:[%s461 + $0x8] sm:$0xff] %vm614, %v527
      %617 = vst.msk [vmem:[%s461 + $0x10] sm:$0xff] %vm614, %v529
      %618 = vst.msk [vmem:[%s461 + $0x18] sm:$0xff] %vm614, %v531
      %619 = vst.msk [vmem:[%s461 + $0x20] sm:$0xff] %vm614, %v533
      %620 = vst.msk [vmem:[%s461 + $0x28] sm:$0xff] %vm614, %v535
      %621 = vst.msk [vmem:[%s461 + $0x30] sm:$0xff] %vm614, %v537
      %622 = vst.msk [vmem:[%s461 + $0x38] sm:$0xff] %vm614, %v539
      %623 = vst.msk [vmem:[%s461 + $0x40] sm:$0xff] %vm614, %v541
      %624 = vst.msk [vmem:[%s461 + $0x48] sm:$0xff] %vm614, %v543
      %625 = vst.msk [vmem:[%s461 + $0x50] sm:$0xff] %vm614, %v545
      %626 = vst.msk [vmem:[%s461 + $0x58] sm:$0xff] %vm614, %v547
      %627 = vst.msk [vmem:[%s461 + $0x60] sm:$0xff] %vm614, %v549
      %628 = vst.msk [vmem:[%s461 + $0x68] sm:$0xff] %vm614, %v551
      %629 = vst.msk [vmem:[%s461 + $0x70] sm:$0xff] %vm614, %v553
      %630 = vst.msk [vmem:[%s461 + $0x78] sm:$0xff] %vm614, %v555
      %631 = vst.msk [vmem:[%s461 + $0x80] sm:$0xff] %vm614, %v557
      %632 = vst.msk [vmem:[%s461 + $0x88] sm:$0xff] %vm614, %v559
      %633 = vst.msk [vmem:[%s461 + $0x90] sm:$0xff] %vm614, %v561
      %634 = vst.msk [vmem:[%s461 + $0x98] sm:$0xff] %vm614, %v563
      %635 = vst.msk [vmem:[%s461 + $0xa0] sm:$0xff] %vm614, %v565
      %636 = vst.msk [vmem:[%s461 + $0xa8] sm:$0xff] %vm614, %v567
      %637 = vst.msk [vmem:[%s461 + $0xb0] sm:$0xff] %vm614, %v569
      %638 = vst.msk [vmem:[%s461 + $0xb8] sm:$0xff] %vm614, %v571
      %639 = vst.msk [vmem:[%s461 + $0xc0] sm:$0xff] %vm614, %v573
      %640 = vst.msk [vmem:[%s461 + $0xc8] sm:$0xff] %vm614, %v575
      %641 = vst.msk [vmem:[%s461 + $0xd0] sm:$0xff] %vm614, %v577
      %642 = vst.msk [vmem:[%s461 + $0xd8] sm:$0xff] %vm614, %v579
      %643 = vst.msk [vmem:[%s461 + $0xe0] sm:$0xff] %vm614, %v581
      %644 = vst.msk [vmem:[%s461 + $0xe8] sm:$0xff] %vm614, %v583
      %645 = vrot.lane.b32.xlu0 %v429, 8
      %v646 = vpop.permute.xlu0 %645
      %647 = vrot.lane.b32.xlu0 %v430, 8
      %v648 = vpop.permute.xlu0 %647
      %649 = vrot.lane.b32.xlu0 %v431, 8
      %v650 = vpop.permute.xlu0 %649
      %651 = vrot.lane.b32.xlu0 %v432, 8
      %v652 = vpop.permute.xlu0 %651
      %653 = vrot.lane.b32.xlu0 %v433, 8
      %v654 = vpop.permute.xlu0 %653
      %655 = vrot.lane.b32.xlu0 %v434, 8
      %v656 = vpop.permute.xlu0 %655
      %657 = vrot.lane.b32.xlu0 %v435, 8
      %v658 = vpop.permute.xlu0 %657
      %659 = vrot.lane.b32.xlu0 %v436, 8
      %v660 = vpop.permute.xlu0 %659
      %661 = vrot.lane.b32.xlu0 %v437, 8
      %v662 = vpop.permute.xlu0 %661
      %663 = vrot.lane.b32.xlu0 %v438, 8
      %v664 = vpop.permute.xlu0 %663
      %665 = vrot.lane.b32.xlu0 %v439, 8
      %v666 = vpop.permute.xlu0 %665
      %667 = vrot.lane.b32.xlu0 %v440, 8
      %v668 = vpop.permute.xlu0 %667
      %669 = vrot.lane.b32.xlu0 %v441, 8
      %v670 = vpop.permute.xlu0 %669
      %671 = vrot.lane.b32.xlu0 %v442, 8
      %v672 = vpop.permute.xlu0 %671
      %673 = vrot.lane.b32.xlu0 %v443, 8
      %v674 = vpop.permute.xlu0 %673
      %675 = vrot.lane.b32.xlu0 %v444, 8
      %v676 = vpop.permute.xlu0 %675
      %677 = vrot.lane.b32.xlu0 %v445, 8
      %v678 = vpop.permute.xlu0 %677
      %679 = vrot.lane.b32.xlu0 %v446, 8
      %v680 = vpop.permute.xlu0 %679
      %681 = vrot.lane.b32.xlu0 %v447, 8
      %v682 = vpop.permute.xlu0 %681
      %683 = vrot.lane.b32.xlu0 %v448, 8
      %v684 = vpop.permute.xlu0 %683
      %685 = vrot.lane.b32.xlu0 %v449, 8
      %v686 = vpop.permute.xlu0 %685
      %687 = vrot.lane.b32.xlu0 %v450, 8
      %v688 = vpop.permute.xlu0 %687
      %689 = vrot.lane.b32.xlu0 %v451, 8
      %v690 = vpop.permute.xlu0 %689
      %691 = vrot.lane.b32.xlu0 %v452, 8
      %v692 = vpop.permute.xlu0 %691
      %693 = vrot.lane.b32.xlu0 %v453, 8
      %v694 = vpop.permute.xlu0 %693
      %695 = vrot.lane.b32.xlu0 %v454, 8
      %v696 = vpop.permute.xlu0 %695
      %697 = vrot.lane.b32.xlu0 %v455, 8
      %v698 = vpop.permute.xlu0 %697
      %699 = vrot.lane.b32.xlu0 %v456, 8
      %v700 = vpop.permute.xlu0 %699
      %701 = vrot.lane.b32.xlu0 %v457, 8
      %v702 = vpop.permute.xlu0 %701
      %703 = vrot.lane.b32.xlu0 %v458, 8
      %v704 = vpop.permute.xlu0 %703
      %vm735 = vcmask 97345
      %736 = vst.msk [vmem:[%s461 - $0x1] sm:$0xfe] %vm735, %v646
      %vm737 = vcmask 97344
      %738 = vst.msk [vmem:[%s461 + $0x7] sm:$0xff] %vm737, %v648
      %739 = vst.msk [vmem:[%s461 + $0xf] sm:$0xfe] %vm735, %v650
      %740 = vst.msk [vmem:[%s461 + $0x17] sm:$0xff] %vm737, %v652
      %741 = vst.msk [vmem:[%s461 + $0x1f] sm:$0xfe] %vm735, %v654
      %742 = vst.msk [vmem:[%s461 + $0x27] sm:$0xff] %vm737, %v656
      %743 = vst.msk [vmem:[%s461 + $0x2f] sm:$0xfe] %vm735, %v658
      %744 = vst.msk [vmem:[%s461 + $0x37] sm:$0xff] %vm737, %v660
      %745 = vst.msk [vmem:[%s461 + $0x3f] sm:$0xfe] %vm735, %v662
      %746 = vst.msk [vmem:[%s461 + $0x47] sm:$0xff] %vm737, %v664
      %747 = vst.msk [vmem:[%s461 + $0x4f] sm:$0xfe] %vm735, %v666
      %748 = vst.msk [vmem:[%s461 + $0x57] sm:$0xff] %vm737, %v668
      %749 = vst.msk [vmem:[%s461 + $0x5f] sm:$0xfe] %vm735, %v670
      %750 = vst.msk [vmem:[%s461 + $0x67] sm:$0xff] %vm737, %v672
      %751 = vst.msk [vmem:[%s461 + $0x6f] sm:$0xfe] %vm735, %v674
      %752 = vst.msk [vmem:[%s461 + $0x77] sm:$0xff] %vm737, %v676
      %753 = vst.msk [vmem:[%s461 + $0x7f] sm:$0xfe] %vm735, %v678
      %754 = vst.msk [vmem:[%s461 + $0x87] sm:$0xff] %vm737, %v680
      %755 = vst.msk [vmem:[%s461 + $0x8f] sm:$0xfe] %vm735, %v682
      %756 = vst.msk [vmem:[%s461 + $0x97] sm:$0xff] %vm737, %v684
      %757 = vst.msk [vmem:[%s461 + $0x9f] sm:$0xfe] %vm735, %v686
      %758 = vst.msk [vmem:[%s461 + $0xa7] sm:$0xff] %vm737, %v688
      %759 = vst.msk [vmem:[%s461 + $0xaf] sm:$0xfe] %vm735, %v690
      %760 = vst.msk [vmem:[%s461 + $0xb7] sm:$0xff] %vm737, %v692
      %761 = vst.msk [vmem:[%s461 + $0xbf] sm:$0xfe] %vm735, %v694
      %762 = vst.msk [vmem:[%s461 + $0xc7] sm:$0xff] %vm737, %v696
      %763 = vst.msk [vmem:[%s461 + $0xcf] sm:$0xfe] %vm735, %v698
      %764 = vst.msk [vmem:[%s461 + $0xd7] sm:$0xff] %vm737, %v700
      %765 = vst.msk [vmem:[%s461 + $0xdf] sm:$0xfe] %vm735, %v702
      %766 = vst.msk [vmem:[%s461 + $0xe7] sm:$0xff] %vm737, %v704
      %769 = vrot.lane.b32.xlu0 %v429, 12
      %v770 = vpop.permute.xlu0 %769
      %771 = vrot.lane.b32.xlu0 %v430, 12
      %v772 = vpop.permute.xlu0 %771
      %773 = vrot.lane.b32.xlu0 %v431, 12
      %v774 = vpop.permute.xlu0 %773
      %775 = vrot.lane.b32.xlu0 %v432, 12
      %v776 = vpop.permute.xlu0 %775
      %777 = vrot.lane.b32.xlu0 %v433, 12
      %v778 = vpop.permute.xlu0 %777
      %779 = vrot.lane.b32.xlu0 %v434, 12
      %v780 = vpop.permute.xlu0 %779
      %781 = vrot.lane.b32.xlu0 %v435, 12
      %v782 = vpop.permute.xlu0 %781
      %783 = vrot.lane.b32.xlu0 %v436, 12
      %v784 = vpop.permute.xlu0 %783
      %785 = vrot.lane.b32.xlu0 %v437, 12
      %v786 = vpop.permute.xlu0 %785
      %787 = vrot.lane.b32.xlu0 %v438, 12
      %v788 = vpop.permute.xlu0 %787
      %789 = vrot.lane.b32.xlu0 %v439, 12
      %v790 = vpop.permute.xlu0 %789
      %791 = vrot.lane.b32.xlu0 %v440, 12
      %v792 = vpop.permute.xlu0 %791
      %793 = vrot.lane.b32.xlu0 %v441, 12
      %v794 = vpop.permute.xlu0 %793
      %795 = vrot.lane.b32.xlu0 %v442, 12
      %v796 = vpop.permute.xlu0 %795
      %797 = vrot.lane.b32.xlu0 %v443, 12
      %v798 = vpop.permute.xlu0 %797
      %799 = vrot.lane.b32.xlu0 %v444, 12
      %v800 = vpop.permute.xlu0 %799
      %801 = vrot.lane.b32.xlu0 %v445, 12
      %v802 = vpop.permute.xlu0 %801
      %803 = vrot.lane.b32.xlu0 %v446, 12
      %v804 = vpop.permute.xlu0 %803
      %805 = vrot.lane.b32.xlu0 %v447, 12
      %v806 = vpop.permute.xlu0 %805
      %807 = vrot.lane.b32.xlu0 %v448, 12
      %v808 = vpop.permute.xlu0 %807
      %809 = vrot.lane.b32.xlu0 %v449, 12
      %v810 = vpop.permute.xlu0 %809
      %811 = vrot.lane.b32.xlu0 %v450, 12
      %v812 = vpop.permute.xlu0 %811
      %813 = vrot.lane.b32.xlu0 %v451, 12
      %v814 = vpop.permute.xlu0 %813
      %815 = vrot.lane.b32.xlu0 %v452, 12
      %v816 = vpop.permute.xlu0 %815
      %817 = vrot.lane.b32.xlu0 %v453, 12
      %v818 = vpop.permute.xlu0 %817
      %819 = vrot.lane.b32.xlu0 %v454, 12
      %v820 = vpop.permute.xlu0 %819
      %821 = vrot.lane.b32.xlu0 %v455, 12
      %v822 = vpop.permute.xlu0 %821
      %823 = vrot.lane.b32.xlu0 %v456, 12
      %v824 = vpop.permute.xlu0 %823
      %825 = vrot.lane.b32.xlu0 %v457, 12
      %v826 = vpop.permute.xlu0 %825
      %827 = vrot.lane.b32.xlu0 %v458, 12
      %v828 = vpop.permute.xlu0 %827
      %829 = vrot.lane.b32.xlu0 %v459, 12
      %v830 = vpop.permute.xlu0 %829
      %831 = vrot.lane.b32.xlu0 %v460, 12
      %v832 = vpop.permute.xlu0 %831
      %vm865 = vcmask 130144
      %866 = vst.msk [vmem:[#allocation2 + $0x1] sm:$0xff] %vm865, %v770
      %vm867 = vcmask 129120
      %868 = vst.msk [vmem:[#allocation2 + $0x9] sm:$0x7f] %vm867, %v772
      %869 = vst.msk [vmem:[#allocation2 + $0x11] sm:$0xff] %vm865, %v774
      %870 = vst.msk [vmem:[#allocation2 + $0x19] sm:$0x7f] %vm867, %v776
      %871 = vst.msk [vmem:[#allocation2 + $0x21] sm:$0xff] %vm865, %v778
      %872 = vst.msk [vmem:[#allocation2 + $0x29] sm:$0x7f] %vm867, %v780
      %873 = vst.msk [vmem:[#allocation2 + $0x31] sm:$0xff] %vm865, %v782
      %874 = vst.msk [vmem:[#allocation2 + $0x39] sm:$0x7f] %vm867, %v784
      %875 = vst.msk [vmem:[#allocation2 + $0x41] sm:$0xff] %vm865, %v786
      %876 = vst.msk [vmem:[#allocation2 + $0x49] sm:$0x7f] %vm867, %v788
      %877 = vst.msk [vmem:[#allocation2 + $0x51] sm:$0xff] %vm865, %v790
      %878 = vst.msk [vmem:[#allocation2 + $0x59] sm:$0x7f] %vm867, %v792
      %879 = vst.msk [vmem:[#allocation2 + $0x61] sm:$0xff] %vm865, %v794
      %880 = vst.msk [vmem:[#allocation2 + $0x69] sm:$0x7f] %vm867, %v796
      %881 = vst.msk [vmem:[#allocation2 + $0x71] sm:$0xff] %vm865, %v798
      %882 = vst.msk [vmem:[#allocation2 + $0x79] sm:$0x7f] %vm867, %v800
      %883 = vst.msk [vmem:[#allocation2 + $0x81] sm:$0xff] %vm865, %v802
      %884 = vst.msk [vmem:[#allocation2 + $0x89] sm:$0x7f] %vm867, %v804
      %885 = vst.msk [vmem:[#allocation2 + $0x91] sm:$0xff] %vm865, %v806
      %886 = vst.msk [vmem:[#allocation2 + $0x99] sm:$0x7f] %vm867, %v808
      %887 = vst.msk [vmem:[#allocation2 + $0xa1] sm:$0xff] %vm865, %v810
      %888 = vst.msk [vmem:[#allocation2 + $0xa9] sm:$0x7f] %vm867, %v812
      %889 = vst.msk [vmem:[#allocation2 + $0xb1] sm:$0xff] %vm865, %v814
      %890 = vst.msk [vmem:[#allocation2 + $0xb9] sm:$0x7f] %vm867, %v816
      %891 = vst.msk [vmem:[#allocation2 + $0xc1] sm:$0xff] %vm865, %v818
      %892 = vst.msk [vmem:[#allocation2 + $0xc9] sm:$0x7f] %vm867, %v820
      %893 = vst.msk [vmem:[#allocation2 + $0xd1] sm:$0xff] %vm865, %v822
      %894 = vst.msk [vmem:[#allocation2 + $0xd9] sm:$0x7f] %vm867, %v824
      %895 = vst.msk [vmem:[#allocation2 + $0xe1] sm:$0xff] %vm865, %v826
      %896 = vst.msk [vmem:[#allocation2 + $0xe9] sm:$0x7f] %vm867, %v828
      %897 = vst.msk [vmem:[#allocation2 + $0xf1] sm:$0xff] %vm865, %v830
      %898 = vst.msk [vmem:[#allocation2 + $0xf9] sm:$0x7f] %vm867, %v832
      %899 = vrot.lane.b32.xlu0 %v429, 16
      %v900 = vpop.permute.xlu0 %899
      %901 = vrot.lane.b32.xlu0 %v430, 16
      %v902 = vpop.permute.xlu0 %901
      %903 = vrot.lane.b32.xlu0 %v431, 16
      %v904 = vpop.permute.xlu0 %903
      %905 = vrot.lane.b32.xlu0 %v432, 16
      %v906 = vpop.permute.xlu0 %905
      %907 = vrot.lane.b32.xlu0 %v433, 16
      %v908 = vpop.permute.xlu0 %907
      %909 = vrot.lane.b32.xlu0 %v434, 16
      %v910 = vpop.permute.xlu0 %909
      %911 = vrot.lane.b32.xlu0 %v435, 16
      %v912 = vpop.permute.xlu0 %911
      %913 = vrot.lane.b32.xlu0 %v436, 16
      %v914 = vpop.permute.xlu0 %913
      %915 = vrot.lane.b32.xlu0 %v437, 16
      %v916 = vpop.permute.xlu0 %915
      %917 = vrot.lane.b32.xlu0 %v438, 16
      %v918 = vpop.permute.xlu0 %917
      %919 = vrot.lane.b32.xlu0 %v439, 16
      %v920 = vpop.permute.xlu0 %919
      %921 = vrot.lane.b32.xlu0 %v440, 16
      %v922 = vpop.permute.xlu0 %921
      %923 = vrot.lane.b32.xlu0 %v441, 16
      %v924 = vpop.permute.xlu0 %923
      %925 = vrot.lane.b32.xlu0 %v442, 16
      %v926 = vpop.permute.xlu0 %925
      %927 = vrot.lane.b32.xlu0 %v443, 16
      %v928 = vpop.permute.xlu0 %927
      %929 = vrot.lane.b32.xlu0 %v444, 16
      %v930 = vpop.permute.xlu0 %929
      %931 = vrot.lane.b32.xlu0 %v445, 16
      %v932 = vpop.permute.xlu0 %931
      %933 = vrot.lane.b32.xlu0 %v446, 16
      %v934 = vpop.permute.xlu0 %933
      %935 = vrot.lane.b32.xlu0 %v447, 16
      %v936 = vpop.permute.xlu0 %935
      %937 = vrot.lane.b32.xlu0 %v448, 16
      %v938 = vpop.permute.xlu0 %937
      %939 = vrot.lane.b32.xlu0 %v449, 16
      %v940 = vpop.permute.xlu0 %939
      %941 = vrot.lane.b32.xlu0 %v450, 16
      %v942 = vpop.permute.xlu0 %941
      %943 = vrot.lane.b32.xlu0 %v451, 16
      %v944 = vpop.permute.xlu0 %943
      %945 = vrot.lane.b32.xlu0 %v452, 16
      %v946 = vpop.permute.xlu0 %945
      %947 = vrot.lane.b32.xlu0 %v453, 16
      %v948 = vpop.permute.xlu0 %947
      %949 = vrot.lane.b32.xlu0 %v454, 16
      %v950 = vpop.permute.xlu0 %949
      %951 = vrot.lane.b32.xlu0 %v455, 16
      %v952 = vpop.permute.xlu0 %951
      %953 = vrot.lane.b32.xlu0 %v456, 16
      %v954 = vpop.permute.xlu0 %953
      %955 = vrot.lane.b32.xlu0 %v457, 16
      %v956 = vpop.permute.xlu0 %955
      %957 = vrot.lane.b32.xlu0 %v458, 16
      %v958 = vpop.permute.xlu0 %957
      %959 = vrot.lane.b32.xlu0 %v459, 16
      %v960 = vpop.permute.xlu0 %959
      %961 = vrot.lane.b32.xlu0 %v460, 16
      %v962 = vpop.permute.xlu0 %961
      %vm995 = vcmask 162944
      %996 = vst.msk [vmem:[#allocation2] sm:$0xff] %vm995, %v900
      %997 = vst.msk [vmem:[#allocation2 + $0x8] sm:$0xff] %vm995, %v902
      %998 = vst.msk [vmem:[#allocation2 + $0x10] sm:$0xff] %vm995, %v904
      %999 = vst.msk [vmem:[#allocation2 + $0x18] sm:$0xff] %vm995, %v906
      %1000 = vst.msk [vmem:[#allocation2 + $0x20] sm:$0xff] %vm995, %v908
      %1001 = vst.msk [vmem:[#allocation2 + $0x28] sm:$0xff] %vm995, %v910
      %1002 = vst.msk [vmem:[#allocation2 + $0x30] sm:$0xff] %vm995, %v912
      %1003 = vst.msk [vmem:[#allocation2 + $0x38] sm:$0xff] %vm995, %v914
      %1004 = vst.msk [vmem:[#allocation2 + $0x40] sm:$0xff] %vm995, %v916
      %1005 = vst.msk [vmem:[#allocation2 + $0x48] sm:$0xff] %vm995, %v918
      %1006 = vst.msk [vmem:[#allocation2 + $0x50] sm:$0xff] %vm995, %v920
      %1007 = vst.msk [vmem:[#allocation2 + $0x58] sm:$0xff] %vm995, %v922
      %1008 = vst.msk [vmem:[#allocation2 + $0x60] sm:$0xff] %vm995, %v924
      %1009 = vst.msk [vmem:[#allocation2 + $0x68] sm:$0xff] %vm995, %v926
      %1010 = vst.msk [vmem:[#allocation2 + $0x70] sm:$0xff] %vm995, %v928
      %1011 = vst.msk [vmem:[#allocation2 + $0x78] sm:$0xff] %vm995, %v930
      %1012 = vst.msk [vmem:[#allocation2 + $0x80] sm:$0xff] %vm995, %v932
      %1013 = vst.msk [vmem:[#allocation2 + $0x88] sm:$0xff] %vm995, %v934
      %1014 = vst.msk [vmem:[#allocation2 + $0x90] sm:$0xff] %vm995, %v936
      %1015 = vst.msk [vmem:[#allocation2 + $0x98] sm:$0xff] %vm995, %v938
      %1016 = vst.msk [vmem:[#allocation2 + $0xa0] sm:$0xff] %vm995, %v940
      %1017 = vst.msk [vmem:[#allocation2 + $0xa8] sm:$0xff] %vm995, %v942
      %1018 = vst.msk [vmem:[#allocation2 + $0xb0] sm:$0xff] %vm995, %v944
      %1019 = vst.msk [vmem:[#allocation2 + $0xb8] sm:$0xff] %vm995, %v946
      %1020 = vst.msk [vmem:[#allocation2 + $0xc0] sm:$0xff] %vm995, %v948
      %1021 = vst.msk [vmem:[#allocation2 + $0xc8] sm:$0xff] %vm995, %v950
      %1022 = vst.msk [vmem:[#allocation2 + $0xd0] sm:$0xff] %vm995, %v952
      %1023 = vst.msk [vmem:[#allocation2 + $0xd8] sm:$0xff] %vm995, %v954
      %1024 = vst.msk [vmem:[#allocation2 + $0xe0] sm:$0xff] %vm995, %v956
      %1025 = vst.msk [vmem:[#allocation2 + $0xe8] sm:$0xff] %vm995, %v958
      %1026 = vst.msk [vmem:[#allocation2 + $0xf0] sm:$0xff] %vm995, %v960
      %1027 = vst.msk [vmem:[#allocation2 + $0xf8] sm:$0xff] %vm995, %v962
      %1028 = vrot.lane.b32.xlu0 %v429, 20
      %v1029 = vpop.permute.xlu0 %1028
      %1030 = vrot.lane.b32.xlu0 %v430, 20
      %v1031 = vpop.permute.xlu0 %1030
      %1032 = vrot.lane.b32.xlu0 %v431, 20
      %v1033 = vpop.permute.xlu0 %1032
      %1034 = vrot.lane.b32.xlu0 %v432, 20
      %v1035 = vpop.permute.xlu0 %1034
      %1036 = vrot.lane.b32.xlu0 %v433, 20
      %v1037 = vpop.permute.xlu0 %1036
      %1038 = vrot.lane.b32.xlu0 %v434, 20
      %v1039 = vpop.permute.xlu0 %1038
      %1040 = vrot.lane.b32.xlu0 %v435, 20
      %v1041 = vpop.permute.xlu0 %1040
      %1042 = vrot.lane.b32.xlu0 %v436, 20
      %v1043 = vpop.permute.xlu0 %1042
      %1044 = vrot.lane.b32.xlu0 %v437, 20
      %v1045 = vpop.permute.xlu0 %1044
      %1046 = vrot.lane.b32.xlu0 %v438, 20
      %v1047 = vpop.permute.xlu0 %1046
      %1048 = vrot.lane.b32.xlu0 %v439, 20
      %v1049 = vpop.permute.xlu0 %1048
      %1050 = vrot.lane.b32.xlu0 %v440, 20
      %v1051 = vpop.permute.xlu0 %1050
      %1052 = vrot.lane.b32.xlu0 %v441, 20
      %v1053 = vpop.permute.xlu0 %1052
      %1054 = vrot.lane.b32.xlu0 %v442, 20
      %v1055 = vpop.permute.xlu0 %1054
      %1056 = vrot.lane.b32.xlu0 %v443, 20
      %v1057 = vpop.permute.xlu0 %1056
      %1058 = vrot.lane.b32.xlu0 %v444, 20
      %v1059 = vpop.permute.xlu0 %1058
      %1060 = vrot.lane.b32.xlu0 %v445, 20
      %v1061 = vpop.permute.xlu0 %1060
      %1062 = vrot.lane.b32.xlu0 %v446, 20
      %v1063 = vpop.permute.xlu0 %1062
      %1064 = vrot.lane.b32.xlu0 %v447, 20
      %v1065 = vpop.permute.xlu0 %1064
      %1066 = vrot.lane.b32.xlu0 %v448, 20
      %v1067 = vpop.permute.xlu0 %1066
      %1068 = vrot.lane.b32.xlu0 %v449, 20
      %v1069 = vpop.permute.xlu0 %1068
      %1070 = vrot.lane.b32.xlu0 %v450, 20
      %v1071 = vpop.permute.xlu0 %1070
      %1072 = vrot.lane.b32.xlu0 %v451, 20
      %v1073 = vpop.permute.xlu0 %1072
      %1074 = vrot.lane.b32.xlu0 %v452, 20
      %v1075 = vpop.permute.xlu0 %1074
      %1076 = vrot.lane.b32.xlu0 %v453, 20
      %v1077 = vpop.permute.xlu0 %1076
      %1078 = vrot.lane.b32.xlu0 %v454, 20
      %v1079 = vpop.permute.xlu0 %1078
      %1080 = vrot.lane.b32.xlu0 %v455, 20
      %v1081 = vpop.permute.xlu0 %1080
      %1082 = vrot.lane.b32.xlu0 %v456, 20
      %v1083 = vpop.permute.xlu0 %1082
      %1084 = vrot.lane.b32.xlu0 %v457, 20
      %v1085 = vpop.permute.xlu0 %1084
      %1086 = vrot.lane.b32.xlu0 %v458, 20
      %v1087 = vpop.permute.xlu0 %1086
      %1088 = vrot.lane.b32.xlu0 %v459, 20
      %v1089 = vpop.permute.xlu0 %1088
      %1090 = vrot.lane.b32.xlu0 %v460, 20
      %v1091 = vpop.permute.xlu0 %1090
      %vm1124 = vcmask 195745
      %1125 = vst.msk [vmem:[#allocation2 - $0x1] sm:$0xfe] %vm1124, %v1029
      %vm1126 = vcmask 195744
      %1127 = vst.msk [vmem:[#allocation2 + $0x7] sm:$0xff] %vm1126, %v1031
      %1128 = vst.msk [vmem:[#allocation2 + $0xf] sm:$0xfe] %vm1124, %v1033
      %1129 = vst.msk [vmem:[#allocation2 + $0x17] sm:$0xff] %vm1126, %v1035
      %1130 = vst.msk [vmem:[#allocation2 + $0x1f] sm:$0xfe] %vm1124, %v1037
      %1131 = vst.msk [vmem:[#allocation2 + $0x27] sm:$0xff] %vm1126, %v1039
      %1132 = vst.msk [vmem:[#allocation2 + $0x2f] sm:$0xfe] %vm1124, %v1041
      %1133 = vst.msk [vmem:[#allocation2 + $0x37] sm:$0xff] %vm1126, %v1043
      %1134 = vst.msk [vmem:[#allocation2 + $0x3f] sm:$0xfe] %vm1124, %v1045
      %1135 = vst.msk [vmem:[#allocation2 + $0x47] sm:$0xff] %vm1126, %v1047
      %1136 = vst.msk [vmem:[#allocation2 + $0x4f] sm:$0xfe] %vm1124, %v1049
      %1137 = vst.msk [vmem:[#allocation2 + $0x57] sm:$0xff] %vm1126, %v1051
      %1138 = vst.msk [vmem:[#allocation2 + $0x5f] sm:$0xfe] %vm1124, %v1053
      %1139 = vst.msk [vmem:[#allocation2 + $0x67] sm:$0xff] %vm1126, %v1055
      %1140 = vst.msk [vmem:[#allocation2 + $0x6f] sm:$0xfe] %vm1124, %v1057
      %1141 = vst.msk [vmem:[#allocation2 + $0x77] sm:$0xff] %vm1126, %v1059
      %1142 = vst.msk [vmem:[#allocation2 + $0x7f] sm:$0xfe] %vm1124, %v1061
      %1143 = vst.msk [vmem:[#allocation2 + $0x87] sm:$0xff] %vm1126, %v1063
      %1144 = vst.msk [vmem:[#allocation2 + $0x8f] sm:$0xfe] %vm1124, %v1065
      %1145 = vst.msk [vmem:[#allocation2 + $0x97] sm:$0xff] %vm1126, %v1067
      %1146 = vst.msk [vmem:[#allocation2 + $0x9f] sm:$0xfe] %vm1124, %v1069
      %1147 = vst.msk [vmem:[#allocation2 + $0xa7] sm:$0xff] %vm1126, %v1071
      %1148 = vst.msk [vmem:[#allocation2 + $0xaf] sm:$0xfe] %vm1124, %v1073
      %1149 = vst.msk [vmem:[#allocation2 + $0xb7] sm:$0xff] %vm1126, %v1075
      %1150 = vst.msk [vmem:[#allocation2 + $0xbf] sm:$0xfe] %vm1124, %v1077
      %1151 = vst.msk [vmem:[#allocation2 + $0xc7] sm:$0xff] %vm1126, %v1079
      %1152 = vst.msk [vmem:[#allocation2 + $0xcf] sm:$0xfe] %vm1124, %v1081
      %1153 = vst.msk [vmem:[#allocation2 + $0xd7] sm:$0xff] %vm1126, %v1083
      %1154 = vst.msk [vmem:[#allocation2 + $0xdf] sm:$0xfe] %vm1124, %v1085
      %1155 = vst.msk [vmem:[#allocation2 + $0xe7] sm:$0xff] %vm1126, %v1087
      %1156 = vst.msk [vmem:[#allocation2 + $0xef] sm:$0xfe] %vm1124, %v1089
      %1157 = vst.msk [vmem:[#allocation2 + $0xf7] sm:$0xff] %vm1126, %v1091
      %1158 = vrot.lane.b32.xlu0 %v431, 24
      %v1159 = vpop.permute.xlu0 %1158
      %1160 = vrot.lane.b32.xlu0 %v432, 24
      %v1161 = vpop.permute.xlu0 %1160
      %1162 = vrot.lane.b32.xlu0 %v433, 24
      %v1163 = vpop.permute.xlu0 %1162
      %1164 = vrot.lane.b32.xlu0 %v434, 24
      %v1165 = vpop.permute.xlu0 %1164
      %1166 = vrot.lane.b32.xlu0 %v435, 24
      %v1167 = vpop.permute.xlu0 %1166
      %1168 = vrot.lane.b32.xlu0 %v436, 24
      %v1169 = vpop.permute.xlu0 %1168
      %1170 = vrot.lane.b32.xlu0 %v437, 24
      %v1171 = vpop.permute.xlu0 %1170
      %1172 = vrot.lane.b32.xlu0 %v438, 24
      %v1173 = vpop.permute.xlu0 %1172
      %1174 = vrot.lane.b32.xlu0 %v439, 24
      %v1175 = vpop.permute.xlu0 %1174
      %1176 = vrot.lane.b32.xlu0 %v440, 24
      %v1177 = vpop.permute.xlu0 %1176
      %1178 = vrot.lane.b32.xlu0 %v441, 24
      %v1179 = vpop.permute.xlu0 %1178
      %1180 = vrot.lane.b32.xlu0 %v442, 24
      %v1181 = vpop.permute.xlu0 %1180
      %1182 = vrot.lane.b32.xlu0 %v443, 24
      %v1183 = vpop.permute.xlu0 %1182
      %1184 = vrot.lane.b32.xlu0 %v444, 24
      %v1185 = vpop.permute.xlu0 %1184
      %1186 = vrot.lane.b32.xlu0 %v445, 24
      %v1187 = vpop.permute.xlu0 %1186
      %1188 = vrot.lane.b32.xlu0 %v446, 24
      %v1189 = vpop.permute.xlu0 %1188
      %1190 = vrot.lane.b32.xlu0 %v447, 24
      %v1191 = vpop.permute.xlu0 %1190
      %1192 = vrot.lane.b32.xlu0 %v448, 24
      %v1193 = vpop.permute.xlu0 %1192
      %1194 = vrot.lane.b32.xlu0 %v449, 24
      %v1195 = vpop.permute.xlu0 %1194
      %1196 = vrot.lane.b32.xlu0 %v450, 24
      %v1197 = vpop.permute.xlu0 %1196
      %1198 = vrot.lane.b32.xlu0 %v451, 24
      %v1199 = vpop.permute.xlu0 %1198
      %1200 = vrot.lane.b32.xlu0 %v452, 24
      %v1201 = vpop.permute.xlu0 %1200
      %1202 = vrot.lane.b32.xlu0 %v453, 24
      %v1203 = vpop.permute.xlu0 %1202
      %1204 = vrot.lane.b32.xlu0 %v454, 24
      %v1205 = vpop.permute.xlu0 %1204
      %1206 = vrot.lane.b32.xlu0 %v455, 24
      %v1207 = vpop.permute.xlu0 %1206
      %1208 = vrot.lane.b32.xlu0 %v456, 24
      %v1209 = vpop.permute.xlu0 %1208
      %1210 = vrot.lane.b32.xlu0 %v457, 24
      %v1211 = vpop.permute.xlu0 %1210
      %1212 = vrot.lane.b32.xlu0 %v458, 24
      %v1213 = vpop.permute.xlu0 %1212
      %1214 = vrot.lane.b32.xlu0 %v459, 24
      %v1215 = vpop.permute.xlu0 %1214
      %1216 = vrot.lane.b32.xlu0 %v460, 24
      %v1217 = vpop.permute.xlu0 %1216
      %vm1248 = vcmask 228544
      %1249 = vst.msk [vmem:[#allocation2 + $0x1] sm:$0xff] %vm1248, %v1159
      %vm1250 = vcmask 227520
      %1251 = vst.msk [vmem:[#allocation2 + $0x9] sm:$0x7f] %vm1250, %v1161
      %1252 = vst.msk [vmem:[#allocation2 + $0x11] sm:$0xff] %vm1248, %v1163
      %1253 = vst.msk [vmem:[#allocation2 + $0x19] sm:$0x7f] %vm1250, %v1165
      %1254 = vst.msk [vmem:[#allocation2 + $0x21] sm:$0xff] %vm1248, %v1167
      %1255 = vst.msk [vmem:[#allocation2 + $0x29] sm:$0x7f] %vm1250, %v1169
      %1256 = vst.msk [vmem:[#allocation2 + $0x31] sm:$0xff] %vm1248, %v1171
      %1257 = vst.msk [vmem:[#allocation2 + $0x39] sm:$0x7f] %vm1250, %v1173
      %1258 = vst.msk [vmem:[#allocation2 + $0x41] sm:$0xff] %vm1248, %v1175
      %1259 = vst.msk [vmem:[#allocation2 + $0x49] sm:$0x7f] %vm1250, %v1177
      %1260 = vst.msk [vmem:[#allocation2 + $0x51] sm:$0xff] %vm1248, %v1179
      %1261 = vst.msk [vmem:[#allocation2 + $0x59] sm:$0x7f] %vm1250, %v1181
      %1262 = vst.msk [vmem:[#allocation2 + $0x61] sm:$0xff] %vm1248, %v1183
      %1263 = vst.msk [vmem:[#allocation2 + $0x69] sm:$0x7f] %vm1250, %v1185
      %1264 = vst.msk [vmem:[#allocation2 + $0x71] sm:$0xff] %vm1248, %v1187
      %1265 = vst.msk [vmem:[#allocation2 + $0x79] sm:$0x7f] %vm1250, %v1189
      %1266 = vst.msk [vmem:[#allocation2 + $0x81] sm:$0xff] %vm1248, %v1191
      %1267 = vst.msk [vmem:[#allocation2 + $0x89] sm:$0x7f] %vm1250, %v1193
      %1268 = vst.msk [vmem:[#allocation2 + $0x91] sm:$0xff] %vm1248, %v1195
      %1269 = vst.msk [vmem:[#allocation2 + $0x99] sm:$0x7f] %vm1250, %v1197
      %1270 = vst.msk [vmem:[#allocation2 + $0xa1] sm:$0xff] %vm1248, %v1199
      %1271 = vst.msk [vmem:[#allocation2 + $0xa9] sm:$0x7f] %vm1250, %v1201
      %1272 = vst.msk [vmem:[#allocation2 + $0xb1] sm:$0xff] %vm1248, %v1203
      %1273 = vst.msk [vmem:[#allocation2 + $0xb9] sm:$0x7f] %vm1250, %v1205
      %1274 = vst.msk [vmem:[#allocation2 + $0xc1] sm:$0xff] %vm1248, %v1207
      %1275 = vst.msk [vmem:[#allocation2 + $0xc9] sm:$0x7f] %vm1250, %v1209
      %1276 = vst.msk [vmem:[#allocation2 + $0xd1] sm:$0xff] %vm1248, %v1211
      %1277 = vst.msk [vmem:[#allocation2 + $0xd9] sm:$0x7f] %vm1250, %v1213
      %1278 = vst.msk [vmem:[#allocation2 + $0xe1] sm:$0xff] %vm1248, %v1215
      %1279 = vst.msk [vmem:[#allocation2 + $0xe9] sm:$0x7f] %vm1250, %v1217
      %1280 = vrot.lane.b32.xlu0 %v431, 28
      %v1281 = vpop.permute.xlu0 %1280
      %1282 = vrot.lane.b32.xlu0 %v432, 28
      %v1283 = vpop.permute.xlu0 %1282
      %1284 = vrot.lane.b32.xlu0 %v433, 28
      %v1285 = vpop.permute.xlu0 %1284
      %1286 = vrot.lane.b32.xlu0 %v434, 28
      %v1287 = vpop.permute.xlu0 %1286
      %1288 = vrot.lane.b32.xlu0 %v435, 28
      %v1289 = vpop.permute.xlu0 %1288
      %1290 = vrot.lane.b32.xlu0 %v436, 28
      %v1291 = vpop.permute.xlu0 %1290
      %1292 = vrot.lane.b32.xlu0 %v437, 28
      %v1293 = vpop.permute.xlu0 %1292
      %1294 = vrot.lane.b32.xlu0 %v438, 28
      %v1295 = vpop.permute.xlu0 %1294
      %1296 = vrot.lane.b32.xlu0 %v439, 28
      %v1297 = vpop.permute.xlu0 %1296
      %1298 = vrot.lane.b32.xlu0 %v440, 28
      %v1299 = vpop.permute.xlu0 %1298
      %1300 = vrot.lane.b32.xlu0 %v441, 28
      %v1301 = vpop.permute.xlu0 %1300
      %1302 = vrot.lane.b32.xlu0 %v442, 28
      %v1303 = vpop.permute.xlu0 %1302
      %1304 = vrot.lane.b32.xlu0 %v443, 28
      %v1305 = vpop.permute.xlu0 %1304
      %1306 = vrot.lane.b32.xlu0 %v444, 28
      %v1307 = vpop.permute.xlu0 %1306
      %1308 = vrot.lane.b32.xlu0 %v445, 28
      %v1309 = vpop.permute.xlu0 %1308
      %1310 = vrot.lane.b32.xlu0 %v446, 28
      %v1311 = vpop.permute.xlu0 %1310
      %1312 = vrot.lane.b32.xlu0 %v447, 28
      %v1313 = vpop.permute.xlu0 %1312
      %1314 = vrot.lane.b32.xlu0 %v448, 28
      %v1315 = vpop.permute.xlu0 %1314
      %1316 = vrot.lane.b32.xlu0 %v449, 28
      %v1317 = vpop.permute.xlu0 %1316
      %1318 = vrot.lane.b32.xlu0 %v450, 28
      %v1319 = vpop.permute.xlu0 %1318
      %1320 = vrot.lane.b32.xlu0 %v451, 28
      %v1321 = vpop.permute.xlu0 %1320
      %1322 = vrot.lane.b32.xlu0 %v452, 28
      %v1323 = vpop.permute.xlu0 %1322
      %1324 = vrot.lane.b32.xlu0 %v453, 28
      %v1325 = vpop.permute.xlu0 %1324
      %1326 = vrot.lane.b32.xlu0 %v454, 28
      %v1327 = vpop.permute.xlu0 %1326
      %1328 = vrot.lane.b32.xlu0 %v455, 28
      %v1329 = vpop.permute.xlu0 %1328
      %1330 = vrot.lane.b32.xlu0 %v456, 28
      %v1331 = vpop.permute.xlu0 %1330
      %1332 = vrot.lane.b32.xlu0 %v457, 28
      %v1333 = vpop.permute.xlu0 %1332
      %1334 = vrot.lane.b32.xlu0 %v458, 28
      %v1335 = vpop.permute.xlu0 %1334
      %1336 = vrot.lane.b32.xlu0 %v459, 28
      %v1337 = vpop.permute.xlu0 %1336
      %1338 = vrot.lane.b32.xlu0 %v460, 28
      %v1339 = vpop.permute.xlu0 %1338
      %vm1370 = vcmask 261344
      %1371 = vst.msk [vmem:[#allocation2] sm:$0xff] %vm1370, %v1281
      %1372 = vst.msk [vmem:[#allocation2 + $0x8] sm:$0xff] %vm1370, %v1283
      %1373 = vst.msk [vmem:[#allocation2 + $0x10] sm:$0xff] %vm1370, %v1285
      %1374 = vst.msk [vmem:[#allocation2 + $0x18] sm:$0xff] %vm1370, %v1287
      %1375 = vst.msk [vmem:[#allocation2 + $0x20] sm:$0xff] %vm1370, %v1289
      %1376 = vst.msk [vmem:[#allocation2 + $0x28] sm:$0xff] %vm1370, %v1291
      %1377 = vst.msk [vmem:[#allocation2 + $0x30] sm:$0xff] %vm1370, %v1293
      %1378 = vst.msk [vmem:[#allocation2 + $0x38] sm:$0xff] %vm1370, %v1295
      %1379 = vst.msk [vmem:[#allocation2 + $0x40] sm:$0xff] %vm1370, %v1297
      %1380 = vst.msk [vmem:[#allocation2 + $0x48] sm:$0xff] %vm1370, %v1299
      %1381 = vst.msk [vmem:[#allocation2 + $0x50] sm:$0xff] %vm1370, %v1301
      %1382 = vst.msk [vmem:[#allocation2 + $0x58] sm:$0xff] %vm1370, %v1303
      %1383 = vst.msk [vmem:[#allocation2 + $0x60] sm:$0xff] %vm1370, %v1305
      %1384 = vst.msk [vmem:[#allocation2 + $0x68] sm:$0xff] %vm1370, %v1307
      %1385 = vst.msk [vmem:[#allocation2 + $0x70] sm:$0xff] %vm1370, %v1309
      %1386 = vst.msk [vmem:[#allocation2 + $0x78] sm:$0xff] %vm1370, %v1311
      %1387 = vst.msk [vmem:[#allocation2 + $0x80] sm:$0xff] %vm1370, %v1313
      %1388 = vst.msk [vmem:[#allocation2 + $0x88] sm:$0xff] %vm1370, %v1315
      %1389 = vst.msk [vmem:[#allocation2 + $0x90] sm:$0xff] %vm1370, %v1317
      %1390 = vst.msk [vmem:[#allocation2 + $0x98] sm:$0xff] %vm1370, %v1319
      %1391 = vst.msk [vmem:[#allocation2 + $0xa0] sm:$0xff] %vm1370, %v1321
      %1392 = vst.msk [vmem:[#allocation2 + $0xa8] sm:$0xff] %vm1370, %v1323
      %1393 = vst.msk [vmem:[#allocation2 + $0xb0] sm:$0xff] %vm1370, %v1325
      %1394 = vst.msk [vmem:[#allocation2 + $0xb8] sm:$0xff] %vm1370, %v1327
      %1395 = vst.msk [vmem:[#allocation2 + $0xc0] sm:$0xff] %vm1370, %v1329
      %1396 = vst.msk [vmem:[#allocation2 + $0xc8] sm:$0xff] %vm1370, %v1331
      %1397 = vst.msk [vmem:[#allocation2 + $0xd0] sm:$0xff] %vm1370, %v1333
      %1398 = vst.msk [vmem:[#allocation2 + $0xd8] sm:$0xff] %vm1370, %v1335
      %1399 = vst.msk [vmem:[#allocation2 + $0xe0] sm:$0xff] %vm1370, %v1337
      %1400 = vst.msk [vmem:[#allocation2 + $0xe8] sm:$0xff] %vm1370, %v1339
      %1401 = vrot.lane.b32.xlu0 %v431, 32
      %v1402 = vpop.permute.xlu0 %1401
      %1403 = vrot.lane.b32.xlu0 %v432, 32
      %v1404 = vpop.permute.xlu0 %1403
      %1405 = vrot.lane.b32.xlu0 %v433, 32
      %v1406 = vpop.permute.xlu0 %1405
      %1407 = vrot.lane.b32.xlu0 %v434, 32
      %v1408 = vpop.permute.xlu0 %1407
      %1409 = vrot.lane.b32.xlu0 %v435, 32
      %v1410 = vpop.permute.xlu0 %1409
      %1411 = vrot.lane.b32.xlu0 %v436, 32
      %v1412 = vpop.permute.xlu0 %1411
      %1413 = vrot.lane.b32.xlu0 %v437, 32
      %v1414 = vpop.permute.xlu0 %1413
      %1415 = vrot.lane.b32.xlu0 %v438, 32
      %v1416 = vpop.permute.xlu0 %1415
      %1417 = vrot.lane.b32.xlu0 %v439, 32
      %v1418 = vpop.permute.xlu0 %1417
      %1419 = vrot.lane.b32.xlu0 %v440, 32
      %v1420 = vpop.permute.xlu0 %1419
      %1421 = vrot.lane.b32.xlu0 %v441, 32
      %v1422 = vpop.permute.xlu0 %1421
      %1423 = vrot.lane.b32.xlu0 %v442, 32
      %v1424 = vpop.permute.xlu0 %1423
      %1425 = vrot.lane.b32.xlu0 %v443, 32
      %v1426 = vpop.permute.xlu0 %1425
      %1427 = vrot.lane.b32.xlu0 %v444, 32
      %v1428 = vpop.permute.xlu0 %1427
      %1429 = vrot.lane.b32.xlu0 %v445, 32
      %v1430 = vpop.permute.xlu0 %1429
      %1431 = vrot.lane.b32.xlu0 %v446, 32
      %v1432 = vpop.permute.xlu0 %1431
      %1433 = vrot.lane.b32.xlu0 %v447, 32
      %v1434 = vpop.permute.xlu0 %1433
      %1435 = vrot.lane.b32.xlu0 %v448, 32
      %v1436 = vpop.permute.xlu0 %1435
      %1437 = vrot.lane.b32.xlu0 %v449, 32
      %v1438 = vpop.permute.xlu0 %1437
      %1439 = vrot.lane.b32.xlu0 %v450, 32
      %v1440 = vpop.permute.xlu0 %1439
      %1441 = vrot.lane.b32.xlu0 %v451, 32
      %v1442 = vpop.permute.xlu0 %1441
      %1443 = vrot.lane.b32.xlu0 %v452, 32
      %v1444 = vpop.permute.xlu0 %1443
      %1445 = vrot.lane.b32.xlu0 %v453, 32
      %v1446 = vpop.permute.xlu0 %1445
      %1447 = vrot.lane.b32.xlu0 %v454, 32
      %v1448 = vpop.permute.xlu0 %1447
      %1449 = vrot.lane.b32.xlu0 %v455, 32
      %v1450 = vpop.permute.xlu0 %1449
      %1451 = vrot.lane.b32.xlu0 %v456, 32
      %v1452 = vpop.permute.xlu0 %1451
      %1453 = vrot.lane.b32.xlu0 %v457, 32
      %v1454 = vpop.permute.xlu0 %1453
      %1455 = vrot.lane.b32.xlu0 %v458, 32
      %v1456 = vpop.permute.xlu0 %1455
      %1457 = vrot.lane.b32.xlu0 %v459, 32
      %v1458 = vpop.permute.xlu0 %1457
      %1459 = vrot.lane.b32.xlu0 %v460, 32
      %v1460 = vpop.permute.xlu0 %1459
      %vm1491 = vcmask 294145
      %1492 = vst.msk [vmem:[#allocation2 - $0x1] sm:$0xfe] %vm1491, %v1402
      %vm1493 = vcmask 294144
      %1494 = vst.msk [vmem:[#allocation2 + $0x7] sm:$0xff] %vm1493, %v1404
      %1495 = vst.msk [vmem:[#allocation2 + $0xf] sm:$0xfe] %vm1491, %v1406
      %1496 = vst.msk [vmem:[#allocation2 + $0x17] sm:$0xff] %vm1493, %v1408
      %1497 = vst.msk [vmem:[#allocation2 + $0x1f] sm:$0xfe] %vm1491, %v1410
      %1498 = vst.msk [vmem:[#allocation2 + $0x27] sm:$0xff] %vm1493, %v1412
      %1499 = vst.msk [vmem:[#allocation2 + $0x2f] sm:$0xfe] %vm1491, %v1414
      %1500 = vst.msk [vmem:[#allocation2 + $0x37] sm:$0xff] %vm1493, %v1416
      %1501 = vst.msk [vmem:[#allocation2 + $0x3f] sm:$0xfe] %vm1491, %v1418
      %1502 = vst.msk [vmem:[#allocation2 + $0x47] sm:$0xff] %vm1493, %v1420
      %1503 = vst.msk [vmem:[#allocation2 + $0x4f] sm:$0xfe] %vm1491, %v1422
      %1504 = vst.msk [vmem:[#allocation2 + $0x57] sm:$0xff] %vm1493, %v1424
      %1505 = vst.msk [vmem:[#allocation2 + $0x5f] sm:$0xfe] %vm1491, %v1426
      %1506 = vst.msk [vmem:[#allocation2 + $0x67] sm:$0xff] %vm1493, %v1428
      %1507 = vst.msk [vmem:[#allocation2 + $0x6f] sm:$0xfe] %vm1491, %v1430
      %1508 = vst.msk [vmem:[#allocation2 + $0x77] sm:$0xff] %vm1493, %v1432
      %1509 = vst.msk [vmem:[#allocation2 + $0x7f] sm:$0xfe] %vm1491, %v1434
      %1510 = vst.msk [vmem:[#allocation2 + $0x87] sm:$0xff] %vm1493, %v1436
      %1511 = vst.msk [vmem:[#allocation2 + $0x8f] sm:$0xfe] %vm1491, %v1438
      %1512 = vst.msk [vmem:[#allocation2 + $0x97] sm:$0xff] %vm1493, %v1440
      %1513 = vst.msk [vmem:[#allocation2 + $0x9f] sm:$0xfe] %vm1491, %v1442
      %1514 = vst.msk [vmem:[#allocation2 + $0xa7] sm:$0xff] %vm1493, %v1444
      %1515 = vst.msk [vmem:[#allocation2 + $0xaf] sm:$0xfe] %vm1491, %v1446
      %1516 = vst.msk [vmem:[#allocation2 + $0xb7] sm:$0xff] %vm1493, %v1448
      %1517 = vst.msk [vmem:[#allocation2 + $0xbf] sm:$0xfe] %vm1491, %v1450
      %1518 = vst.msk [vmem:[#allocation2 + $0xc7] sm:$0xff] %vm1493, %v1452
      %1519 = vst.msk [vmem:[#allocation2 + $0xcf] sm:$0xfe] %vm1491, %v1454
      %1520 = vst.msk [vmem:[#allocation2 + $0xd7] sm:$0xff] %vm1493, %v1456
      %1521 = vst.msk [vmem:[#allocation2 + $0xdf] sm:$0xfe] %vm1491, %v1458
      %1522 = vst.msk [vmem:[#allocation2 + $0xe7] sm:$0xff] %vm1493, %v1460
      %v1523 = vld [vmem:[#allocation2] sm:$0xff]
      %v1524 = vld [vmem:[#allocation2 + $0x8] sm:$0xff]
      %v1525 = vld [vmem:[#allocation2 + $0x10] sm:$0xff]
      %v1526 = vld [vmem:[#allocation2 + $0x18] sm:$0xff]
      %v1527 = vld [vmem:[#allocation2 + $0x20] sm:$0xff]
      %v1528 = vld [vmem:[#allocation2 + $0x28] sm:$0xff]
      %v1529 = vld [vmem:[#allocation2 + $0x30] sm:$0xff]
      %v1530 = vld [vmem:[#allocation2 + $0x38] sm:$0xff]
      %v1531 = vld [vmem:[#allocation2 + $0x40] sm:$0xff]
      %v1532 = vld [vmem:[#allocation2 + $0x48] sm:$0xff]
      %v1533 = vld [vmem:[#allocation2 + $0x50] sm:$0xff]
      %v1534 = vld [vmem:[#allocation2 + $0x58] sm:$0xff]
      %v1535 = vld [vmem:[#allocation2 + $0x60] sm:$0xff]
      %v1536 = vld [vmem:[#allocation2 + $0x68] sm:$0xff]
      %v1537 = vld [vmem:[#allocation2 + $0x70] sm:$0xff]
      %v1538 = vld [vmem:[#allocation2 + $0x78] sm:$0xff]
      %v1539 = vld [vmem:[#allocation2 + $0x80] sm:$0xff]
      %v1540 = vld [vmem:[#allocation2 + $0x88] sm:$0xff]
      %v1541 = vld [vmem:[#allocation2 + $0x90] sm:$0xff]
      %v1542 = vld [vmem:[#allocation2 + $0x98] sm:$0xff]
      %v1543 = vld [vmem:[#allocation2 + $0xa0] sm:$0xff]
      %v1544 = vld [vmem:[#allocation2 + $0xa8] sm:$0xff]
      %v1545 = vld [vmem:[#allocation2 + $0xb0] sm:$0xff]
      %v1546 = vld [vmem:[#allocation2 + $0xb8] sm:$0xff]
      %v1547 = vld [vmem:[#allocation2 + $0xc0] sm:$0xff]
      %v1548 = vld [vmem:[#allocation2 + $0xc8] sm:$0xff]
      %v1549 = vld [vmem:[#allocation2 + $0xd0] sm:$0xff]
      %v1550 = vld [vmem:[#allocation2 + $0xd8] sm:$0xff]
      %v1551 = vld [vmem:[#allocation2 + $0xe0] sm:$0xff]
      %v1552 = vld [vmem:[#allocation2 + $0xe8] sm:$0xff]
      %v1553 = vld [vmem:[#allocation2 + $0xf0] sm:$0xff]
      %v1554 = vld [vmem:[#allocation2 + $0xf8] sm:$0xff]
      %v1555 = vld [vmem:[%s1] sm:$0xff]
      %v1556 = vld [vmem:[%s1 + $0x8] sm:$0xff]
      %v1557 = vld [vmem:[%s1 + $0x10] sm:$0xff]
      %v1558 = vld [vmem:[%s1 + $0x18] sm:$0xff]
      %v1559 = vld [vmem:[%s1 + $0x20] sm:$0xf]
      %v1560 = vld [vmem:[%s2] sm:$0x1]
      %v1562 = vlaneseq
      %v1563 = vshrl.u32 %v1562, 7
      %v1564 = vsub.s32 0, %v1563
      %v1565 = vrot.slane %v1560, %v1564
      %v1568 = vsel %vm387, %v1523, 0
      %v1571 = vsel %vm387, %v1524, 0
      %v1574 = vsel %vm387, %v1525, 0
      %v1577 = vsel %vm387, %v1526, 0
      %v1580 = vsel %vm387, %v1527, 0
      %v1583 = vsel %vm387, %v1528, 0
      %v1586 = vsel %vm387, %v1529, 0
      %v1589 = vsel %vm387, %v1530, 0
      %v1592 = vsel %vm387, %v1531, 0
      %v1595 = vsel %vm387, %v1532, 0
      %v1598 = vsel %vm387, %v1533, 0
      %v1601 = vsel %vm387, %v1534, 0
      %v1604 = vsel %vm387, %v1535, 0
      %v1607 = vsel %vm387, %v1536, 0
      %v1610 = vsel %vm387, %v1537, 0
      %v1613 = vsel %vm387, %v1538, 0
      %v1616 = vsel %vm387, %v1539, 0
      %v1619 = vsel %vm387, %v1540, 0
      %v1622 = vsel %vm387, %v1541, 0
      %v1625 = vsel %vm387, %v1542, 0
      %v1628 = vsel %vm387, %v1543, 0
      %v1631 = vsel %vm387, %v1544, 0
      %v1634 = vsel %vm387, %v1545, 0
      %v1637 = vsel %vm387, %v1546, 0
      %v1640 = vsel %vm387, %v1547, 0
      %v1643 = vsel %vm387, %v1548, 0
      %v1646 = vsel %vm387, %v1549, 0
      %v1649 = vsel %vm387, %v1550, 0
      %v1652 = vsel %vm387, %v1551, 0
      %v1655 = vsel %vm387, %v1552, 0
      %v1658 = vsel %vm387, %v1553, 0
      %v1661 = vsel %vm387, %v1554, 0
      %vm1663 = vcmask 1043456
      %v1665 = vsel %vm1663, %v1559, 0
      %1667 = vmatprep.subr.mxu0 0.0
      %1668 = vmatpush1.msra.mxu0 %v1555
      %1669 = vmatprep.subr.mxu0 0.0
      %1670 = vmatpush1.msra.mxu0 %v1556
      %1671 = vmatprep.subr.mxu0 0.0
      %1672 = vmatpush1.msra.mxu0 %v1557
      %1673 = vmatprep.subr.mxu0 0.0
      %1674 = vmatpush1.msra.mxu0 %v1558
      %1675 = vmatprep.subr.mxu0 0.0
      %1676 = vmatpush1.msra.mxu0 %v1665
      %1677 = vmatprep.subr.mxu0 0.0
      %1678 = vmatpush1.msra.mxu0 0.0
      %1679 = vmatprep.subr.mxu0 0.0
      %1680 = vmatpush1.msra.mxu0 0.0
      %1681 = vmatprep.subr.mxu0 0.0
      %1682 = vmatpush1.msra.mxu0 0.0
      %1683 = vmatprep.subr.mxu0 0.0
      %1684 = vmatpush1.msra.mxu0 0.0
      %1685 = vmatprep.subr.mxu0 0.0
      %1686 = vmatpush1.msra.mxu0 0.0
      %1687 = vmatprep.subr.mxu0 0.0
      %1688 = vmatpush1.msra.mxu0 0.0
      %1689 = vmatprep.subr.mxu0 0.0
      %1690 = vmatpush1.msra.mxu0 0.0
      %1691 = vmatprep.subr.mxu0 0.0
      %1692 = vmatpush1.msra.mxu0 0.0
      %1693 = vmatprep.subr.mxu0 0.0
      %1694 = vmatpush1.msra.mxu0 0.0
      %1695 = vmatprep.subr.mxu0 0.0
      %1696 = vmatpush1.msra.mxu0 0.0
      %1697 = vmatprep.subr.mxu0 0.0
      %1698 = vmatpush1.msra.mxu0 0.0
      %1699 = vmatprep.subr.mxu0 0.0
      %1700 = vmatpush1.msra.mxu0 0.0
      %1701 = vmatprep.subr.mxu0 0.0
      %1702 = vmatpush1.msra.mxu0 0.0
      %1703 = vmatprep.subr.mxu0 0.0
      %1704 = vmatpush1.msra.mxu0 0.0
      %1705 = vmatprep.subr.mxu0 0.0
      %1706 = vmatpush1.msra.mxu0 0.0
      %1707 = vmatprep.subr.mxu0 0.0
      %1708 = vmatpush1.msra.mxu0 0.0
      %1709 = vmatprep.subr.mxu0 0.0
      %1710 = vmatpush1.msra.mxu0 0.0
      %1711 = vmatprep.subr.mxu0 0.0
      %1712 = vmatpush1.msra.mxu0 0.0
      %1713 = vmatprep.subr.mxu0 0.0
      %1714 = vmatpush1.msra.mxu0 0.0
      %1715 = vmatprep.subr.mxu0 0.0
      %1716 = vmatpush1.msra.mxu0 0.0
      %1717 = vmatprep.subr.mxu0 0.0
      %1718 = vmatpush1.msra.mxu0 0.0
      %1719 = vmatprep.subr.mxu0 0.0
      %1720 = vmatpush1.msra.mxu0 0.0
      %1721 = vmatprep.subr.mxu0 0.0
      %1722 = vmatpush1.msra.mxu0 0.0
      %1723 = vmatprep.subr.mxu0 0.0
      %1724 = vmatpush1.msra.mxu0 0.0
      %1725 = vmatprep.subr.mxu0 0.0
      %1726 = vmatpush1.msra.mxu0 0.0
      %1727 = vmatprep.subr.mxu0 0.0
      %1728 = vmatpush1.msra.mxu0 0.0
      %1729 = vmatprep.subr.mxu0 0.0
      %1730 = vmatpush1.msra.mxu0 0.0
      %1731 = vmatprep.mubr.f32.mxu0 0.0
      %1732 = vmatmul.mubr.f32.gmra.mrb[0].mxu0 %v1568
      %v1733 = vpop.f32.mrb[0].mxu0
      %v1734 = vadd.f32 %v1565, %v1733
      %v1735 = vpop.f32.mrb[0].mxu0
      %1736 = vmatprep.mubr.f32.mxu0 0.0
      %1737 = vmatmul.mubr.f32.gmra.mrb[0].mxu0 %v1571
      %v1738 = vpop.f32.mrb[0].mxu0
      %v1739 = vadd.f32 %v1565, %v1738
      %v1740 = vpop.f32.mrb[0].mxu0
      %1741 = vmatprep.mubr.f32.mxu0 0.0
      %1742 = vmatmul.mubr.f32.gmra.mrb[0].mxu0 %v1574
      %v1743 = vpop.f32.mrb[0].mxu0
      %v1744 = vadd.f32 %v1565, %v1743
      %v1745 = vpop.f32.mrb[0].mxu0
      %1746 = vmatprep.mubr.f32.mxu0 0.0
      %1747 = vmatmul.mubr.f32.gmra.mrb[0].mxu0 %v1577
      %v1748 = vpop.f32.mrb[0].mxu0
      %v1749 = vadd.f32 %v1565, %v1748
      %v1750 = vpop.f32.mrb[0].mxu0
      %1751 = vmatprep.mubr.f32.mxu0 0.0
      %1752 = vmatmul.mubr.f32.gmra.mrb[0].mxu0 %v1580
      %v1753 = vpop.f32.mrb[0].mxu0
      %v1754 = vadd.f32 %v1565, %v1753
      %v1755 = vpop.f32.mrb[0].mxu0
      %1756 = vmatprep.mubr.f32.mxu0 0.0
      %1757 = vmatmul.mubr.f32.gmra.mrb[0].mxu0 %v1583
      %v1758 = vpop.f32.mrb[0].mxu0
      %v1759 = vadd.f32 %v1565, %v1758
      %v1760 = vpop.f32.mrb[0].mxu0
      %1761 = vmatprep.mubr.f32.mxu0 0.0
      %1762 = vmatmul.mubr.f32.gmra.mrb[0].mxu0 %v1586
      %v1763 = vpop.f32.mrb[0].mxu0
      %v1764 = vadd.f32 %v1565, %v1763
      %v1765 = vpop.f32.mrb[0].mxu0
      %1766 = vmatprep.mubr.f32.mxu0 0.0
      %1767 = vmatmul.mubr.f32.gmra.mrb[0].mxu0 %v1589
      %v1768 = vpop.f32.mrb[0].mxu0
      %v1769 = vadd.f32 %v1565, %v1768
      %v1770 = vpop.f32.mrb[0].mxu0
      %1771 = vmatprep.mubr.f32.mxu0 0.0
      %1772 = vmatmul.mubr.f32.gmra.mrb[0].mxu0 %v1592
      %v1773 = vpop.f32.mrb[0].mxu0
      %v1774 = vadd.f32 %v1565, %v1773
      %v1775 = vpop.f32.mrb[0].mxu0
      %1776 = vmatprep.mubr.f32.mxu0 0.0
      %1777 = vmatmul.mubr.f32.gmra.mrb[0].mxu0 %v1595
      %v1778 = vpop.f32.mrb[0].mxu0
      %v1779 = vadd.f32 %v1565, %v1778
      %v1780 = vpop.f32.mrb[0].mxu0
      %1781 = vmatprep.mubr.f32.mxu0 0.0
      %1782 = vmatmul.mubr.f32.gmra.mrb[0].mxu0 %v1598
      %v1783 = vpop.f32.mrb[0].mxu0
      %v1784 = vadd.f32 %v1565, %v1783
      %v1785 = vpop.f32.mrb[0].mxu0
      %1786 = vmatprep.mubr.f32.mxu0 0.0
      %1787 = vmatmul.mubr.f32.gmra.mrb[0].mxu0 %v1601
      %v1788 = vpop.f32.mrb[0].mxu0
      %v1789 = vadd.f32 %v1565, %v1788
      %v1790 = vpop.f32.mrb[0].mxu0
      %1791 = vmatprep.mubr.f32.mxu0 0.0
      %1792 = vmatmul.mubr.f32.gmra.mrb[0].mxu0 %v1604
      %v1793 = vpop.f32.mrb[0].mxu0
      %v1794 = vadd.f32 %v1565, %v1793
      %v1795 = vpop.f32.mrb[0].mxu0
      %1796 = vmatprep.mubr.f32.mxu0 0.0
      %1797 = vmatmul.mubr.f32.gmra.mrb[0].mxu0 %v1607
      %v1798 = vpop.f32.mrb[0].mxu0
      %v1799 = vadd.f32 %v1565, %v1798
      %v1800 = vpop.f32.mrb[0].mxu0
      %1801 = vmatprep.mubr.f32.mxu0 0.0
      %1802 = vmatmul.mubr.f32.gmra.mrb[0].mxu0 %v1610
      %v1803 = vpop.f32.mrb[0].mxu0
      %v1804 = vadd.f32 %v1565, %v1803
      %v1805 = vpop.f32.mrb[0].mxu0
      %1806 = vmatprep.mubr.f32.mxu0 0.0
      %1807 = vmatmul.mubr.f32.gmra.mrb[0].mxu0 %v1613
      %v1808 = vpop.f32.mrb[0].mxu0
      %v1809 = vadd.f32 %v1565, %v1808
      %v1810 = vpop.f32.mrb[0].mxu0
      %1811 = vmatprep.mubr.f32.mxu0 0.0
      %1812 = vmatmul.mubr.f32.gmra.mrb[0].mxu0 %v1616
      %v1813 = vpop.f32.mrb[0].mxu0
      %v1814 = vadd.f32 %v1565, %v1813
      %v1815 = vpop.f32.mrb[0].mxu0
      %1816 = vmatprep.mubr.f32.mxu0 0.0
      %1817 = vmatmul.mubr.f32.gmra.mrb[0].mxu0 %v1619
      %v1818 = vpop.f32.mrb[0].mxu0
      %v1819 = vadd.f32 %v1565, %v1818
      %v1820 = vpop.f32.mrb[0].mxu0
      %1821 = vmatprep.mubr.f32.mxu0 0.0
      %1822 = vmatmul.mubr.f32.gmra.mrb[0].mxu0 %v1622
      %v1823 = vpop.f32.mrb[0].mxu0
      %v1824 = vadd.f32 %v1565, %v1823
      %v1825 = vpop.f32.mrb[0].mxu0
      %1826 = vmatprep.mubr.f32.mxu0 0.0
      %1827 = vmatmul.mubr.f32.gmra.mrb[0].mxu0 %v1625
      %v1828 = vpop.f32.mrb[0].mxu0
      %v1829 = vadd.f32 %v1565, %v1828
      %v1830 = vpop.f32.mrb[0].mxu0
      %1831 = vmatprep.mubr.f32.mxu0 0.0
      %1832 = vmatmul.mubr.f32.gmra.mrb[0].mxu0 %v1628
      %v1833 = vpop.f32.mrb[0].mxu0
      %v1834 = vadd.f32 %v1565, %v1833
      %v1835 = vpop.f32.mrb[0].mxu0
      %1836 = vmatprep.mubr.f32.mxu0 0.0
      %1837 = vmatmul.mubr.f32.gmra.mrb[0].mxu0 %v1631
      %v1838 = vpop.f32.mrb[0].mxu0
      %v1839 = vadd.f32 %v1565, %v1838
      %v1840 = vpop.f32.mrb[0].mxu0
      %1841 = vmatprep.mubr.f32.mxu0 0.0
      %1842 = vmatmul.mubr.f32.gmra.mrb[0].mxu0 %v1634
      %v1843 = vpop.f32.mrb[0].mxu0
      %v1844 = vadd.f32 %v1565, %v1843
      %v1845 = vpop.f32.mrb[0].mxu0
      %1846 = vmatprep.mubr.f32.mxu0 0.0
      %1847 = vmatmul.mubr.f32.gmra.mrb[0].mxu0 %v1637
      %v1848 = vpop.f32.mrb[0].mxu0
      %v1849 = vadd.f32 %v1565, %v1848
      %v1850 = vpop.f32.mrb[0].mxu0
      %1851 = vmatprep.mubr.f32.mxu0 0.0
      %1852 = vmatmul.mubr.f32.gmra.mrb[0].mxu0 %v1640
      %v1853 = vpop.f32.mrb[0].mxu0
      %v1854 = vadd.f32 %v1565, %v1853
      %v1855 = vpop.f32.mrb[0].mxu0
      %1856 = vmatprep.mubr.f32.mxu0 0.0
      %1857 = vmatmul.mubr.f32.gmra.mrb[0].mxu0 %v1643
      %v1858 = vpop.f32.mrb[0].mxu0
      %v1859 = vadd.f32 %v1565, %v1858
      %v1860 = vpop.f32.mrb[0].mxu0
      %1861 = vmatprep.mubr.f32.mxu0 0.0
      %1862 = vmatmul.mubr.f32.gmra.mrb[0].mxu0 %v1646
      %v1863 = vpop.f32.mrb[0].mxu0
      %v1864 = vadd.f32 %v1565, %v1863
      %v1865 = vpop.f32.mrb[0].mxu0
      %1866 = vmatprep.mubr.f32.mxu0 0.0
      %1867 = vmatmul.mubr.f32.gmra.mrb[0].mxu0 %v1649
      %v1868 = vpop.f32.mrb[0].mxu0
      %v1869 = vadd.f32 %v1565, %v1868
      %v1870 = vpop.f32.mrb[0].mxu0
      %1871 = vmatprep.mubr.f32.mxu0 0.0
      %1872 = vmatmul.mubr.f32.gmra.mrb[0].mxu0 %v1652
      %v1873 = vpop.f32.mrb[0].mxu0
      %v1874 = vadd.f32 %v1565, %v1873
      %v1875 = vpop.f32.mrb[0].mxu0
      %1876 = vmatprep.mubr.f32.mxu0 0.0
      %1877 = vmatmul.mubr.f32.gmra.mrb[0].mxu0 %v1655
      %v1878 = vpop.f32.mrb[0].mxu0
      %v1879 = vadd.f32 %v1565, %v1878
      %v1880 = vpop.f32.mrb[0].mxu0
      %1881 = vmatprep.mubr.f32.mxu0 0.0
      %1882 = vmatmul.mubr.f32.gmra.mrb[0].mxu0 %v1658
      %v1883 = vpop.f32.mrb[0].mxu0
      %v1884 = vadd.f32 %v1565, %v1883
      %v1885 = vpop.f32.mrb[0].mxu0
      %1886 = vmatprep.mubr.f32.mxu0 0.0
      %1887 = vmatmul.mubr.f32.gmra.mrb[0].mxu0 %v1661
      %v1888 = vpop.f32.mrb[0].mxu0
      %v1889 = vadd.f32 %v1565, %v1888
      %v1890 = vpop.f32.mrb[0].mxu0
      %1891 = vdwg.mxu0
      %vm1892 = vcmask 64512
      %1893 = vst.msk [vmem:[#allocation4] sm:$0xff] %vm1892, -inf
      %1894 = vst.msk [vmem:[#allocation4 + $0x8] sm:$0xff] %vm1892, -inf
      %vm1895 = vcmask 58368
      %1896 = vst.msk [vmem:[#allocation4 + $0x10] sm:$0x3] %vm1895, -inf
      %1897 = vst.msk [vmem:[#allocation4 + $0x18] sm:$0xff] %vm1892, -inf
      %1898 = vst.msk [vmem:[#allocation4 + $0x20] sm:$0xff] %vm1892, -inf
      %1899 = vst.msk [vmem:[#allocation4 + $0x28] sm:$0x3] %vm1895, -inf
      %1900 = vst.msk [vmem:[#allocation4 + $0x30] sm:$0xff] %vm1892, -inf
      %1901 = vst.msk [vmem:[#allocation4 + $0x38] sm:$0xff] %vm1892, -inf
      %1902 = vst.msk [vmem:[#allocation4 + $0x40] sm:$0x3] %vm1895, -inf
      %1903 = vst.msk [vmem:[#allocation4 + $0x48] sm:$0xff] %vm1892, -inf
      %1904 = vst.msk [vmem:[#allocation4 + $0x50] sm:$0xff] %vm1892, -inf
      %1905 = vst.msk [vmem:[#allocation4 + $0x58] sm:$0x3] %vm1895, -inf
      %1906 = vst.msk [vmem:[#allocation4 + $0x60] sm:$0xff] %vm1892, -inf
      %1907 = vst.msk [vmem:[#allocation4 + $0x68] sm:$0xff] %vm1892, -inf
      %1908 = vst.msk [vmem:[#allocation4 + $0x70] sm:$0x3] %vm1895, -inf
      %1909 = vst.msk [vmem:[#allocation4 + $0x78] sm:$0xff] %vm1892, -inf
      %1910 = vst.msk [vmem:[#allocation4 + $0x80] sm:$0xff] %vm1892, -inf
      %1911 = vst.msk [vmem:[#allocation4 + $0x88] sm:$0x3] %vm1895, -inf
      %1912 = vst.msk [vmem:[#allocation4 + $0x90] sm:$0xff] %vm1892, -inf
      %1913 = vst.msk [vmem:[#allocation4 + $0x98] sm:$0xff] %vm1892, -inf
      %1914 = vst.msk [vmem:[#allocation4 + $0xa0] sm:$0x3] %vm1895, -inf
      %1915 = vst.msk [vmem:[#allocation4 + $0xa8] sm:$0xff] %vm1892, -inf
      %1916 = vst.msk [vmem:[#allocation4 + $0xb0] sm:$0xff] %vm1892, -inf
      %1917 = vst.msk [vmem:[#allocation4 + $0xb8] sm:$0x3] %vm1895, -inf
      %1918 = vst.msk [vmem:[#allocation4 + $0xc0] sm:$0xff] %vm1892, -inf
      %1919 = vst.msk [vmem:[#allocation4 + $0xc8] sm:$0xff] %vm1892, -inf
      %1920 = vst.msk [vmem:[#allocation4 + $0xd0] sm:$0x3] %vm1895, -inf
      %1921 = vst.msk [vmem:[#allocation4 + $0xd8] sm:$0xff] %vm1892, -inf
      %1922 = vst.msk [vmem:[#allocation4 + $0xe0] sm:$0xff] %vm1892, -inf
      %1923 = vst.msk [vmem:[#allocation4 + $0xe8] sm:$0x3] %vm1895, -inf
      %1924 = vst.msk [vmem:[#allocation4 + $0xf0] sm:$0xff] %vm1892, -inf
      %1925 = vst.msk [vmem:[#allocation4 + $0xf8] sm:$0xff] %vm1892, -inf
      %1926 = vst.msk [vmem:[#allocation4 + $0x100] sm:$0x3] %vm1895, -inf
      %1927 = vst.msk [vmem:[#allocation4 + $0x108] sm:$0xff] %vm1892, -inf
      %1928 = vst.msk [vmem:[#allocation4 + $0x110] sm:$0xff] %vm1892, -inf
      %1929 = vst.msk [vmem:[#allocation4 + $0x118] sm:$0x3] %vm1895, -inf
      %1930 = vst.msk [vmem:[#allocation4 + $0x120] sm:$0xff] %vm1892, -inf
      %1931 = vst.msk [vmem:[#allocation4 + $0x128] sm:$0xff] %vm1892, -inf
      %1932 = vst.msk [vmem:[#allocation4 + $0x130] sm:$0x3] %vm1895, -inf
      %1933 = vst.msk [vmem:[#allocation4 + $0x138] sm:$0xff] %vm1892, -inf
      %1934 = vst.msk [vmem:[#allocation4 + $0x140] sm:$0xff] %vm1892, -inf
      %1935 = vst.msk [vmem:[#allocation4 + $0x148] sm:$0x3] %vm1895, -inf
      %1936 = vst.msk [vmem:[#allocation4 + $0x150] sm:$0xff] %vm1892, -inf
      %1937 = vst.msk [vmem:[#allocation4 + $0x158] sm:$0xff] %vm1892, -inf
      %1938 = vst.msk [vmem:[#allocation4 + $0x160] sm:$0x3] %vm1895, -inf
      %1939 = vst.msk [vmem:[#allocation4 + $0x168] sm:$0xff] %vm1892, -inf
      %1940 = vst.msk [vmem:[#allocation4 + $0x170] sm:$0xff] %vm1892, -inf
      %1941 = vst.msk [vmem:[#allocation4 + $0x178] sm:$0x3] %vm1895, -inf
      %1942 = vst.msk [vmem:[#allocation4 + $0x180] sm:$0xff] %vm1892, -inf
      %1943 = vst.msk [vmem:[#allocation4 + $0x188] sm:$0xff] %vm1892, -inf
      %1944 = vst.msk [vmem:[#allocation4 + $0x190] sm:$0x3] %vm1895, -inf
      %1945 = vst.msk [vmem:[#allocation4 + $0x198] sm:$0xff] %vm1892, -inf
      %1946 = vst.msk [vmem:[#allocation4 + $0x1a0] sm:$0xff] %vm1892, -inf
      %1947 = vst.msk [vmem:[#allocation4 + $0x1a8] sm:$0x3] %vm1895, -inf
      %s1948 = scalar_lea.vmem [#allocation4], 24
      %1949 = vst.msk [vmem:[%s1948 + $0x1] sm:$0xff] %vm1892, %v1734
      %1950 = vst.msk [vmem:[%s1948 + $0x9] sm:$0xff] %vm1892, %v1739
      %1951 = vst.msk [vmem:[%s1948 + $0x19] sm:$0xff] %vm1892, %v1744
      %1952 = vst.msk [vmem:[%s1948 + $0x21] sm:$0xff] %vm1892, %v1749
      %1953 = vst.msk [vmem:[%s1948 + $0x31] sm:$0xff] %vm1892, %v1754
      %1954 = vst.msk [vmem:[%s1948 + $0x39] sm:$0xff] %vm1892, %v1759
      %1955 = vst.msk [vmem:[%s1948 + $0x49] sm:$0xff] %vm1892, %v1764
      %1956 = vst.msk [vmem:[%s1948 + $0x51] sm:$0xff] %vm1892, %v1769
      %1957 = vst.msk [vmem:[%s1948 + $0x61] sm:$0xff] %vm1892, %v1774
      %1958 = vst.msk [vmem:[%s1948 + $0x69] sm:$0xff] %vm1892, %v1779
      %1959 = vst.msk [vmem:[%s1948 + $0x79] sm:$0xff] %vm1892, %v1784
      %1960 = vst.msk [vmem:[%s1948 + $0x81] sm:$0xff] %vm1892, %v1789
      %1961 = vst.msk [vmem:[%s1948 + $0x91] sm:$0xff] %vm1892, %v1794
      %1962 = vst.msk [vmem:[%s1948 + $0x99] sm:$0xff] %vm1892, %v1799
      %1963 = vst.msk [vmem:[%s1948 + $0xa9] sm:$0xff] %vm1892, %v1804
      %1964 = vst.msk [vmem:[%s1948 + $0xb1] sm:$0xff] %vm1892, %v1809
      %1965 = vst.msk [vmem:[%s1948 + $0xc1] sm:$0xff] %vm1892, %v1814
      %1966 = vst.msk [vmem:[%s1948 + $0xc9] sm:$0xff] %vm1892, %v1819
      %1967 = vst.msk [vmem:[%s1948 + $0xd9] sm:$0xff] %vm1892, %v1824
      %1968 = vst.msk [vmem:[%s1948 + $0xe1] sm:$0xff] %vm1892, %v1829
      %1969 = vst.msk [vmem:[%s1948 + $0xf1] sm:$0xff] %vm1892, %v1834
      %1970 = vst.msk [vmem:[%s1948 + $0xf9] sm:$0xff] %vm1892, %v1839
      %1971 = vst.msk [vmem:[%s1948 + $0x109] sm:$0xff] %vm1892, %v1844
      %1972 = vst.msk [vmem:[%s1948 + $0x111] sm:$0xff] %vm1892, %v1849
      %1973 = vst.msk [vmem:[%s1948 + $0x121] sm:$0xff] %vm1892, %v1854
      %1974 = vst.msk [vmem:[%s1948 + $0x129] sm:$0xff] %vm1892, %v1859
      %1975 = vst.msk [vmem:[%s1948 + $0x139] sm:$0xff] %vm1892, %v1864
      %1976 = vst.msk [vmem:[%s1948 + $0x141] sm:$0xff] %vm1892, %v1869
      %1977 = vst.msk [vmem:[%s1948 + $0x151] sm:$0xff] %vm1892, %v1874
      %1978 = vst.msk [vmem:[%s1948 + $0x159] sm:$0xff] %vm1892, %v1879
      %1979 = vst.msk [vmem:[%s1948 + $0x169] sm:$0xff] %vm1892, %v1884
      %1980 = vst.msk [vmem:[%s1948 + $0x171] sm:$0xff] %vm1892, %v1889
      %v1981 = vld [vmem:[#allocation4] sm:$0xff]
      %v1982 = vld [vmem:[#allocation4 + $0x8] sm:$0xff]
      %v1983 = vld [vmem:[#allocation4 + $0x10] sm:$0x3]
      %v1984 = vld [vmem:[#allocation4 + $0x30] sm:$0xff]
      %v1985 = vld [vmem:[#allocation4 + $0x38] sm:$0xff]
      %v1986 = vld [vmem:[#allocation4 + $0x40] sm:$0x3]
      %v1987 = vld [vmem:[#allocation4 + $0x60] sm:$0xff]
      %v1988 = vld [vmem:[#allocation4 + $0x68] sm:$0xff]
      %v1989 = vld [vmem:[#allocation4 + $0x70] sm:$0x3]
      %v1990 = vld [vmem:[#allocation4 + $0x90] sm:$0xff]
      %v1991 = vld [vmem:[#allocation4 + $0x98] sm:$0xff]
      %v1992 = vld [vmem:[#allocation4 + $0xa0] sm:$0x3]
      %v1993 = vld [vmem:[#allocation4 + $0xc0] sm:$0xff]
      %v1994 = vld [vmem:[#allocation4 + $0xc8] sm:$0xff]
      %v1995 = vld [vmem:[#allocation4 + $0xd0] sm:$0x3]
      %v1996 = vld [vmem:[#allocation4 + $0xf0] sm:$0xff]
      %v1997 = vld [vmem:[#allocation4 + $0xf8] sm:$0xff]
      %v1998 = vld [vmem:[#allocation4 + $0x100] sm:$0x3]
      %v1999 = vld [vmem:[#allocation4 + $0x120] sm:$0xff]
      %v2000 = vld [vmem:[#allocation4 + $0x128] sm:$0xff]
      %v2001 = vld [vmem:[#allocation4 + $0x130] sm:$0x3]
      %v2002 = vld [vmem:[#allocation4 + $0x150] sm:$0xff]
      %v2003 = vld [vmem:[#allocation4 + $0x158] sm:$0xff]
      %v2004 = vld [vmem:[#allocation4 + $0x160] sm:$0x3]
      %v2005 = vld [vmem:[#allocation4 + $0x180] sm:$0xff]
      %v2006 = vld [vmem:[#allocation4 + $0x188] sm:$0xff]
      %v2007 = vld [vmem:[#allocation4 + $0x190] sm:$0x3]
      %v2008 = vld [vmem:[%s1948] sm:$0xff]
      %v2009 = vld [vmem:[%s1948 + $0x8] sm:$0xff]
      %v2010 = vld [vmem:[%s1948 + $0x10] sm:$0x3]
      %v2011 = vld [vmem:[%s1948 + $0x30] sm:$0xff]
      %v2012 = vld [vmem:[%s1948 + $0x38] sm:$0xff]
      %v2013 = vld [vmem:[%s1948 + $0x40] sm:$0x3]
      %v2014 = vld [vmem:[%s1948 + $0x60] sm:$0xff]
      %v2015 = vld [vmem:[%s1948 + $0x68] sm:$0xff]
      %v2016 = vld [vmem:[%s1948 + $0x70] sm:$0x3]
      %v2017 = vld [vmem:[%s1948 + $0x90] sm:$0xff]
      %v2018 = vld [vmem:[%s1948 + $0x98] sm:$0xff]
      %v2019 = vld [vmem:[%s1948 + $0xa0] sm:$0x3]
      %v2020 = vld [vmem:[%s1948 + $0xc0] sm:$0xff]
      %v2021 = vld [vmem:[%s1948 + $0xc8] sm:$0xff]
      %v2022 = vld [vmem:[%s1948 + $0xd0] sm:$0x3]
      %v2023 = vld [vmem:[%s1948 + $0xf0] sm:$0xff]
      %v2024 = vld [vmem:[%s1948 + $0xf8] sm:$0xff]
      %v2025 = vld [vmem:[%s1948 + $0x100] sm:$0x3]
      %v2026 = vld [vmem:[%s1948 + $0x120] sm:$0xff]
      %v2027 = vld [vmem:[%s1948 + $0x128] sm:$0xff]
      %v2028 = vld [vmem:[%s1948 + $0x130] sm:$0x3]
      %v2029 = vld [vmem:[%s1948 + $0x150] sm:$0xff]
      %v2030 = vld [vmem:[%s1948 + $0x158] sm:$0xff]
      %v2031 = vld [vmem:[%s1948 + $0x160] sm:$0x3]
      %v2032 = vmax.f32 %v1981, %v2008
      %v2033 = vmax.f32 %v1982, %v2009
      %v2034 = vmax.f32 %v1983, %v2010
      %v2035 = vmax.f32 %v1984, %v2011
      %v2036 = vmax.f32 %v1985, %v2012
      %v2037 = vmax.f32 %v1986, %v2013
      %v2038 = vmax.f32 %v1987, %v2014
      %v2039 = vmax.f32 %v1988, %v2015
      %v2040 = vmax.f32 %v1989, %v2016
      %v2041 = vmax.f32 %v1990, %v2017
      %v2042 = vmax.f32 %v1991, %v2018
      %v2043 = vmax.f32 %v1992, %v2019
      %v2044 = vmax.f32 %v1993, %v2020
      %v2045 = vmax.f32 %v1994, %v2021
      %v2046 = vmax.f32 %v1995, %v2022
      %v2047 = vmax.f32 %v1996, %v2023
      %v2048 = vmax.f32 %v1997, %v2024
      %v2049 = vmax.f32 %v1998, %v2025
      %v2050 = vmax.f32 %v1999, %v2026
      %v2051 = vmax.f32 %v2000, %v2027
      %v2052 = vmax.f32 %v2001, %v2028
      %v2053 = vmax.f32 %v2002, %v2029
      %v2054 = vmax.f32 %v2003, %v2030
      %v2055 = vmax.f32 %v2004, %v2031
      %v2056 = vmax.f32 %v2032, %v1984
      %v2057 = vmax.f32 %v2033, %v1985
      %v2058 = vmax.f32 %v2034, %v1986
      %v2059 = vmax.f32 %v2035, %v1987
      %v2060 = vmax.f32 %v2036, %v1988
      %v2061 = vmax.f32 %v2037, %v1989
      %v2062 = vmax.f32 %v2038, %v1990
      %v2063 = vmax.f32 %v2039, %v1991
      %v2064 = vmax.f32 %v2040, %v1992
      %v2065 = vmax.f32 %v2041, %v1993
      %v2066 = vmax.f32 %v2042, %v1994
      %v2067 = vmax.f32 %v2043, %v1995
      %v2068 = vmax.f32 %v2044, %v1996
      %v2069 = vmax.f32 %v2045, %v1997
      %v2070 = vmax.f32 %v2046, %v1998
      %v2071 = vmax.f32 %v2047, %v1999
      %v2072 = vmax.f32 %v2048, %v2000
      %v2073 = vmax.f32 %v2049, %v2001
      %v2074 = vmax.f32 %v2050, %v2002
      %v2075 = vmax.f32 %v2051, %v2003
      %v2076 = vmax.f32 %v2052, %v2004
      %v2077 = vmax.f32 %v2053, %v2005
      %v2078 = vmax.f32 %v2054, %v2006
      %v2079 = vmax.f32 %v2055, %v2007
      %2080 = vst.msk [vmem:[#allocation5] sm:$0xff] %vm1892, %v2056
      %2081 = vst.msk [vmem:[#allocation5 + $0x8] sm:$0xff] %vm1892, %v2057
      %2082 = vst.msk [vmem:[#allocation5 + $0x10] sm:$0x3] %vm1895, %v2058
      %2083 = vst.msk [vmem:[#allocation5 + $0x18] sm:$0xff] %vm1892, %v2059
      %2084 = vst.msk [vmem:[#allocation5 + $0x20] sm:$0xff] %vm1892, %v2060
      %2085 = vst.msk [vmem:[#allocation5 + $0x28] sm:$0x3] %vm1895, %v2061
      %2086 = vst.msk [vmem:[#allocation5 + $0x30] sm:$0xff] %vm1892, %v2062
      %2087 = vst.msk [vmem:[#allocation5 + $0x38] sm:$0xff] %vm1892, %v2063
      %2088 = vst.msk [vmem:[#allocation5 + $0x40] sm:$0x3] %vm1895, %v2064
      %2089 = vst.msk [vmem:[#allocation5 + $0x48] sm:$0xff] %vm1892, %v2065
      %2090 = vst.msk [vmem:[#allocation5 + $0x50] sm:$0xff] %vm1892, %v2066
      %2091 = vst.msk [vmem:[#allocation5 + $0x58] sm:$0x3] %vm1895, %v2067
      %2092 = vst.msk [vmem:[#allocation5 + $0x60] sm:$0xff] %vm1892, %v2068
      %2093 = vst.msk [vmem:[#allocation5 + $0x68] sm:$0xff] %vm1892, %v2069
      %2094 = vst.msk [vmem:[#allocation5 + $0x70] sm:$0x3] %vm1895, %v2070
      %2095 = vst.msk [vmem:[#allocation5 + $0x78] sm:$0xff] %vm1892, %v2071
      %2096 = vst.msk [vmem:[#allocation5 + $0x80] sm:$0xff] %vm1892, %v2072
      %2097 = vst.msk [vmem:[#allocation5 + $0x88] sm:$0x3] %vm1895, %v2073
      %2098 = vst.msk [vmem:[#allocation5 + $0x90] sm:$0xff] %vm1892, %v2074
      %2099 = vst.msk [vmem:[#allocation5 + $0x98] sm:$0xff] %vm1892, %v2075
      %2100 = vst.msk [vmem:[#allocation5 + $0xa0] sm:$0x3] %vm1895, %v2076
      %2101 = vst.msk [vmem:[#allocation5 + $0xa8] sm:$0xff] %vm1892, %v2077
      %2102 = vst.msk [vmem:[#allocation5 + $0xb0] sm:$0xff] %vm1892, %v2078
      %2103 = vst.msk [vmem:[#allocation5 + $0xb8] sm:$0x3] %vm1895, %v2079
      %v2104 = vld [vmem:[#allocation5] ss:$2 sm:$0xff]
      %s2105 = scalar_lea.vmem [#allocation5], 16
      %v2106 = vld [vmem:[%s2105] ss:$2 sm:$0x1]
      %s2107 = scalar_lea.vmem [#allocation5], 24
      %v2108 = vld [vmem:[%s2107] ss:$2 sm:$0xff]
      %s2109 = scalar_lea.vmem [#allocation5], 40
      %v2110 = vld [vmem:[%s2109] ss:$2 sm:$0x1]
      %s2111 = scalar_lea.vmem [#allocation5], 48
      %v2112 = vld [vmem:[%s2111] ss:$2 sm:$0xff]
      %s2113 = scalar_lea.vmem [#allocation5], 64
      %v2114 = vld [vmem:[%s2113] ss:$2 sm:$0x1]
      %s2115 = scalar_lea.vmem [#allocation5], 72
      %v2116 = vld [vmem:[%s2115] ss:$2 sm:$0xff]
      %s2117 = scalar_lea.vmem [#allocation5], 88
      %v2118 = vld [vmem:[%s2117] ss:$2 sm:$0x1]
      %s2119 = scalar_lea.vmem [#allocation5], 96
      %v2120 = vld [vmem:[%s2119] ss:$2 sm:$0xff]
      %s2121 = scalar_lea.vmem [#allocation5], 112
      %v2122 = vld [vmem:[%s2121] ss:$2 sm:$0x1]
      %s2123 = scalar_lea.vmem [#allocation5], 120
      %v2124 = vld [vmem:[%s2123] ss:$2 sm:$0xff]
      %s2125 = scalar_lea.vmem [#allocation5], 136
      %v2126 = vld [vmem:[%s2125] ss:$2 sm:$0x1]
      %s2127 = scalar_lea.vmem [#allocation5], 144
      %v2128 = vld [vmem:[%s2127] ss:$2 sm:$0xff]
      %s2129 = scalar_lea.vmem [#allocation5], 160
      %v2130 = vld [vmem:[%s2129] ss:$2 sm:$0x1]
      %s2131 = scalar_lea.vmem [#allocation5], 168
      %v2132 = vld [vmem:[%s2131] ss:$2 sm:$0xff]
      %s2133 = scalar_lea.vmem [#allocation5], 184
      %v2134 = vld [vmem:[%s2133] ss:$2 sm:$0x1]
      %s2135 = scalar_lea.vmem [#allocation5], 1
      %v2136 = vld [vmem:[%s2135] ss:$2 sm:$0xff]
      %s2137 = scalar_lea.vmem [#allocation5], 25
      %v2138 = vld [vmem:[%s2137] ss:$2 sm:$0xff]
      %s2139 = scalar_lea.vmem [#allocation5], 49
      %v2140 = vld [vmem:[%s2139] ss:$2 sm:$0xff]
      %s2141 = scalar_lea.vmem [#allocation5], 73
      %v2142 = vld [vmem:[%s2141] ss:$2 sm:$0xff]
      %s2143 = scalar_lea.vmem [#allocation5], 97
      %v2144 = vld [vmem:[%s2143] ss:$2 sm:$0xff]
      %s2145 = scalar_lea.vmem [#allocation5], 121
      %v2146 = vld [vmem:[%s2145] ss:$2 sm:$0xff]
      %s2147 = scalar_lea.vmem [#allocation5], 145
      %v2148 = vld [vmem:[%s2147] ss:$2 sm:$0xff]
      %s2149 = scalar_lea.vmem [#allocation5], 169
      %v2150 = vld [vmem:[%s2149] ss:$2 sm:$0xff]
      %v2151 = vmax.f32 %v2104, %v2136
      %v2152 = vmax.f32 %v2108, %v2138
      %v2153 = vmax.f32 %v2112, %v2140
      %v2154 = vmax.f32 %v2116, %v2142
      %v2155 = vmax.f32 %v2120, %v2144
      %v2156 = vmax.f32 %v2124, %v2146
      %v2157 = vmax.f32 %v2128, %v2148
      %v2158 = vmax.f32 %v2132, %v2150
      %vm2175 = vcmask 1046528
      %v2176 = vrot.slane %v2104, 1
      %v2177 = vrot.slane %v2106, 1
      %v2178 = vsel %vm2175, %v2176, %v2177
      %v2179 = vrot.slane %v2108, 1
      %v2180 = vrot.slane %v2110, 1
      %v2181 = vsel %vm2175, %v2179, %v2180
      %v2182 = vrot.slane %v2112, 1
      %v2183 = vrot.slane %v2114, 1
      %v2184 = vsel %vm2175, %v2182, %v2183
      %v2185 = vrot.slane %v2116, 1
      %v2186 = vrot.slane %v2118, 1
      %v2187 = vsel %vm2175, %v2185, %v2186
      %v2188 = vrot.slane %v2120, 1
      %v2189 = vrot.slane %v2122, 1
      %v2190 = vsel %vm2175, %v2188, %v2189
      %v2191 = vrot.slane %v2124, 1
      %v2192 = vrot.slane %v2126, 1
      %v2193 = vsel %vm2175, %v2191, %v2192
      %v2194 = vrot.slane %v2128, 1
      %v2195 = vrot.slane %v2130, 1
      %v2196 = vsel %vm2175, %v2194, %v2195
      %v2197 = vrot.slane %v2132, 1
      %v2198 = vrot.slane %v2134, 1
      %v2199 = vsel %vm2175, %v2197, %v2198
      %v2208 = vmax.f32 %v2151, %v2178
      %v2209 = vmax.f32 %v2152, %v2181
      %v2210 = vmax.f32 %v2153, %v2184
      %v2211 = vmax.f32 %v2154, %v2187
      %v2212 = vmax.f32 %v2155, %v2190
      %v2213 = vmax.f32 %v2156, %v2193
      %v2214 = vmax.f32 %v2157, %v2196
      %v2215 = vmax.f32 %v2158, %v2199
      %v2216 = vmax.f32 %v2208, 0.0
      %v2217 = vmax.f32 %v2209, 0.0
      %v2218 = vmax.f32 %v2210, 0.0
      %v2219 = vmax.f32 %v2211, 0.0
      %v2220 = vmax.f32 %v2212, 0.0
      %v2221 = vmax.f32 %v2213, 0.0
      %v2222 = vmax.f32 %v2214, 0.0
      %v2223 = vmax.f32 %v2215, 0.0
      %s2224 = scalar_lea.vmem [#allocation3], 8
      %vm2225 = vcmask 63488
      %2226 = vst.msk [vmem:[%s2224 + $0x1] sm:$0x7f] %vm2225, %v2216
      %2227 = vst.msk [vmem:[%s2224 + $0x9] sm:$0x7f] %vm2225, %v2217
      %2228 = vst.msk [vmem:[%s2224 + $0x11] sm:$0x7f] %vm2225, %v2218
      %2229 = vst.msk [vmem:[%s2224 + $0x19] sm:$0x7f] %vm2225, %v2219
      %2230 = vst.msk [vmem:[%s2224 + $0x21] sm:$0x7f] %vm2225, %v2220
      %2231 = vst.msk [vmem:[%s2224 + $0x29] sm:$0x7f] %vm2225, %v2221
      %2232 = vst.msk [vmem:[%s2224 + $0x31] sm:$0x7f] %vm2225, %v2222
      %2240 = vrot.lane.b32.xlu0 %v2216, 8
      %v2241 = vpop.permute.xlu0 %2240
      %2242 = vrot.lane.b32.xlu0 %v2217, 8
      %v2243 = vpop.permute.xlu0 %2242
      %2244 = vrot.lane.b32.xlu0 %v2218, 8
      %v2245 = vpop.permute.xlu0 %2244
      %2246 = vrot.lane.b32.xlu0 %v2219, 8
      %v2247 = vpop.permute.xlu0 %2246
      %2248 = vrot.lane.b32.xlu0 %v2220, 8
      %v2249 = vpop.permute.xlu0 %2248
      %2250 = vrot.lane.b32.xlu0 %v2221, 8
      %v2251 = vpop.permute.xlu0 %2250
      %2252 = vrot.lane.b32.xlu0 %v2222, 8
      %v2253 = vpop.permute.xlu0 %2252
      %vm2261 = vcmask 130112
      %2262 = vst.msk [vmem:[%s2224] sm:$0xff] %vm2261, %v2241
      %2263 = vst.msk [vmem:[%s2224 + $0x8] sm:$0xff] %vm2261, %v2243
      %2264 = vst.msk [vmem:[%s2224 + $0x10] sm:$0xff] %vm2261, %v2245
      %2265 = vst.msk [vmem:[%s2224 + $0x18] sm:$0xff] %vm2261, %v2247
      %2266 = vst.msk [vmem:[%s2224 + $0x20] sm:$0xff] %vm2261, %v2249
      %2267 = vst.msk [vmem:[%s2224 + $0x28] sm:$0xff] %vm2261, %v2251
      %2268 = vst.msk [vmem:[%s2224 + $0x30] sm:$0xff] %vm2261, %v2253
      %2269 = vrot.lane.b32.xlu0 %v2216, 16
      %v2270 = vpop.permute.xlu0 %2269
      %2271 = vrot.lane.b32.xlu0 %v2217, 16
      %v2272 = vpop.permute.xlu0 %2271
      %2273 = vrot.lane.b32.xlu0 %v2218, 16
      %v2274 = vpop.permute.xlu0 %2273
      %2275 = vrot.lane.b32.xlu0 %v2219, 16
      %v2276 = vpop.permute.xlu0 %2275
      %2277 = vrot.lane.b32.xlu0 %v2220, 16
      %v2278 = vpop.permute.xlu0 %2277
      %2279 = vrot.lane.b32.xlu0 %v2221, 16
      %v2280 = vpop.permute.xlu0 %2279
      %2281 = vrot.lane.b32.xlu0 %v2222, 16
      %v2282 = vpop.permute.xlu0 %2281
      %vm2290 = vcmask 195713
      %2291 = vst.msk [vmem:[%s2224 - $0x1] sm:$0xfe] %vm2290, %v2270
      %2292 = vst.msk [vmem:[%s2224 + $0x7] sm:$0xfe] %vm2290, %v2272
      %2293 = vst.msk [vmem:[%s2224 + $0xf] sm:$0xfe] %vm2290, %v2274
      %2294 = vst.msk [vmem:[%s2224 + $0x17] sm:$0xfe] %vm2290, %v2276
      %2295 = vst.msk [vmem:[%s2224 + $0x1f] sm:$0xfe] %vm2290, %v2278
      %2296 = vst.msk [vmem:[%s2224 + $0x27] sm:$0xfe] %vm2290, %v2280
      %2297 = vst.msk [vmem:[%s2224 + $0x2f] sm:$0xfe] %vm2290, %v2282
      %2299 = vrot.lane.b32.xlu0 %v2216, 24
      %v2300 = vpop.permute.xlu0 %2299
      %2301 = vrot.lane.b32.xlu0 %v2217, 24
      %v2302 = vpop.permute.xlu0 %2301
      %2303 = vrot.lane.b32.xlu0 %v2218, 24
      %v2304 = vpop.permute.xlu0 %2303
      %2305 = vrot.lane.b32.xlu0 %v2219, 24
      %v2306 = vpop.permute.xlu0 %2305
      %2307 = vrot.lane.b32.xlu0 %v2220, 24
      %v2308 = vpop.permute.xlu0 %2307
      %2309 = vrot.lane.b32.xlu0 %v2221, 24
      %v2310 = vpop.permute.xlu0 %2309
      %2311 = vrot.lane.b32.xlu0 %v2222, 24
      %v2312 = vpop.permute.xlu0 %2311
      %2313 = vrot.lane.b32.xlu0 %v2223, 24
      %v2314 = vpop.permute.xlu0 %2313
      %vm2323 = vcmask 260288
      %2324 = vst.msk [vmem:[#allocation3 + $0x1] sm:$0x7f] %vm2323, %v2300
      %2325 = vst.msk [vmem:[#allocation3 + $0x9] sm:$0x7f] %vm2323, %v2302
      %2326 = vst.msk [vmem:[#allocation3 + $0x11] sm:$0x7f] %vm2323, %v2304
      %2327 = vst.msk [vmem:[#allocation3 + $0x19] sm:$0x7f] %vm2323, %v2306
      %2328 = vst.msk [vmem:[#allocation3 + $0x21] sm:$0x7f] %vm2323, %v2308
      %2329 = vst.msk [vmem:[#allocation3 + $0x29] sm:$0x7f] %vm2323, %v2310
      %2330 = vst.msk [vmem:[#allocation3 + $0x31] sm:$0x7f] %vm2323, %v2312
      %2331 = vst.msk [vmem:[#allocation3 + $0x39] sm:$0x7f] %vm2323, %v2314
      %2332 = vrot.lane.b32.xlu0 %v2216, 32
      %v2333 = vpop.permute.xlu0 %2332
      %2334 = vrot.lane.b32.xlu0 %v2217, 32
      %v2335 = vpop.permute.xlu0 %2334
      %2336 = vrot.lane.b32.xlu0 %v2218, 32
      %v2337 = vpop.permute.xlu0 %2336
      %2338 = vrot.lane.b32.xlu0 %v2219, 32
      %v2339 = vpop.permute.xlu0 %2338
      %2340 = vrot.lane.b32.xlu0 %v2220, 32
      %v2341 = vpop.permute.xlu0 %2340
      %2342 = vrot.lane.b32.xlu0 %v2221, 32
      %v2343 = vpop.permute.xlu0 %2342
      %2344 = vrot.lane.b32.xlu0 %v2222, 32
      %v2345 = vpop.permute.xlu0 %2344
      %2346 = vrot.lane.b32.xlu0 %v2223, 32
      %v2347 = vpop.permute.xlu0 %2346
      %vm2356 = vcmask 326912
      %2357 = vst.msk [vmem:[#allocation3] sm:$0xff] %vm2356, %v2333
      %2358 = vst.msk [vmem:[#allocation3 + $0x8] sm:$0xff] %vm2356, %v2335
      %2359 = vst.msk [vmem:[#allocation3 + $0x10] sm:$0xff] %vm2356, %v2337
      %2360 = vst.msk [vmem:[#allocation3 + $0x18] sm:$0xff] %vm2356, %v2339
      %2361 = vst.msk [vmem:[#allocation3 + $0x20] sm:$0xff] %vm2356, %v2341
      %2362 = vst.msk [vmem:[#allocation3 + $0x28] sm:$0xff] %vm2356, %v2343
      %2363 = vst.msk [vmem:[#allocation3 + $0x30] sm:$0xff] %vm2356, %v2345
      %2364 = vst.msk [vmem:[#allocation3 + $0x38] sm:$0xff] %vm2356, %v2347
      %2365 = vrot.lane.b32.xlu0 %v2216, 40
      %v2366 = vpop.permute.xlu0 %2365
      %2367 = vrot.lane.b32.xlu0 %v2217, 40
      %v2368 = vpop.permute.xlu0 %2367
      %2369 = vrot.lane.b32.xlu0 %v2218, 40
      %v2370 = vpop.permute.xlu0 %2369
      %2371 = vrot.lane.b32.xlu0 %v2219, 40
      %v2372 = vpop.permute.xlu0 %2371
      %2373 = vrot.lane.b32.xlu0 %v2220, 40
      %v2374 = vpop.permute.xlu0 %2373
      %2375 = vrot.lane.b32.xlu0 %v2221, 40
      %v2376 = vpop.permute.xlu0 %2375
      %2377 = vrot.lane.b32.xlu0 %v2222, 40
      %v2378 = vpop.permute.xlu0 %2377
      %2379 = vrot.lane.b32.xlu0 %v2223, 40
      %v2380 = vpop.permute.xlu0 %2379
      %vm2389 = vcmask 392513
      %2390 = vst.msk [vmem:[#allocation3 - $0x1] sm:$0xfe] %vm2389, %v2366
      %2391 = vst.msk [vmem:[#allocation3 + $0x7] sm:$0xfe] %vm2389, %v2368
      %2392 = vst.msk [vmem:[#allocation3 + $0xf] sm:$0xfe] %vm2389, %v2370
      %2393 = vst.msk [vmem:[#allocation3 + $0x17] sm:$0xfe] %vm2389, %v2372
      %2394 = vst.msk [vmem:[#allocation3 + $0x1f] sm:$0xfe] %vm2389, %v2374
      %2395 = vst.msk [vmem:[#allocation3 + $0x27] sm:$0xfe] %vm2389, %v2376
      %2396 = vst.msk [vmem:[#allocation3 + $0x2f] sm:$0xfe] %vm2389, %v2378
      %2397 = vst.msk [vmem:[#allocation3 + $0x37] sm:$0xfe] %vm2389, %v2380
      %2398 = vrot.lane.b32.xlu0 %v2217, 48
      %v2399 = vpop.permute.xlu0 %2398
      %2400 = vrot.lane.b32.xlu0 %v2218, 48
      %v2401 = vpop.permute.xlu0 %2400
      %2402 = vrot.lane.b32.xlu0 %v2219, 48
      %v2403 = vpop.permute.xlu0 %2402
      %2404 = vrot.lane.b32.xlu0 %v2220, 48
      %v2405 = vpop.permute.xlu0 %2404
      %2406 = vrot.lane.b32.xlu0 %v2221, 48
      %v2407 = vpop.permute.xlu0 %2406
      %2408 = vrot.lane.b32.xlu0 %v2222, 48
      %v2409 = vpop.permute.xlu0 %2408
      %2410 = vrot.lane.b32.xlu0 %v2223, 48
      %v2411 = vpop.permute.xlu0 %2410
      %vm2419 = vcmask 457088
      %2420 = vst.msk [vmem:[#allocation3 + $0x1] sm:$0x7f] %vm2419, %v2399
      %2421 = vst.msk [vmem:[#allocation3 + $0x9] sm:$0x7f] %vm2419, %v2401
      %2422 = vst.msk [vmem:[#allocation3 + $0x11] sm:$0x7f] %vm2419, %v2403
      %2423 = vst.msk [vmem:[#allocation3 + $0x19] sm:$0x7f] %vm2419, %v2405
      %2424 = vst.msk [vmem:[#allocation3 + $0x21] sm:$0x7f] %vm2419, %v2407
      %2425 = vst.msk [vmem:[#allocation3 + $0x29] sm:$0x7f] %vm2419, %v2409
      %2426 = vst.msk [vmem:[#allocation3 + $0x31] sm:$0x7f] %vm2419, %v2411
      %2427 = vrot.lane.b32.xlu0 %v2217, 56
      %v2428 = vpop.permute.xlu0 %2427
      %2429 = vrot.lane.b32.xlu0 %v2218, 56
      %v2430 = vpop.permute.xlu0 %2429
      %2431 = vrot.lane.b32.xlu0 %v2219, 56
      %v2432 = vpop.permute.xlu0 %2431
      %2433 = vrot.lane.b32.xlu0 %v2220, 56
      %v2434 = vpop.permute.xlu0 %2433
      %2435 = vrot.lane.b32.xlu0 %v2221, 56
      %v2436 = vpop.permute.xlu0 %2435
      %2437 = vrot.lane.b32.xlu0 %v2222, 56
      %v2438 = vpop.permute.xlu0 %2437
      %2439 = vrot.lane.b32.xlu0 %v2223, 56
      %v2440 = vpop.permute.xlu0 %2439
      %vm2448 = vcmask 523712
      %2449 = vst.msk [vmem:[#allocation3] sm:$0xff] %vm2448, %v2428
      %2450 = vst.msk [vmem:[#allocation3 + $0x8] sm:$0xff] %vm2448, %v2430
      %2451 = vst.msk [vmem:[#allocation3 + $0x10] sm:$0xff] %vm2448, %v2432
      %2452 = vst.msk [vmem:[#allocation3 + $0x18] sm:$0xff] %vm2448, %v2434
      %2453 = vst.msk [vmem:[#allocation3 + $0x20] sm:$0xff] %vm2448, %v2436
      %2454 = vst.msk [vmem:[#allocation3 + $0x28] sm:$0xff] %vm2448, %v2438
      %2455 = vst.msk [vmem:[#allocation3 + $0x30] sm:$0xff] %vm2448, %v2440
      %2456 = vrot.lane.b32.xlu0 %v2217, 64
      %v2457 = vpop.permute.xlu0 %2456
      %2458 = vrot.lane.b32.xlu0 %v2218, 64
      %v2459 = vpop.permute.xlu0 %2458
      %2460 = vrot.lane.b32.xlu0 %v2219, 64
      %v2461 = vpop.permute.xlu0 %2460
      %2462 = vrot.lane.b32.xlu0 %v2220, 64
      %v2463 = vpop.permute.xlu0 %2462
      %2464 = vrot.lane.b32.xlu0 %v2221, 64
      %v2465 = vpop.permute.xlu0 %2464
      %2466 = vrot.lane.b32.xlu0 %v2222, 64
      %v2467 = vpop.permute.xlu0 %2466
      %2468 = vrot.lane.b32.xlu0 %v2223, 64
      %v2469 = vpop.permute.xlu0 %2468
      %vm2477 = vcmask 589313
      %2478 = vst.msk [vmem:[#allocation3 - $0x1] sm:$0xfe] %vm2477, %v2457
      %2479 = vst.msk [vmem:[#allocation3 + $0x7] sm:$0xfe] %vm2477, %v2459
      %2480 = vst.msk [vmem:[#allocation3 + $0xf] sm:$0xfe] %vm2477, %v2461
      %2481 = vst.msk [vmem:[#allocation3 + $0x17] sm:$0xfe] %vm2477, %v2463
      %2482 = vst.msk [vmem:[#allocation3 + $0x1f] sm:$0xfe] %vm2477, %v2465
      %2483 = vst.msk [vmem:[#allocation3 + $0x27] sm:$0xfe] %vm2477, %v2467
      %2484 = vst.msk [vmem:[#allocation3 + $0x2f] sm:$0xfe] %vm2477, %v2469
      %v2485 = vld [vmem:[#allocation3] sm:$0xff]
      %v2486 = vld [vmem:[#allocation3 + $0x8] sm:$0xff]
      %v2487 = vld [vmem:[#allocation3 + $0x10] sm:$0xff]
      %v2488 = vld [vmem:[#allocation3 + $0x18] sm:$0xff]
      %v2489 = vld [vmem:[#allocation3 + $0x20] sm:$0xff]
      %v2490 = vld [vmem:[#allocation3 + $0x28] sm:$0xff]
      %v2491 = vld [vmem:[#allocation3 + $0x30] sm:$0xff]
      %v2492 = vld [vmem:[#allocation3 + $0x38] sm:$0xff]
      %v2493 = vld [vmem:[%s3] sm:$0xff]
      %v2494 = vld [vmem:[%s3 + $0x8] sm:$0xff]
      %v2495 = vld [vmem:[%s3 + $0x10] sm:$0xff]
      %v2496 = vld [vmem:[%s3 + $0x18] sm:$0xff]
      %v2497 = vld [vmem:[%s3 + $0x20] sm:$0xff]
      %v2498 = vld [vmem:[%s3 + $0x28] sm:$0xff]
      %v2499 = vld [vmem:[%s3 + $0x30] sm:$0xff]
      %v2500 = vld [vmem:[%s3 + $0x38] sm:$0xff]
      %v2501 = vld [vmem:[%s3 + $0x40] sm:$0xff]
      %v2502 = vld [vmem:[%s4] sm:$0x1]
      %v2504 = vlaneseq
      %v2505 = vshrl.u32 %v2504, 7
      %v2506 = vsub.s32 0, %v2505
      %v2507 = vrot.slane %v2502, %v2506
      %v2510 = vsel %vm420, %v2485, 0
      %v2513 = vsel %vm420, %v2486, 0
      %v2516 = vsel %vm420, %v2487, 0
      %v2519 = vsel %vm420, %v2488, 0
      %v2522 = vsel %vm420, %v2489, 0
      %v2525 = vsel %vm420, %v2490, 0
      %v2528 = vsel %vm420, %v2491, 0
      %v2531 = vsel %vm420, %v2492, 0
      %2533 = vmatprep.subr.mxu0 0.0
      %2534 = vmatpush1.msra.mxu0 %v2493
      %2535 = vmatprep.subr.mxu0 0.0
      %2536 = vmatpush1.msra.mxu0 %v2494
      %2537 = vmatprep.subr.mxu0 0.0
      %2538 = vmatpush1.msra.mxu0 %v2495
      %2539 = vmatprep.subr.mxu0 0.0
      %2540 = vmatpush1.msra.mxu0 %v2496
      %2541 = vmatprep.subr.mxu0 0.0
      %2542 = vmatpush1.msra.mxu0 %v2497
      %2543 = vmatprep.subr.mxu0 0.0
      %2544 = vmatpush1.msra.mxu0 %v2498
      %2545 = vmatprep.subr.mxu0 0.0
      %2546 = vmatpush1.msra.mxu0 %v2499
      %2547 = vmatprep.subr.mxu0 0.0
      %2548 = vmatpush1.msra.mxu0 %v2500
      %2549 = vmatprep.subr.mxu0 0.0
      %2550 = vmatpush1.msra.mxu0 %v2501
      %2551 = vmatprep.subr.mxu0 0.0
      %2552 = vmatpush1.msra.mxu0 0.0
      %2553 = vmatprep.subr.mxu0 0.0
      %2554 = vmatpush1.msra.mxu0 0.0
      %2555 = vmatprep.subr.mxu0 0.0
      %2556 = vmatpush1.msra.mxu0 0.0
      %2557 = vmatprep.subr.mxu0 0.0
      %2558 = vmatpush1.msra.mxu0 0.0
      %2559 = vmatprep.subr.mxu0 0.0
      %2560 = vmatpush1.msra.mxu0 0.0
      %2561 = vmatprep.subr.mxu0 0.0
      %2562 = vmatpush1.msra.mxu0 0.0
      %2563 = vmatprep.subr.mxu0 0.0
      %2564 = vmatpush1.msra.mxu0 0.0
      %2565 = vmatprep.subr.mxu0 0.0
      %2566 = vmatpush1.msra.mxu0 0.0
      %2567 = vmatprep.subr.mxu0 0.0
      %2568 = vmatpush1.msra.mxu0 0.0
      %2569 = vmatprep.subr.mxu0 0.0
      %2570 = vmatpush1.msra.mxu0 0.0
      %2571 = vmatprep.subr.mxu0 0.0
      %2572 = vmatpush1.msra.mxu0 0.0
      %2573 = vmatprep.subr.mxu0 0.0
      %2574 = vmatpush1.msra.mxu0 0.0
      %2575 = vmatprep.subr.mxu0 0.0
      %2576 = vmatpush1.msra.mxu0 0.0
      %2577 = vmatprep.subr.mxu0 0.0
      %2578 = vmatpush1.msra.mxu0 0.0
      %2579 = vmatprep.subr.mxu0 0.0
      %2580 = vmatpush1.msra.mxu0 0.0
      %2581 = vmatprep.subr.mxu0 0.0
      %2582 = vmatpush1.msra.mxu0 0.0
      %2583 = vmatprep.subr.mxu0 0.0
      %2584 = vmatpush1.msra.mxu0 0.0
      %2585 = vmatprep.subr.mxu0 0.0
      %2586 = vmatpush1.msra.mxu0 0.0
      %2587 = vmatprep.subr.mxu0 0.0
      %2588 = vmatpush1.msra.mxu0 0.0
      %2589 = vmatprep.subr.mxu0 0.0
      %2590 = vmatpush1.msra.mxu0 0.0
      %2591 = vmatprep.subr.mxu0 0.0
      %2592 = vmatpush1.msra.mxu0 0.0
      %2593 = vmatprep.subr.mxu0 0.0
      %2594 = vmatpush1.msra.mxu0 0.0
      %2595 = vmatprep.subr.mxu0 0.0
      %2596 = vmatpush1.msra.mxu0 0.0
      %2597 = vmatprep.mubr.f32.mxu0 0.0
      %2598 = vmatmul.mubr.f32.gmra.mrb[0].mxu0 %v2510
      %v2599 = vpop.f32.mrb[0].mxu0
      %v2600 = vadd.f32 %v2507, %v2599
      %v2601 = vpop.f32.mrb[0].mxu0
      %2602 = vmatprep.mubr.f32.mxu0 0.0
      %2603 = vmatmul.mubr.f32.gmra.mrb[0].mxu0 %v2513
      %v2604 = vpop.f32.mrb[0].mxu0
      %v2605 = vadd.f32 %v2507, %v2604
      %v2606 = vpop.f32.mrb[0].mxu0
      %2607 = vmatprep.mubr.f32.mxu0 0.0
      %2608 = vmatmul.mubr.f32.gmra.mrb[0].mxu0 %v2516
      %v2609 = vpop.f32.mrb[0].mxu0
      %v2610 = vadd.f32 %v2507, %v2609
      %v2611 = vpop.f32.mrb[0].mxu0
      %2612 = vmatprep.mubr.f32.mxu0 0.0
      %2613 = vmatmul.mubr.f32.gmra.mrb[0].mxu0 %v2519
      %v2614 = vpop.f32.mrb[0].mxu0
      %v2615 = vadd.f32 %v2507, %v2614
      %v2616 = vpop.f32.mrb[0].mxu0
      %2617 = vmatprep.mubr.f32.mxu0 0.0
      %2618 = vmatmul.mubr.f32.gmra.mrb[0].mxu0 %v2522
      %v2619 = vpop.f32.mrb[0].mxu0
      %v2620 = vadd.f32 %v2507, %v2619
      %v2621 = vpop.f32.mrb[0].mxu0
      %2622 = vmatprep.mubr.f32.mxu0 0.0
      %2623 = vmatmul.mubr.f32.gmra.mrb[0].mxu0 %v2525
      %v2624 = vpop.f32.mrb[0].mxu0
      %v2625 = vadd.f32 %v2507, %v2624
      %v2626 = vpop.f32.mrb[0].mxu0
      %2627 = vmatprep.mubr.f32.mxu0 0.0
      %2628 = vmatmul.mubr.f32.gmra.mrb[0].mxu0 %v2528
      %v2629 = vpop.f32.mrb[0].mxu0
      %v2630 = vadd.f32 %v2507, %v2629
      %v2631 = vpop.f32.mrb[0].mxu0
      %2632 = vmatprep.mubr.f32.mxu0 0.0
      %2633 = vmatmul.mubr.f32.gmra.mrb[0].mxu0 %v2531
      %v2634 = vpop.f32.mrb[0].mxu0
      %v2635 = vadd.f32 %v2507, %v2634
      %v2636 = vpop.f32.mrb[0].mxu0
      %2637 = vdwg.mxu0
      %v2638 = vmax.f32 %v2600, 0.0
      %v2639 = vmax.f32 %v2605, 0.0
      %v2640 = vmax.f32 %v2610, 0.0
      %v2641 = vmax.f32 %v2615, 0.0
      %v2642 = vmax.f32 %v2620, 0.0
      %v2643 = vmax.f32 %v2625, 0.0
      %v2644 = vmax.f32 %v2630, 0.0
      %v2645 = vmax.f32 %v2635, 0.0
      %2646 = vst.msk [vmem:[%s2224 + $0x1] sm:$0x7f] %vm2225, %v2638
      %2647 = vst.msk [vmem:[%s2224 + $0x9] sm:$0x7f] %vm2225, %v2639
      %2648 = vst.msk [vmem:[%s2224 + $0x11] sm:$0x7f] %vm2225, %v2640
      %2649 = vst.msk [vmem:[%s2224 + $0x19] sm:$0x7f] %vm2225, %v2641
      %2650 = vst.msk [vmem:[%s2224 + $0x21] sm:$0x7f] %vm2225, %v2642
      %2651 = vst.msk [vmem:[%s2224 + $0x29] sm:$0x7f] %vm2225, %v2643
      %2652 = vst.msk [vmem:[%s2224 + $0x31] sm:$0x7f] %vm2225, %v2644
      %2660 = vrot.lane.b32.xlu0 %v2638, 8
      %v2661 = vpop.permute.xlu0 %2660
      %2662 = vrot.lane.b32.xlu0 %v2639, 8
      %v2663 = vpop.permute.xlu0 %2662
      %2664 = vrot.lane.b32.xlu0 %v2640, 8
      %v2665 = vpop.permute.xlu0 %2664
      %2666 = vrot.lane.b32.xlu0 %v2641, 8
      %v2667 = vpop.permute.xlu0 %2666
      %2668 = vrot.lane.b32.xlu0 %v2642, 8
      %v2669 = vpop.permute.xlu0 %2668
      %2670 = vrot.lane.b32.xlu0 %v2643, 8
      %v2671 = vpop.permute.xlu0 %2670
      %2672 = vrot.lane.b32.xlu0 %v2644, 8
      %v2673 = vpop.permute.xlu0 %2672
      %2681 = vst.msk [vmem:[%s2224] sm:$0xff] %vm2261, %v2661
      %2682 = vst.msk [vmem:[%s2224 + $0x8] sm:$0xff] %vm2261, %v2663
      %2683 = vst.msk [vmem:[%s2224 + $0x10] sm:$0xff] %vm2261, %v2665
      %2684 = vst.msk [vmem:[%s2224 + $0x18] sm:$0xff] %vm2261, %v2667
      %2685 = vst.msk [vmem:[%s2224 + $0x20] sm:$0xff] %vm2261, %v2669
      %2686 = vst.msk [vmem:[%s2224 + $0x28] sm:$0xff] %vm2261, %v2671
      %2687 = vst.msk [vmem:[%s2224 + $0x30] sm:$0xff] %vm2261, %v2673
      %2688 = vrot.lane.b32.xlu0 %v2638, 16
      %v2689 = vpop.permute.xlu0 %2688
      %2690 = vrot.lane.b32.xlu0 %v2639, 16
      %v2691 = vpop.permute.xlu0 %2690
      %2692 = vrot.lane.b32.xlu0 %v2640, 16
      %v2693 = vpop.permute.xlu0 %2692
      %2694 = vrot.lane.b32.xlu0 %v2641, 16
      %v2695 = vpop.permute.xlu0 %2694
      %2696 = vrot.lane.b32.xlu0 %v2642, 16
      %v2697 = vpop.permute.xlu0 %2696
      %2698 = vrot.lane.b32.xlu0 %v2643, 16
      %v2699 = vpop.permute.xlu0 %2698
      %2700 = vrot.lane.b32.xlu0 %v2644, 16
      %v2701 = vpop.permute.xlu0 %2700
      %2709 = vst.msk [vmem:[%s2224 - $0x1] sm:$0xfe] %vm2290, %v2689
      %2710 = vst.msk [vmem:[%s2224 + $0x7] sm:$0xfe] %vm2290, %v2691
      %2711 = vst.msk [vmem:[%s2224 + $0xf] sm:$0xfe] %vm2290, %v2693
      %2712 = vst.msk [vmem:[%s2224 + $0x17] sm:$0xfe] %vm2290, %v2695
      %2713 = vst.msk [vmem:[%s2224 + $0x1f] sm:$0xfe] %vm2290, %v2697
      %2714 = vst.msk [vmem:[%s2224 + $0x27] sm:$0xfe] %vm2290, %v2699
      %2715 = vst.msk [vmem:[%s2224 + $0x2f] sm:$0xfe] %vm2290, %v2701
      %2717 = vrot.lane.b32.xlu0 %v2638, 24
      %v2718 = vpop.permute.xlu0 %2717
      %2719 = vrot.lane.b32.xlu0 %v2639, 24
      %v2720 = vpop.permute.xlu0 %2719
      %2721 = vrot.lane.b32.xlu0 %v2640, 24
      %v2722 = vpop.permute.xlu0 %2721
      %2723 = vrot.lane.b32.xlu0 %v2641, 24
      %v2724 = vpop.permute.xlu0 %2723
      %2725 = vrot.lane.b32.xlu0 %v2642, 24
      %v2726 = vpop.permute.xlu0 %2725
      %2727 = vrot.lane.b32.xlu0 %v2643, 24
      %v2728 = vpop.permute.xlu0 %2727
      %2729 = vrot.lane.b32.xlu0 %v2644, 24
      %v2730 = vpop.permute.xlu0 %2729
      %2731 = vrot.lane.b32.xlu0 %v2645, 24
      %v2732 = vpop.permute.xlu0 %2731
      %2741 = vst.msk [vmem:[#allocation3 + $0x1] sm:$0x7f] %vm2323, %v2718
      %2742 = vst.msk [vmem:[#allocation3 + $0x9] sm:$0x7f] %vm2323, %v2720
      %2743 = vst.msk [vmem:[#allocation3 + $0x11] sm:$0x7f] %vm2323, %v2722
      %2744 = vst.msk [vmem:[#allocation3 + $0x19] sm:$0x7f] %vm2323, %v2724
      %2745 = vst.msk [vmem:[#allocation3 + $0x21] sm:$0x7f] %vm2323, %v2726
      %2746 = vst.msk [vmem:[#allocation3 + $0x29] sm:$0x7f] %vm2323, %v2728
      %2747 = vst.msk [vmem:[#allocation3 + $0x31] sm:$0x7f] %vm2323, %v2730
      %2748 = vst.msk [vmem:[#allocation3 + $0x39] sm:$0x7f] %vm2323, %v2732
      %2749 = vrot.lane.b32.xlu0 %v2638, 32
      %v2750 = vpop.permute.xlu0 %2749
      %2751 = vrot.lane.b32.xlu0 %v2639, 32
      %v2752 = vpop.permute.xlu0 %2751
      %2753 = vrot.lane.b32.xlu0 %v2640, 32
      %v2754 = vpop.permute.xlu0 %2753
      %2755 = vrot.lane.b32.xlu0 %v2641, 32
      %v2756 = vpop.permute.xlu0 %2755
      %2757 = vrot.lane.b32.xlu0 %v2642, 32
      %v2758 = vpop.permute.xlu0 %2757
      %2759 = vrot.lane.b32.xlu0 %v2643, 32
      %v2760 = vpop.permute.xlu0 %2759
      %2761 = vrot.lane.b32.xlu0 %v2644, 32
      %v2762 = vpop.permute.xlu0 %2761
      %2763 = vrot.lane.b32.xlu0 %v2645, 32
      %v2764 = vpop.permute.xlu0 %2763
      %2773 = vst.msk [vmem:[#allocation3] sm:$0xff] %vm2356, %v2750
      %2774 = vst.msk [vmem:[#allocation3 + $0x8] sm:$0xff] %vm2356, %v2752
      %2775 = vst.msk [vmem:[#allocation3 + $0x10] sm:$0xff] %vm2356, %v2754
      %2776 = vst.msk [vmem:[#allocation3 + $0x18] sm:$0xff] %vm2356, %v2756
      %2777 = vst.msk [vmem:[#allocation3 + $0x20] sm:$0xff] %vm2356, %v2758
      %2778 = vst.msk [vmem:[#allocation3 + $0x28] sm:$0xff] %vm2356, %v2760
      %2779 = vst.msk [vmem:[#allocation3 + $0x30] sm:$0xff] %vm2356, %v2762
      %2780 = vst.msk [vmem:[#allocation3 + $0x38] sm:$0xff] %vm2356, %v2764
      %2781 = vrot.lane.b32.xlu0 %v2638, 40
      %v2782 = vpop.permute.xlu0 %2781
      %2783 = vrot.lane.b32.xlu0 %v2639, 40
      %v2784 = vpop.permute.xlu0 %2783
      %2785 = vrot.lane.b32.xlu0 %v2640, 40
      %v2786 = vpop.permute.xlu0 %2785
      %2787 = vrot.lane.b32.xlu0 %v2641, 40
      %v2788 = vpop.permute.xlu0 %2787
      %2789 = vrot.lane.b32.xlu0 %v2642, 40
      %v2790 = vpop.permute.xlu0 %2789
      %2791 = vrot.lane.b32.xlu0 %v2643, 40
      %v2792 = vpop.permute.xlu0 %2791
      %2793 = vrot.lane.b32.xlu0 %v2644, 40
      %v2794 = vpop.permute.xlu0 %2793
      %2795 = vrot.lane.b32.xlu0 %v2645, 40
      %v2796 = vpop.permute.xlu0 %2795
      %2805 = vst.msk [vmem:[#allocation3 - $0x1] sm:$0xfe] %vm2389, %v2782
      %2806 = vst.msk [vmem:[#allocation3 + $0x7] sm:$0xfe] %vm2389, %v2784
      %2807 = vst.msk [vmem:[#allocation3 + $0xf] sm:$0xfe] %vm2389, %v2786
      %2808 = vst.msk [vmem:[#allocation3 + $0x17] sm:$0xfe] %vm2389, %v2788
      %2809 = vst.msk [vmem:[#allocation3 + $0x1f] sm:$0xfe] %vm2389, %v2790
      %2810 = vst.msk [vmem:[#allocation3 + $0x27] sm:$0xfe] %vm2389, %v2792
      %2811 = vst.msk [vmem:[#allocation3 + $0x2f] sm:$0xfe] %vm2389, %v2794
      %2812 = vst.msk [vmem:[#allocation3 + $0x37] sm:$0xfe] %vm2389, %v2796
      %2813 = vrot.lane.b32.xlu0 %v2639, 48
      %v2814 = vpop.permute.xlu0 %2813
      %2815 = vrot.lane.b32.xlu0 %v2640, 48
      %v2816 = vpop.permute.xlu0 %2815
      %2817 = vrot.lane.b32.xlu0 %v2641, 48
      %v2818 = vpop.permute.xlu0 %2817
      %2819 = vrot.lane.b32.xlu0 %v2642, 48
      %v2820 = vpop.permute.xlu0 %2819
      %2821 = vrot.lane.b32.xlu0 %v2643, 48
      %v2822 = vpop.permute.xlu0 %2821
      %2823 = vrot.lane.b32.xlu0 %v2644, 48
      %v2824 = vpop.permute.xlu0 %2823
      %2825 = vrot.lane.b32.xlu0 %v2645, 48
      %v2826 = vpop.permute.xlu0 %2825
      %2834 = vst.msk [vmem:[#allocation3 + $0x1] sm:$0x7f] %vm2419, %v2814
      %2835 = vst.msk [vmem:[#allocation3 + $0x9] sm:$0x7f] %vm2419, %v2816
      %2836 = vst.msk [vmem:[#allocation3 + $0x11] sm:$0x7f] %vm2419, %v2818
      %2837 = vst.msk [vmem:[#allocation3 + $0x19] sm:$0x7f] %vm2419, %v2820
      %2838 = vst.msk [vmem:[#allocation3 + $0x21] sm:$0x7f] %vm2419, %v2822
      %2839 = vst.msk [vmem:[#allocation3 + $0x29] sm:$0x7f] %vm2419, %v2824
      %2840 = vst.msk [vmem:[#allocation3 + $0x31] sm:$0x7f] %vm2419, %v2826
      %2841 = vrot.lane.b32.xlu0 %v2639, 56
      %v2842 = vpop.permute.xlu0 %2841
      %2843 = vrot.lane.b32.xlu0 %v2640, 56
      %v2844 = vpop.permute.xlu0 %2843
      %2845 = vrot.lane.b32.xlu0 %v2641, 56
      %v2846 = vpop.permute.xlu0 %2845
      %2847 = vrot.lane.b32.xlu0 %v2642, 56
      %v2848 = vpop.permute.xlu0 %2847
      %2849 = vrot.lane.b32.xlu0 %v2643, 56
      %v2850 = vpop.permute.xlu0 %2849
      %2851 = vrot.lane.b32.xlu0 %v2644, 56
      %v2852 = vpop.permute.xlu0 %2851
      %2853 = vrot.lane.b32.xlu0 %v2645, 56
      %v2854 = vpop.permute.xlu0 %2853
      %2862 = vst.msk [vmem:[#allocation3] sm:$0xff] %vm2448, %v2842
      %2863 = vst.msk [vmem:[#allocation3 + $0x8] sm:$0xff] %vm2448, %v2844
      %2864 = vst.msk [vmem:[#allocation3 + $0x10] sm:$0xff] %vm2448, %v2846
      %2865 = vst.msk [vmem:[#allocation3 + $0x18] sm:$0xff] %vm2448, %v2848
      %2866 = vst.msk [vmem:[#allocation3 + $0x20] sm:$0xff] %vm2448, %v2850
      %2867 = vst.msk [vmem:[#allocation3 + $0x28] sm:$0xff] %vm2448, %v2852
      %2868 = vst.msk [vmem:[#allocation3 + $0x30] sm:$0xff] %vm2448, %v2854
      %2869 = vrot.lane.b32.xlu0 %v2639, 64
      %v2870 = vpop.permute.xlu0 %2869
      %2871 = vrot.lane.b32.xlu0 %v2640, 64
      %v2872 = vpop.permute.xlu0 %2871
      %2873 = vrot.lane.b32.xlu0 %v2641, 64
      %v2874 = vpop.permute.xlu0 %2873
      %2875 = vrot.lane.b32.xlu0 %v2642, 64
      %v2876 = vpop.permute.xlu0 %2875
      %2877 = vrot.lane.b32.xlu0 %v2643, 64
      %v2878 = vpop.permute.xlu0 %2877
      %2879 = vrot.lane.b32.xlu0 %v2644, 64
      %v2880 = vpop.permute.xlu0 %2879
      %2881 = vrot.lane.b32.xlu0 %v2645, 64
      %v2882 = vpop.permute.xlu0 %2881
      %2890 = vst.msk [vmem:[#allocation3 - $0x1] sm:$0xfe] %vm2477, %v2870
      %2891 = vst.msk [vmem:[#allocation3 + $0x7] sm:$0xfe] %vm2477, %v2872
      %2892 = vst.msk [vmem:[#allocation3 + $0xf] sm:$0xfe] %vm2477, %v2874
      %2893 = vst.msk [vmem:[#allocation3 + $0x17] sm:$0xfe] %vm2477, %v2876
      %2894 = vst.msk [vmem:[#allocation3 + $0x1f] sm:$0xfe] %vm2477, %v2878
      %2895 = vst.msk [vmem:[#allocation3 + $0x27] sm:$0xfe] %vm2477, %v2880
      %2896 = vst.msk [vmem:[#allocation3 + $0x2f] sm:$0xfe] %vm2477, %v2882
      %v2897 = vld [vmem:[#allocation3] sm:$0xff]
      %v2898 = vld [vmem:[#allocation3 + $0x8] sm:$0xff]
      %v2899 = vld [vmem:[#allocation3 + $0x10] sm:$0xff]
      %v2900 = vld [vmem:[#allocation3 + $0x18] sm:$0xff]
      %v2901 = vld [vmem:[#allocation3 + $0x20] sm:$0xff]
      %v2902 = vld [vmem:[#allocation3 + $0x28] sm:$0xff]
      %v2903 = vld [vmem:[#allocation3 + $0x30] sm:$0xff]
      %v2904 = vld [vmem:[#allocation3 + $0x38] sm:$0xff]
      %v2905 = vld [vmem:[%s5] sm:$0xff]
      %v2906 = vld [vmem:[%s5 + $0x8] sm:$0xff]
      %v2907 = vld [vmem:[%s5 + $0x10] sm:$0xff]
      %v2908 = vld [vmem:[%s5 + $0x18] sm:$0xff]
      %v2909 = vld [vmem:[%s5 + $0x20] sm:$0xff]
      %v2910 = vld [vmem:[%s5 + $0x28] sm:$0xff]
      %v2911 = vld [vmem:[%s5 + $0x30] sm:$0xff]
      %v2912 = vld [vmem:[%s5 + $0x38] sm:$0xff]
      %v2913 = vld [vmem:[%s5 + $0x40] sm:$0xff]
      %v2914 = vld [vmem:[%s6] sm:$0x1]
      %v2916 = vlaneseq
      %v2917 = vshrl.u32 %v2916, 7
      %v2918 = vsub.s32 0, %v2917
      %v2919 = vrot.slane %v2914, %v2918
      %v2922 = vsel %vm420, %v2897, 0
      %v2925 = vsel %vm420, %v2898, 0
      %v2928 = vsel %vm420, %v2899, 0
      %v2931 = vsel %vm420, %v2900, 0
      %v2934 = vsel %vm420, %v2901, 0
      %v2937 = vsel %vm420, %v2902, 0
      %v2940 = vsel %vm420, %v2903, 0
      %v2943 = vsel %vm420, %v2904, 0
      %2945 = vmatprep.subr.mxu0 0.0
      %2946 = vmatpush1.msra.mxu0 %v2905
      %2947 = vmatprep.subr.mxu0 0.0
      %2948 = vmatpush1.msra.mxu0 %v2906
      %2949 = vmatprep.subr.mxu0 0.0
      %2950 = vmatpush1.msra.mxu0 %v2907
      %2951 = vmatprep.subr.mxu0 0.0
      %2952 = vmatpush1.msra.mxu0 %v2908
      %2953 = vmatprep.subr.mxu0 0.0
      %2954 = vmatpush1.msra.mxu0 %v2909
      %2955 = vmatprep.subr.mxu0 0.0
      %2956 = vmatpush1.msra.mxu0 %v2910
      %2957 = vmatprep.subr.mxu0 0.0
      %2958 = vmatpush1.msra.mxu0 %v2911
      %2959 = vmatprep.subr.mxu0 0.0
      %2960 = vmatpush1.msra.mxu0 %v2912
      %2961 = vmatprep.subr.mxu0 0.0
      %2962 = vmatpush1.msra.mxu0 %v2913
      %2963 = vmatprep.subr.mxu0 0.0
      %2964 = vmatpush1.msra.mxu0 0.0
      %2965 = vmatprep.subr.mxu0 0.0
      %2966 = vmatpush1.msra.mxu0 0.0
      %2967 = vmatprep.subr.mxu0 0.0
      %2968 = vmatpush1.msra.mxu0 0.0
      %2969 = vmatprep.subr.mxu0 0.0
      %2970 = vmatpush1.msra.mxu0 0.0
      %2971 = vmatprep.subr.mxu0 0.0
      %2972 = vmatpush1.msra.mxu0 0.0
      %2973 = vmatprep.subr.mxu0 0.0
      %2974 = vmatpush1.msra.mxu0 0.0
      %2975 = vmatprep.subr.mxu0 0.0
      %2976 = vmatpush1.msra.mxu0 0.0
      %2977 = vmatprep.subr.mxu0 0.0
      %2978 = vmatpush1.msra.mxu0 0.0
      %2979 = vmatprep.subr.mxu0 0.0
      %2980 = vmatpush1.msra.mxu0 0.0
      %2981 = vmatprep.subr.mxu0 0.0
      %2982 = vmatpush1.msra.mxu0 0.0
      %2983 = vmatprep.subr.mxu0 0.0
      %2984 = vmatpush1.msra.mxu0 0.0
      %2985 = vmatprep.subr.mxu0 0.0
      %2986 = vmatpush1.msra.mxu0 0.0
      %2987 = vmatprep.subr.mxu0 0.0
      %2988 = vmatpush1.msra.mxu0 0.0
      %2989 = vmatprep.subr.mxu0 0.0
      %2990 = vmatpush1.msra.mxu0 0.0
      %2991 = vmatprep.subr.mxu0 0.0
      %2992 = vmatpush1.msra.mxu0 0.0
      %2993 = vmatprep.subr.mxu0 0.0
      %2994 = vmatpush1.msra.mxu0 0.0
      %2995 = vmatprep.subr.mxu0 0.0
      %2996 = vmatpush1.msra.mxu0 0.0
      %2997 = vmatprep.subr.mxu0 0.0
      %2998 = vmatpush1.msra.mxu0 0.0
      %2999 = vmatprep.subr.mxu0 0.0
      %3000 = vmatpush1.msra.mxu0 0.0
      %3001 = vmatprep.subr.mxu0 0.0
      %3002 = vmatpush1.msra.mxu0 0.0
      %3003 = vmatprep.subr.mxu0 0.0
      %3004 = vmatpush1.msra.mxu0 0.0
      %3005 = vmatprep.subr.mxu0 0.0
      %3006 = vmatpush1.msra.mxu0 0.0
      %3007 = vmatprep.subr.mxu0 0.0
      %3008 = vmatpush1.msra.mxu0 0.0
      %3009 = vmatprep.mubr.f32.mxu0 0.0
      %3010 = vmatmul.mubr.f32.gmra.mrb[0].mxu0 %v2922
      %v3011 = vpop.f32.mrb[0].mxu0
      %v3012 = vadd.f32 %v2919, %v3011
      %v3013 = vpop.f32.mrb[0].mxu0
      %3014 = vmatprep.mubr.f32.mxu0 0.0
      %3015 = vmatmul.mubr.f32.gmra.mrb[0].mxu0 %v2925
      %v3016 = vpop.f32.mrb[0].mxu0
      %v3017 = vadd.f32 %v2919, %v3016
      %v3018 = vpop.f32.mrb[0].mxu0
      %3019 = vmatprep.mubr.f32.mxu0 0.0
      %3020 = vmatmul.mubr.f32.gmra.mrb[0].mxu0 %v2928
      %v3021 = vpop.f32.mrb[0].mxu0
      %v3022 = vadd.f32 %v2919, %v3021
      %v3023 = vpop.f32.mrb[0].mxu0
      %3024 = vmatprep.mubr.f32.mxu0 0.0
      %3025 = vmatmul.mubr.f32.gmra.mrb[0].mxu0 %v2931
      %v3026 = vpop.f32.mrb[0].mxu0
      %v3027 = vadd.f32 %v2919, %v3026
      %v3028 = vpop.f32.mrb[0].mxu0
      %3029 = vmatprep.mubr.f32.mxu0 0.0
      %3030 = vmatmul.mubr.f32.gmra.mrb[0].mxu0 %v2934
      %v3031 = vpop.f32.mrb[0].mxu0
      %v3032 = vadd.f32 %v2919, %v3031
      %v3033 = vpop.f32.mrb[0].mxu0
      %3034 = vmatprep.mubr.f32.mxu0 0.0
      %3035 = vmatmul.mubr.f32.gmra.mrb[0].mxu0 %v2937
      %v3036 = vpop.f32.mrb[0].mxu0
      %v3037 = vadd.f32 %v2919, %v3036
      %v3038 = vpop.f32.mrb[0].mxu0
      %3039 = vmatprep.mubr.f32.mxu0 0.0
      %3040 = vmatmul.mubr.f32.gmra.mrb[0].mxu0 %v2940
      %v3041 = vpop.f32.mrb[0].mxu0
      %v3042 = vadd.f32 %v2919, %v3041
      %v3043 = vpop.f32.mrb[0].mxu0
      %3044 = vmatprep.mubr.f32.mxu0 0.0
      %3045 = vmatmul.mubr.f32.gmra.mrb[0].mxu0 %v2943
      %v3046 = vpop.f32.mrb[0].mxu0
      %v3047 = vadd.f32 %v2919, %v3046
      %v3048 = vpop.f32.mrb[0].mxu0
      %3049 = vdwg.mxu0
      %v3050 = vadd.f32 %v3012, %v2208
      %v3051 = vadd.f32 %v3017, %v2209
      %v3052 = vadd.f32 %v3022, %v2210
      %v3053 = vadd.f32 %v3027, %v2211
      %v3054 = vadd.f32 %v3032, %v2212
      %v3055 = vadd.f32 %v3037, %v2213
      %v3056 = vadd.f32 %v3042, %v2214
      %v3057 = vadd.f32 %v3047, %v2215
      %v3058 = vmax.f32 %v3050, 0.0
      %v3059 = vmax.f32 %v3051, 0.0
      %v3060 = vmax.f32 %v3052, 0.0
      %v3061 = vmax.f32 %v3053, 0.0
      %v3062 = vmax.f32 %v3054, 0.0
      %v3063 = vmax.f32 %v3055, 0.0
      %v3064 = vmax.f32 %v3056, 0.0
      %v3065 = vmax.f32 %v3057, 0.0
      %3066 = vst.msk [vmem:[%s2224 + $0x1] sm:$0x7f] %vm2225, %v3058
      %3067 = vst.msk [vmem:[%s2224 + $0x9] sm:$0x7f] %vm2225, %v3059
      %3068 = vst.msk [vmem:[%s2224 + $0x11] sm:$0x7f] %vm2225, %v3060
      %3069 = vst.msk [vmem:[%s2224 + $0x19] sm:$0x7f] %vm2225, %v3061
      %3070 = vst.msk [vmem:[%s2224 + $0x21] sm:$0x7f] %vm2225, %v3062
      %3071 = vst.msk [vmem:[%s2224 + $0x29] sm:$0x7f] %vm2225, %v3063
      %3072 = vst.msk [vmem:[%s2224 + $0x31] sm:$0x7f] %vm2225, %v3064
      %3080 = vrot.lane.b32.xlu0 %v3058, 8
      %v3081 = vpop.permute.xlu0 %3080
      %3082 = vrot.lane.b32.xlu0 %v3059, 8
      %v3083 = vpop.permute.xlu0 %3082
      %3084 = vrot.lane.b32.xlu0 %v3060, 8
      %v3085 = vpop.permute.xlu0 %3084
      %3086 = vrot.lane.b32.xlu0 %v3061, 8
      %v3087 = vpop.permute.xlu0 %3086
      %3088 = vrot.lane.b32.xlu0 %v3062, 8
      %v3089 = vpop.permute.xlu0 %3088
      %3090 = vrot.lane.b32.xlu0 %v3063, 8
      %v3091 = vpop.permute.xlu0 %3090
      %3092 = vrot.lane.b32.xlu0 %v3064, 8
      %v3093 = vpop.permute.xlu0 %3092
      %3101 = vst.msk [vmem:[%s2224] sm:$0xff] %vm2261, %v3081
      %3102 = vst.msk [vmem:[%s2224 + $0x8] sm:$0xff] %vm2261, %v3083
      %3103 = vst.msk [vmem:[%s2224 + $0x10] sm:$0xff] %vm2261, %v3085
      %3104 = vst.msk [vmem:[%s2224 + $0x18] sm:$0xff] %vm2261, %v3087
      %3105 = vst.msk [vmem:[%s2224 + $0x20] sm:$0xff] %vm2261, %v3089
      %3106 = vst.msk [vmem:[%s2224 + $0x28] sm:$0xff] %vm2261, %v3091
      %3107 = vst.msk [vmem:[%s2224 + $0x30] sm:$0xff] %vm2261, %v3093
      %3108 = vrot.lane.b32.xlu0 %v3058, 16
      %v3109 = vpop.permute.xlu0 %3108
      %3110 = vrot.lane.b32.xlu0 %v3059, 16
      %v3111 = vpop.permute.xlu0 %3110
      %3112 = vrot.lane.b32.xlu0 %v3060, 16
      %v3113 = vpop.permute.xlu0 %3112
      %3114 = vrot.lane.b32.xlu0 %v3061, 16
      %v3115 = vpop.permute.xlu0 %3114
      %3116 = vrot.lane.b32.xlu0 %v3062, 16
      %v3117 = vpop.permute.xlu0 %3116
      %3118 = vrot.lane.b32.xlu0 %v3063, 16
      %v3119 = vpop.permute.xlu0 %3118
      %3120 = vrot.lane.b32.xlu0 %v3064, 16
      %v3121 = vpop.permute.xlu0 %3120
      %3129 = vst.msk [vmem:[%s2224 - $0x1] sm:$0xfe] %vm2290, %v3109
      %3130 = vst.msk [vmem:[%s2224 + $0x7] sm:$0xfe] %vm2290, %v3111
      %3131 = vst.msk [vmem:[%s2224 + $0xf] sm:$0xfe] %vm2290, %v3113
      %3132 = vst.msk [vmem:[%s2224 + $0x17] sm:$0xfe] %vm2290, %v3115
      %3133 = vst.msk [vmem:[%s2224 + $0x1f] sm:$0xfe] %vm2290, %v3117
      %3134 = vst.msk [vmem:[%s2224 + $0x27] sm:$0xfe] %vm2290, %v3119
      %3135 = vst.msk [vmem:[%s2224 + $0x2f] sm:$0xfe] %vm2290, %v3121
      %3137 = vrot.lane.b32.xlu0 %v3058, 24
      %v3138 = vpop.permute.xlu0 %3137
      %3139 = vrot.lane.b32.xlu0 %v3059, 24
      %v3140 = vpop.permute.xlu0 %3139
      %3141 = vrot.lane.b32.xlu0 %v3060, 24
      %v3142 = vpop.permute.xlu0 %3141
      %3143 = vrot.lane.b32.xlu0 %v3061, 24
      %v3144 = vpop.permute.xlu0 %3143
      %3145 = vrot.lane.b32.xlu0 %v3062, 24
      %v3146 = vpop.permute.xlu0 %3145
      %3147 = vrot.lane.b32.xlu0 %v3063, 24
      %v3148 = vpop.permute.xlu0 %3147
      %3149 = vrot.lane.b32.xlu0 %v3064, 24
      %v3150 = vpop.permute.xlu0 %3149
      %3151 = vrot.lane.b32.xlu0 %v3065, 24
      %v3152 = vpop.permute.xlu0 %3151
      %3161 = vst.msk [vmem:[#allocation3 + $0x1] sm:$0x7f] %vm2323, %v3138
      %3162 = vst.msk [vmem:[#allocation3 + $0x9] sm:$0x7f] %vm2323, %v3140
      %3163 = vst.msk [vmem:[#allocation3 + $0x11] sm:$0x7f] %vm2323, %v3142
      %3164 = vst.msk [vmem:[#allocation3 + $0x19] sm:$0x7f] %vm2323, %v3144
      %3165 = vst.msk [vmem:[#allocation3 + $0x21] sm:$0x7f] %vm2323, %v3146
      %3166 = vst.msk [vmem:[#allocation3 + $0x29] sm:$0x7f] %vm2323, %v3148
      %3167 = vst.msk [vmem:[#allocation3 + $0x31] sm:$0x7f] %vm2323, %v3150
      %3168 = vst.msk [vmem:[#allocation3 + $0x39] sm:$0x7f] %vm2323, %v3152
      %3169 = vrot.lane.b32.xlu0 %v3058, 32
      %v3170 = vpop.permute.xlu0 %3169
      %3171 = vrot.lane.b32.xlu0 %v3059, 32
      %v3172 = vpop.permute.xlu0 %3171
      %3173 = vrot.lane.b32.xlu0 %v3060, 32
      %v3174 = vpop.permute.xlu0 %3173
      %3175 = vrot.lane.b32.xlu0 %v3061, 32
      %v3176 = vpop.permute.xlu0 %3175
      %3177 = vrot.lane.b32.xlu0 %v3062, 32
      %v3178 = vpop.permute.xlu0 %3177
      %3179 = vrot.lane.b32.xlu0 %v3063, 32
      %v3180 = vpop.permute.xlu0 %3179
      %3181 = vrot.lane.b32.xlu0 %v3064, 32
      %v3182 = vpop.permute.xlu0 %3181
      %3183 = vrot.lane.b32.xlu0 %v3065, 32
      %v3184 = vpop.permute.xlu0 %3183
      %3193 = vst.msk [vmem:[#allocation3] sm:$0xff] %vm2356, %v3170
      %3194 = vst.msk [vmem:[#allocation3 + $0x8] sm:$0xff] %vm2356, %v3172
      %3195 = vst.msk [vmem:[#allocation3 + $0x10] sm:$0xff] %vm2356, %v3174
      %3196 = vst.msk [vmem:[#allocation3 + $0x18] sm:$0xff] %vm2356, %v3176
      %3197 = vst.msk [vmem:[#allocation3 + $0x20] sm:$0xff] %vm2356, %v3178
      %3198 = vst.msk [vmem:[#allocation3 + $0x28] sm:$0xff] %vm2356, %v3180
      %3199 = vst.msk [vmem:[#allocation3 + $0x30] sm:$0xff] %vm2356, %v3182
      %3200 = vst.msk [vmem:[#allocation3 + $0x38] sm:$0xff] %vm2356, %v3184
      %3201 = vrot.lane.b32.xlu0 %v3058, 40
      %v3202 = vpop.permute.xlu0 %3201
      %3203 = vrot.lane.b32.xlu0 %v3059, 40
      %v3204 = vpop.permute.xlu0 %3203
      %3205 = vrot.lane.b32.xlu0 %v3060, 40
      %v3206 = vpop.permute.xlu0 %3205
      %3207 = vrot.lane.b32.xlu0 %v3061, 40
      %v3208 = vpop.permute.xlu0 %3207
      %3209 = vrot.lane.b32.xlu0 %v3062, 40
      %v3210 = vpop.permute.xlu0 %3209
      %3211 = vrot.lane.b32.xlu0 %v3063, 40
      %v3212 = vpop.permute.xlu0 %3211
      %3213 = vrot.lane.b32.xlu0 %v3064, 40
      %v3214 = vpop.permute.xlu0 %3213
      %3215 = vrot.lane.b32.xlu0 %v3065, 40
      %v3216 = vpop.permute.xlu0 %3215
      %3225 = vst.msk [vmem:[#allocation3 - $0x1] sm:$0xfe] %vm2389, %v3202
      %3226 = vst.msk [vmem:[#allocation3 + $0x7] sm:$0xfe] %vm2389, %v3204
      %3227 = vst.msk [vmem:[#allocation3 + $0xf] sm:$0xfe] %vm2389, %v3206
      %3228 = vst.msk [vmem:[#allocation3 + $0x17] sm:$0xfe] %vm2389, %v3208
      %3229 = vst.msk [vmem:[#allocation3 + $0x1f] sm:$0xfe] %vm2389, %v3210
      %3230 = vst.msk [vmem:[#allocation3 + $0x27] sm:$0xfe] %vm2389, %v3212
      %3231 = vst.msk [vmem:[#allocation3 + $0x2f] sm:$0xfe] %vm2389, %v3214
      %3232 = vst.msk [vmem:[#allocation3 + $0x37] sm:$0xfe] %vm2389, %v3216
      %3233 = vrot.lane.b32.xlu0 %v3059, 48
      %v3234 = vpop.permute.xlu0 %3233
      %3235 = vrot.lane.b32.xlu0 %v3060, 48
      %v3236 = vpop.permute.xlu0 %3235
      %3237 = vrot.lane.b32.xlu0 %v3061, 48
      %v3238 = vpop.permute.xlu0 %3237
      %3239 = vrot.lane.b32.xlu0 %v3062, 48
      %v3240 = vpop.permute.xlu0 %3239
      %3241 = vrot.lane.b32.xlu0 %v3063, 48
      %v3242 = vpop.permute.xlu0 %3241
      %3243 = vrot.lane.b32.xlu0 %v3064, 48
      %v3244 = vpop.permute.xlu0 %3243
      %3245 = vrot.lane.b32.xlu0 %v3065, 48
      %v3246 = vpop.permute.xlu0 %3245
      %3254 = vst.msk [vmem:[#allocation3 + $0x1] sm:$0x7f] %vm2419, %v3234
      %3255 = vst.msk [vmem:[#allocation3 + $0x9] sm:$0x7f] %vm2419, %v3236
      %3256 = vst.msk [vmem:[#allocation3 + $0x11] sm:$0x7f] %vm2419, %v3238
      %3257 = vst.msk [vmem:[#allocation3 + $0x19] sm:$0x7f] %vm2419, %v3240
      %3258 = vst.msk [vmem:[#allocation3 + $0x21] sm:$0x7f] %vm2419, %v3242
      %3259 = vst.msk [vmem:[#allocation3 + $0x29] sm:$0x7f] %vm2419, %v3244
      %3260 = vst.msk [vmem:[#allocation3 + $0x31] sm:$0x7f] %vm2419, %v3246
      %3261 = vrot.lane.b32.xlu0 %v3059, 56
      %v3262 = vpop.permute.xlu0 %3261
      %3263 = vrot.lane.b32.xlu0 %v3060, 56
      %v3264 = vpop.permute.xlu0 %3263
      %3265 = vrot.lane.b32.xlu0 %v3061, 56
      %v3266 = vpop.permute.xlu0 %3265
      %3267 = vrot.lane.b32.xlu0 %v3062, 56
      %v3268 = vpop.permute.xlu0 %3267
      %3269 = vrot.lane.b32.xlu0 %v3063, 56
      %v3270 = vpop.permute.xlu0 %3269
      %3271 = vrot.lane.b32.xlu0 %v3064, 56
      %v3272 = vpop.permute.xlu0 %3271
      %3273 = vrot.lane.b32.xlu0 %v3065, 56
      %v3274 = vpop.permute.xlu0 %3273
      %3282 = vst.msk [vmem:[#allocation3] sm:$0xff] %vm2448, %v3262
      %3283 = vst.msk [vmem:[#allocation3 + $0x8] sm:$0xff] %vm2448, %v3264
      %3284 = vst.msk [vmem:[#allocation3 + $0x10] sm:$0xff] %vm2448, %v3266
      %3285 = vst.msk [vmem:[#allocation3 + $0x18] sm:$0xff] %vm2448, %v3268
      %3286 = vst.msk [vmem:[#allocation3 + $0x20] sm:$0xff] %vm2448, %v3270
      %3287 = vst.msk [vmem:[#allocation3 + $0x28] sm:$0xff] %vm2448, %v3272
      %3288 = vst.msk [vmem:[#allocation3 + $0x30] sm:$0xff] %vm2448, %v3274
      %3289 = vrot.lane.b32.xlu0 %v3059, 64
      %v3290 = vpop.permute.xlu0 %3289
      %3291 = vrot.lane.b32.xlu0 %v3060, 64
      %v3292 = vpop.permute.xlu0 %3291
      %3293 = vrot.lane.b32.xlu0 %v3061, 64
      %v3294 = vpop.permute.xlu0 %3293
      %3295 = vrot.lane.b32.xlu0 %v3062, 64
      %v3296 = vpop.permute.xlu0 %3295
      %3297 = vrot.lane.b32.xlu0 %v3063, 64
      %v3298 = vpop.permute.xlu0 %3297
      %3299 = vrot.lane.b32.xlu0 %v3064, 64
      %v3300 = vpop.permute.xlu0 %3299
      %3301 = vrot.lane.b32.xlu0 %v3065, 64
      %v3302 = vpop.permute.xlu0 %3301
      %3310 = vst.msk [vmem:[#allocation3 - $0x1] sm:$0xfe] %vm2477, %v3290
      %3311 = vst.msk [vmem:[#allocation3 + $0x7] sm:$0xfe] %vm2477, %v3292
      %3312 = vst.msk [vmem:[#allocation3 + $0xf] sm:$0xfe] %vm2477, %v3294
      %3313 = vst.msk [vmem:[#allocation3 + $0x17] sm:$0xfe] %vm2477, %v3296
      %3314 = vst.msk [vmem:[#allocation3 + $0x1f] sm:$0xfe] %vm2477, %v3298
      %3315 = vst.msk [vmem:[#allocation3 + $0x27] sm:$0xfe] %vm2477, %v3300
      %3316 = vst.msk [vmem:[#allocation3 + $0x2f] sm:$0xfe] %vm2477, %v3302
      %v3317 = vld [vmem:[#allocation3] sm:$0xff]
      %v3318 = vld [vmem:[#allocation3 + $0x8] sm:$0xff]
      %v3319 = vld [vmem:[#allocation3 + $0x10] sm:$0xff]
      %v3320 = vld [vmem:[#allocation3 + $0x18] sm:$0xff]
      %v3321 = vld [vmem:[#allocation3 + $0x20] sm:$0xff]
      %v3322 = vld [vmem:[#allocation3 + $0x28] sm:$0xff]
      %v3323 = vld [vmem:[#allocation3 + $0x30] sm:$0xff]
      %v3324 = vld [vmem:[#allocation3 + $0x38] sm:$0xff]
      %v3325 = vld [vmem:[%s7] sm:$0xff]
      %v3326 = vld [vmem:[%s7 + $0x8] sm:$0xff]
      %v3327 = vld [vmem:[%s7 + $0x10] sm:$0xff]
      %v3328 = vld [vmem:[%s7 + $0x18] sm:$0xff]
      %v3329 = vld [vmem:[%s7 + $0x20] sm:$0xff]
      %v3330 = vld [vmem:[%s7 + $0x28] sm:$0xff]
      %v3331 = vld [vmem:[%s7 + $0x30] sm:$0xff]
      %v3332 = vld [vmem:[%s7 + $0x38] sm:$0xff]
      %v3333 = vld [vmem:[%s7 + $0x40] sm:$0xff]
      %v3334 = vld [vmem:[%s8] sm:$0x1]
      %v3336 = vlaneseq
      %v3337 = vshrl.u32 %v3336, 7
      %v3338 = vsub.s32 0, %v3337
      %v3339 = vrot.slane %v3334, %v3338
      %v3342 = vsel %vm420, %v3317, 0
      %v3345 = vsel %vm420, %v3318, 0
      %v3348 = vsel %vm420, %v3319, 0
      %v3351 = vsel %vm420, %v3320, 0
      %v3354 = vsel %vm420, %v3321, 0
      %v3357 = vsel %vm420, %v3322, 0
      %v3360 = vsel %vm420, %v3323, 0
      %v3363 = vsel %vm420, %v3324, 0
      %3365 = vmatprep.subr.mxu0 0.0
      %3366 = vmatpush1.msra.mxu0 %v3325
      %3367 = vmatprep.subr.mxu0 0.0
      %3368 = vmatpush1.msra.mxu0 %v3326
      %3369 = vmatprep.subr.mxu0 0.0
      %3370 = vmatpush1.msra.mxu0 %v3327
      %3371 = vmatprep.subr.mxu0 0.0
      %3372 = vmatpush1.msra.mxu0 %v3328
      %3373 = vmatprep.subr.mxu0 0.0
      %3374 = vmatpush1.msra.mxu0 %v3329
      %3375 = vmatprep.subr.mxu0 0.0
      %3376 = vmatpush1.msra.mxu0 %v3330
      %3377 = vmatprep.subr.mxu0 0.0
      %3378 = vmatpush1.msra.mxu0 %v3331
      %3379 = vmatprep.subr.mxu0 0.0
      %3380 = vmatpush1.msra.mxu0 %v3332
      %3381 = vmatprep.subr.mxu0 0.0
      %3382 = vmatpush1.msra.mxu0 %v3333
      %3383 = vmatprep.subr.mxu0 0.0
      %3384 = vmatpush1.msra.mxu0 0.0
      %3385 = vmatprep.subr.mxu0 0.0
      %3386 = vmatpush1.msra.mxu0 0.0
      %3387 = vmatprep.subr.mxu0 0.0
      %3388 = vmatpush1.msra.mxu0 0.0
      %3389 = vmatprep.subr.mxu0 0.0
      %3390 = vmatpush1.msra.mxu0 0.0
      %3391 = vmatprep.subr.mxu0 0.0
      %3392 = vmatpush1.msra.mxu0 0.0
      %3393 = vmatprep.subr.mxu0 0.0
      %3394 = vmatpush1.msra.mxu0 0.0
      %3395 = vmatprep.subr.mxu0 0.0
      %3396 = vmatpush1.msra.mxu0 0.0
      %3397 = vmatprep.subr.mxu0 0.0
      %3398 = vmatpush1.msra.mxu0 0.0
      %3399 = vmatprep.subr.mxu0 0.0
      %3400 = vmatpush1.msra.mxu0 0.0
      %3401 = vmatprep.subr.mxu0 0.0
      %3402 = vmatpush1.msra.mxu0 0.0
      %3403 = vmatprep.subr.mxu0 0.0
      %3404 = vmatpush1.msra.mxu0 0.0
      %3405 = vmatprep.subr.mxu0 0.0
      %3406 = vmatpush1.msra.mxu0 0.0
      %3407 = vmatprep.subr.mxu0 0.0
      %3408 = vmatpush1.msra.mxu0 0.0
      %3409 = vmatprep.subr.mxu0 0.0
      %3410 = vmatpush1.msra.mxu0 0.0
      %3411 = vmatprep.subr.mxu0 0.0
      %3412 = vmatpush1.msra.mxu0 0.0
      %3413 = vmatprep.subr.mxu0 0.0
      %3414 = vmatpush1.msra.mxu0 0.0
      %3415 = vmatprep.subr.mxu0 0.0
      %3416 = vmatpush1.msra.mxu0 0.0
      %3417 = vmatprep.subr.mxu0 0.0
      %3418 = vmatpush1.msra.mxu0 0.0
      %3419 = vmatprep.subr.mxu0 0.0
      %3420 = vmatpush1.msra.mxu0 0.0
      %3421 = vmatprep.subr.mxu0 0.0
      %3422 = vmatpush1.msra.mxu0 0.0
      %3423 = vmatprep.subr.mxu0 0.0
      %3424 = vmatpush1.msra.mxu0 0.0
      %3425 = vmatprep.subr.mxu0 0.0
      %3426 = vmatpush1.msra.mxu0 0.0
      %3427 = vmatprep.subr.mxu0 0.0
      %3428 = vmatpush1.msra.mxu0 0.0
      %3429 = vmatprep.mubr.f32.mxu0 0.0
      %3430 = vmatmul.mubr.f32.gmra.mrb[0].mxu0 %v3342
      %v3431 = vpop.f32.mrb[0].mxu0
      %v3432 = vadd.f32 %v3339, %v3431
      %v3433 = vpop.f32.mrb[0].mxu0
      %3434 = vmatprep.mubr.f32.mxu0 0.0
      %3435 = vmatmul.mubr.f32.gmra.mrb[0].mxu0 %v3345
      %v3436 = vpop.f32.mrb[0].mxu0
      %v3437 = vadd.f32 %v3339, %v3436
      %v3438 = vpop.f32.mrb[0].mxu0
      %3439 = vmatprep.mubr.f32.mxu0 0.0
      %3440 = vmatmul.mubr.f32.gmra.mrb[0].mxu0 %v3348
      %v3441 = vpop.f32.mrb[0].mxu0
      %v3442 = vadd.f32 %v3339, %v3441
      %v3443 = vpop.f32.mrb[0].mxu0
      %3444 = vmatprep.mubr.f32.mxu0 0.0
      %3445 = vmatmul.mubr.f32.gmra.mrb[0].mxu0 %v3351
      %v3446 = vpop.f32.mrb[0].mxu0
      %v3447 = vadd.f32 %v3339, %v3446
      %v3448 = vpop.f32.mrb[0].mxu0
      %3449 = vmatprep.mubr.f32.mxu0 0.0
      %3450 = vmatmul.mubr.f32.gmra.mrb[0].mxu0 %v3354
      %v3451 = vpop.f32.mrb[0].mxu0
      %v3452 = vadd.f32 %v3339, %v3451
      %v3453 = vpop.f32.mrb[0].mxu0
      %3454 = vmatprep.mubr.f32.mxu0 0.0
      %3455 = vmatmul.mubr.f32.gmra.mrb[0].mxu0 %v3357
      %v3456 = vpop.f32.mrb[0].mxu0
      %v3457 = vadd.f32 %v3339, %v3456
      %v3458 = vpop.f32.mrb[0].mxu0
      %3459 = vmatprep.mubr.f32.mxu0 0.0
      %3460 = vmatmul.mubr.f32.gmra.mrb[0].mxu0 %v3360
      %v3461 = vpop.f32.mrb[0].mxu0
      %v3462 = vadd.f32 %v3339, %v3461
      %v3463 = vpop.f32.mrb[0].mxu0
      %3464 = vmatprep.mubr.f32.mxu0 0.0
      %3465 = vmatmul.mubr.f32.gmra.mrb[0].mxu0 %v3363
      %v3466 = vpop.f32.mrb[0].mxu0
      %v3467 = vadd.f32 %v3339, %v3466
      %v3468 = vpop.f32.mrb[0].mxu0
      %3469 = vdwg.mxu0
      %v3470 = vmax.f32 %v3432, 0.0
      %v3471 = vmax.f32 %v3437, 0.0
      %v3472 = vmax.f32 %v3442, 0.0
      %v3473 = vmax.f32 %v3447, 0.0
      %v3474 = vmax.f32 %v3452, 0.0
      %v3475 = vmax.f32 %v3457, 0.0
      %v3476 = vmax.f32 %v3462, 0.0
      %v3477 = vmax.f32 %v3467, 0.0
      %3478 = vst.msk [vmem:[%s2224 + $0x1] sm:$0x7f] %vm2225, %v3470
      %3479 = vst.msk [vmem:[%s2224 + $0x9] sm:$0x7f] %vm2225, %v3471
      %3480 = vst.msk [vmem:[%s2224 + $0x11] sm:$0x7f] %vm2225, %v3472
      %3481 = vst.msk [vmem:[%s2224 + $0x19] sm:$0x7f] %vm2225, %v3473
      %3482 = vst.msk [vmem:[%s2224 + $0x21] sm:$0x7f] %vm2225, %v3474
      %3483 = vst.msk [vmem:[%s2224 + $0x29] sm:$0x7f] %vm2225, %v3475
      %3484 = vst.msk [vmem:[%s2224 + $0x31] sm:$0x7f] %vm2225, %v3476
      %3492 = vrot.lane.b32.xlu0 %v3470, 8
      %v3493 = vpop.permute.xlu0 %3492
      %3494 = vrot.lane.b32.xlu0 %v3471, 8
      %v3495 = vpop.permute.xlu0 %3494
      %3496 = vrot.lane.b32.xlu0 %v3472, 8
      %v3497 = vpop.permute.xlu0 %3496
      %3498 = vrot.lane.b32.xlu0 %v3473, 8
      %v3499 = vpop.permute.xlu0 %3498
      %3500 = vrot.lane.b32.xlu0 %v3474, 8
      %v3501 = vpop.permute.xlu0 %3500
      %3502 = vrot.lane.b32.xlu0 %v3475, 8
      %v3503 = vpop.permute.xlu0 %3502
      %3504 = vrot.lane.b32.xlu0 %v3476, 8
      %v3505 = vpop.permute.xlu0 %3504
      %3513 = vst.msk [vmem:[%s2224] sm:$0xff] %vm2261, %v3493
      %3514 = vst.msk [vmem:[%s2224 + $0x8] sm:$0xff] %vm2261, %v3495
      %3515 = vst.msk [vmem:[%s2224 + $0x10] sm:$0xff] %vm2261, %v3497
      %3516 = vst.msk [vmem:[%s2224 + $0x18] sm:$0xff] %vm2261, %v3499
      %3517 = vst.msk [vmem:[%s2224 + $0x20] sm:$0xff] %vm2261, %v3501
      %3518 = vst.msk [vmem:[%s2224 + $0x28] sm:$0xff] %vm2261, %v3503
      %3519 = vst.msk [vmem:[%s2224 + $0x30] sm:$0xff] %vm2261, %v3505
      %3520 = vrot.lane.b32.xlu0 %v3470, 16
      %v3521 = vpop.permute.xlu0 %3520
      %3522 = vrot.lane.b32.xlu0 %v3471, 16
      %v3523 = vpop.permute.xlu0 %3522
      %3524 = vrot.lane.b32.xlu0 %v3472, 16
      %v3525 = vpop.permute.xlu0 %3524
      %3526 = vrot.lane.b32.xlu0 %v3473, 16
      %v3527 = vpop.permute.xlu0 %3526
      %3528 = vrot.lane.b32.xlu0 %v3474, 16
      %v3529 = vpop.permute.xlu0 %3528
      %3530 = vrot.lane.b32.xlu0 %v3475, 16
      %v3531 = vpop.permute.xlu0 %3530
      %3532 = vrot.lane.b32.xlu0 %v3476, 16
      %v3533 = vpop.permute.xlu0 %3532
      %3541 = vst.msk [vmem:[%s2224 - $0x1] sm:$0xfe] %vm2290, %v3521
      %3542 = vst.msk [vmem:[%s2224 + $0x7] sm:$0xfe] %vm2290, %v3523
      %3543 = vst.msk [vmem:[%s2224 + $0xf] sm:$0xfe] %vm2290, %v3525
      %3544 = vst.msk [vmem:[%s2224 + $0x17] sm:$0xfe] %vm2290, %v3527
      %3545 = vst.msk [vmem:[%s2224 + $0x1f] sm:$0xfe] %vm2290, %v3529
      %3546 = vst.msk [vmem:[%s2224 + $0x27] sm:$0xfe] %vm2290, %v3531
      %3547 = vst.msk [vmem:[%s2224 + $0x2f] sm:$0xfe] %vm2290, %v3533
      %3549 = vrot.lane.b32.xlu0 %v3470, 24
      %v3550 = vpop.permute.xlu0 %3549
      %3551 = vrot.lane.b32.xlu0 %v3471, 24
      %v3552 = vpop.permute.xlu0 %3551
      %3553 = vrot.lane.b32.xlu0 %v3472, 24
      %v3554 = vpop.permute.xlu0 %3553
      %3555 = vrot.lane.b32.xlu0 %v3473, 24
      %v3556 = vpop.permute.xlu0 %3555
      %3557 = vrot.lane.b32.xlu0 %v3474, 24
      %v3558 = vpop.permute.xlu0 %3557
      %3559 = vrot.lane.b32.xlu0 %v3475, 24
      %v3560 = vpop.permute.xlu0 %3559
      %3561 = vrot.lane.b32.xlu0 %v3476, 24
      %v3562 = vpop.permute.xlu0 %3561
      %3563 = vrot.lane.b32.xlu0 %v3477, 24
      %v3564 = vpop.permute.xlu0 %3563
      %3573 = vst.msk [vmem:[#allocation3 + $0x1] sm:$0x7f] %vm2323, %v3550
      %3574 = vst.msk [vmem:[#allocation3 + $0x9] sm:$0x7f] %vm2323, %v3552
      %3575 = vst.msk [vmem:[#allocation3 + $0x11] sm:$0x7f] %vm2323, %v3554
      %3576 = vst.msk [vmem:[#allocation3 + $0x19] sm:$0x7f] %vm2323, %v3556
      %3577 = vst.msk [vmem:[#allocation3 + $0x21] sm:$0x7f] %vm2323, %v3558
      %3578 = vst.msk [vmem:[#allocation3 + $0x29] sm:$0x7f] %vm2323, %v3560
      %3579 = vst.msk [vmem:[#allocation3 + $0x31] sm:$0x7f] %vm2323, %v3562
      %3580 = vst.msk [vmem:[#allocation3 + $0x39] sm:$0x7f] %vm2323, %v3564
      %3581 = vrot.lane.b32.xlu0 %v3470, 32
      %v3582 = vpop.permute.xlu0 %3581
      %3583 = vrot.lane.b32.xlu0 %v3471, 32
      %v3584 = vpop.permute.xlu0 %3583
      %3585 = vrot.lane.b32.xlu0 %v3472, 32
      %v3586 = vpop.permute.xlu0 %3585
      %3587 = vrot.lane.b32.xlu0 %v3473, 32
      %v3588 = vpop.permute.xlu0 %3587
      %3589 = vrot.lane.b32.xlu0 %v3474, 32
      %v3590 = vpop.permute.xlu0 %3589
      %3591 = vrot.lane.b32.xlu0 %v3475, 32
      %v3592 = vpop.permute.xlu0 %3591
      %3593 = vrot.lane.b32.xlu0 %v3476, 32
      %v3594 = vpop.permute.xlu0 %3593
      %3595 = vrot.lane.b32.xlu0 %v3477, 32
      %v3596 = vpop.permute.xlu0 %3595
      %3605 = vst.msk [vmem:[#allocation3] sm:$0xff] %vm2356, %v3582
      %3606 = vst.msk [vmem:[#allocation3 + $0x8] sm:$0xff] %vm2356, %v3584
      %3607 = vst.msk [vmem:[#allocation3 + $0x10] sm:$0xff] %vm2356, %v3586
      %3608 = vst.msk [vmem:[#allocation3 + $0x18] sm:$0xff] %vm2356, %v3588
      %3609 = vst.msk [vmem:[#allocation3 + $0x20] sm:$0xff] %vm2356, %v3590
      %3610 = vst.msk [vmem:[#allocation3 + $0x28] sm:$0xff] %vm2356, %v3592
      %3611 = vst.msk [vmem:[#allocation3 + $0x30] sm:$0xff] %vm2356, %v3594
      %3612 = vst.msk [vmem:[#allocation3 + $0x38] sm:$0xff] %vm2356, %v3596
      %3613 = vrot.lane.b32.xlu0 %v3470, 40
      %v3614 = vpop.permute.xlu0 %3613
      %3615 = vrot.lane.b32.xlu0 %v3471, 40
      %v3616 = vpop.permute.xlu0 %3615
      %3617 = vrot.lane.b32.xlu0 %v3472, 40
      %v3618 = vpop.permute.xlu0 %3617
      %3619 = vrot.lane.b32.xlu0 %v3473, 40
      %v3620 = vpop.permute.xlu0 %3619
      %3621 = vrot.lane.b32.xlu0 %v3474, 40
      %v3622 = vpop.permute.xlu0 %3621
      %3623 = vrot.lane.b32.xlu0 %v3475, 40
      %v3624 = vpop.permute.xlu0 %3623
      %3625 = vrot.lane.b32.xlu0 %v3476, 40
      %v3626 = vpop.permute.xlu0 %3625
      %3627 = vrot.lane.b32.xlu0 %v3477, 40
      %v3628 = vpop.permute.xlu0 %3627
      %3637 = vst.msk [vmem:[#allocation3 - $0x1] sm:$0xfe] %vm2389, %v3614
      %3638 = vst.msk [vmem:[#allocation3 + $0x7] sm:$0xfe] %vm2389, %v3616
      %3639 = vst.msk [vmem:[#allocation3 + $0xf] sm:$0xfe] %vm2389, %v3618
      %3640 = vst.msk [vmem:[#allocation3 + $0x17] sm:$0xfe] %vm2389, %v3620
      %3641 = vst.msk [vmem:[#allocation3 + $0x1f] sm:$0xfe] %vm2389, %v3622
      %3642 = vst.msk [vmem:[#allocation3 + $0x27] sm:$0xfe] %vm2389, %v3624
      %3643 = vst.msk [vmem:[#allocation3 + $0x2f] sm:$0xfe] %vm2389, %v3626
      %3644 = vst.msk [vmem:[#allocation3 + $0x37] sm:$0xfe] %vm2389, %v3628
      %3645 = vrot.lane.b32.xlu0 %v3471, 48
      %v3646 = vpop.permute.xlu0 %3645
      %3647 = vrot.lane.b32.xlu0 %v3472, 48
      %v3648 = vpop.permute.xlu0 %3647
      %3649 = vrot.lane.b32.xlu0 %v3473, 48
      %v3650 = vpop.permute.xlu0 %3649
      %3651 = vrot.lane.b32.xlu0 %v3474, 48
      %v3652 = vpop.permute.xlu0 %3651
      %3653 = vrot.lane.b32.xlu0 %v3475, 48
      %v3654 = vpop.permute.xlu0 %3653
      %3655 = vrot.lane.b32.xlu0 %v3476, 48
      %v3656 = vpop.permute.xlu0 %3655
      %3657 = vrot.lane.b32.xlu0 %v3477, 48
      %v3658 = vpop.permute.xlu0 %3657
      %3666 = vst.msk [vmem:[#allocation3 + $0x1] sm:$0x7f] %vm2419, %v3646
      %3667 = vst.msk [vmem:[#allocation3 + $0x9] sm:$0x7f] %vm2419, %v3648
      %3668 = vst.msk [vmem:[#allocation3 + $0x11] sm:$0x7f] %vm2419, %v3650
      %3669 = vst.msk [vmem:[#allocation3 + $0x19] sm:$0x7f] %vm2419, %v3652
      %3670 = vst.msk [vmem:[#allocation3 + $0x21] sm:$0x7f] %vm2419, %v3654
      %3671 = vst.msk [vmem:[#allocation3 + $0x29] sm:$0x7f] %vm2419, %v3656
      %3672 = vst.msk [vmem:[#allocation3 + $0x31] sm:$0x7f] %vm2419, %v3658
      %3673 = vrot.lane.b32.xlu0 %v3471, 56
      %v3674 = vpop.permute.xlu0 %3673
      %3675 = vrot.lane.b32.xlu0 %v3472, 56
      %v3676 = vpop.permute.xlu0 %3675
      %3677 = vrot.lane.b32.xlu0 %v3473, 56
      %v3678 = vpop.permute.xlu0 %3677
      %3679 = vrot.lane.b32.xlu0 %v3474, 56
      %v3680 = vpop.permute.xlu0 %3679
      %3681 = vrot.lane.b32.xlu0 %v3475, 56
      %v3682 = vpop.permute.xlu0 %3681
      %3683 = vrot.lane.b32.xlu0 %v3476, 56
      %v3684 = vpop.permute.xlu0 %3683
      %3685 = vrot.lane.b32.xlu0 %v3477, 56
      %v3686 = vpop.permute.xlu0 %3685
      %3694 = vst.msk [vmem:[#allocation3] sm:$0xff] %vm2448, %v3674
      %3695 = vst.msk [vmem:[#allocation3 + $0x8] sm:$0xff] %vm2448, %v3676
      %3696 = vst.msk [vmem:[#allocation3 + $0x10] sm:$0xff] %vm2448, %v3678
      %3697 = vst.msk [vmem:[#allocation3 + $0x18] sm:$0xff] %vm2448, %v3680
      %3698 = vst.msk [vmem:[#allocation3 + $0x20] sm:$0xff] %vm2448, %v3682
      %3699 = vst.msk [vmem:[#allocation3 + $0x28] sm:$0xff] %vm2448, %v3684
      %3700 = vst.msk [vmem:[#allocation3 + $0x30] sm:$0xff] %vm2448, %v3686
      %3701 = vrot.lane.b32.xlu0 %v3471, 64
      %v3702 = vpop.permute.xlu0 %3701
      %3703 = vrot.lane.b32.xlu0 %v3472, 64
      %v3704 = vpop.permute.xlu0 %3703
      %3705 = vrot.lane.b32.xlu0 %v3473, 64
      %v3706 = vpop.permute.xlu0 %3705
      %3707 = vrot.lane.b32.xlu0 %v3474, 64
      %v3708 = vpop.permute.xlu0 %3707
      %3709 = vrot.lane.b32.xlu0 %v3475, 64
      %v3710 = vpop.permute.xlu0 %3709
      %3711 = vrot.lane.b32.xlu0 %v3476, 64
      %v3712 = vpop.permute.xlu0 %3711
      %3713 = vrot.lane.b32.xlu0 %v3477, 64
      %v3714 = vpop.permute.xlu0 %3713
      %3722 = vst.msk [vmem:[#allocation3 - $0x1] sm:$0xfe] %vm2477, %v3702
      %3723 = vst.msk [vmem:[#allocation3 + $0x7] sm:$0xfe] %vm2477, %v3704
      %3724 = vst.msk [vmem:[#allocation3 + $0xf] sm:$0xfe] %vm2477, %v3706
      %3725 = vst.msk [vmem:[#allocation3 + $0x17] sm:$0xfe] %vm2477, %v3708
      %3726 = vst.msk [vmem:[#allocation3 + $0x1f] sm:$0xfe] %vm2477, %v3710
      %3727 = vst.msk [vmem:[#allocation3 + $0x27] sm:$0xfe] %vm2477, %v3712
      %3728 = vst.msk [vmem:[#allocation3 + $0x2f] sm:$0xfe] %vm2477, %v3714
      %v3729 = vld [vmem:[#allocation3] sm:$0xff]
      %v3730 = vld [vmem:[#allocation3 + $0x8] sm:$0xff]
      %v3731 = vld [vmem:[#allocation3 + $0x10] sm:$0xff]
      %v3732 = vld [vmem:[#allocation3 + $0x18] sm:$0xff]
      %v3733 = vld [vmem:[#allocation3 + $0x20] sm:$0xff]
      %v3734 = vld [vmem:[#allocation3 + $0x28] sm:$0xff]
      %v3735 = vld [vmem:[#allocation3 + $0x30] sm:$0xff]
      %v3736 = vld [vmem:[#allocation3 + $0x38] sm:$0xff]
      %v3737 = vld [vmem:[%s9] sm:$0xff]
      %v3738 = vld [vmem:[%s9 + $0x8] sm:$0xff]
      %v3739 = vld [vmem:[%s9 + $0x10] sm:$0xff]
      %v3740 = vld [vmem:[%s9 + $0x18] sm:$0xff]
      %v3741 = vld [vmem:[%s9 + $0x20] sm:$0xff]
      %v3742 = vld [vmem:[%s9 + $0x28] sm:$0xff]
      %v3743 = vld [vmem:[%s9 + $0x30] sm:$0xff]
      %v3744 = vld [vmem:[%s9 + $0x38] sm:$0xff]
      %v3745 = vld [vmem:[%s9 + $0x40] sm:$0xff]
      %v3746 = vld [vmem:[%s10] sm:$0x1]
      %v3748 = vlaneseq
      %v3749 = vshrl.u32 %v3748, 7
      %v3750 = vsub.s32 0, %v3749
      %v3751 = vrot.slane %v3746, %v3750
      %v3754 = vsel %vm420, %v3729, 0
      %v3757 = vsel %vm420, %v3730, 0
      %v3760 = vsel %vm420, %v3731, 0
      %v3763 = vsel %vm420, %v3732, 0
      %v3766 = vsel %vm420, %v3733, 0
      %v3769 = vsel %vm420, %v3734, 0
      %v3772 = vsel %vm420, %v3735, 0
      %v3775 = vsel %vm420, %v3736, 0
      %3777 = vmatprep.subr.mxu0 0.0
      %3778 = vmatpush1.msra.mxu0 %v3737
      %3779 = vmatprep.subr.mxu0 0.0
      %3780 = vmatpush1.msra.mxu0 %v3738
      %3781 = vmatprep.subr.mxu0 0.0
      %3782 = vmatpush1.msra.mxu0 %v3739
      %3783 = vmatprep.subr.mxu0 0.0
      %3784 = vmatpush1.msra.mxu0 %v3740
      %3785 = vmatprep.subr.mxu0 0.0
      %3786 = vmatpush1.msra.mxu0 %v3741
      %3787 = vmatprep.subr.mxu0 0.0
      %3788 = vmatpush1.msra.mxu0 %v3742
      %3789 = vmatprep.subr.mxu0 0.0
      %3790 = vmatpush1.msra.mxu0 %v3743
      %3791 = vmatprep.subr.mxu0 0.0
      %3792 = vmatpush1.msra.mxu0 %v3744
      %3793 = vmatprep.subr.mxu0 0.0
      %3794 = vmatpush1.msra.mxu0 %v3745
      %3795 = vmatprep.subr.mxu0 0.0
      %3796 = vmatpush1.msra.mxu0 0.0
      %3797 = vmatprep.subr.mxu0 0.0
      %3798 = vmatpush1.msra.mxu0 0.0
      %3799 = vmatprep.subr.mxu0 0.0
      %3800 = vmatpush1.msra.mxu0 0.0
      %3801 = vmatprep.subr.mxu0 0.0
      %3802 = vmatpush1.msra.mxu0 0.0
      %3803 = vmatprep.subr.mxu0 0.0
      %3804 = vmatpush1.msra.mxu0 0.0
      %3805 = vmatprep.subr.mxu0 0.0
      %3806 = vmatpush1.msra.mxu0 0.0
      %3807 = vmatprep.subr.mxu0 0.0
      %3808 = vmatpush1.msra.mxu0 0.0
      %3809 = vmatprep.subr.mxu0 0.0
      %3810 = vmatpush1.msra.mxu0 0.0
      %3811 = vmatprep.subr.mxu0 0.0
      %3812 = vmatpush1.msra.mxu0 0.0
      %3813 = vmatprep.subr.mxu0 0.0
      %3814 = vmatpush1.msra.mxu0 0.0
      %3815 = vmatprep.subr.mxu0 0.0
      %3816 = vmatpush1.msra.mxu0 0.0
      %3817 = vmatprep.subr.mxu0 0.0
      %3818 = vmatpush1.msra.mxu0 0.0
      %3819 = vmatprep.subr.mxu0 0.0
      %3820 = vmatpush1.msra.mxu0 0.0
      %3821 = vmatprep.subr.mxu0 0.0
      %3822 = vmatpush1.msra.mxu0 0.0
      %3823 = vmatprep.subr.mxu0 0.0
      %3824 = vmatpush1.msra.mxu0 0.0
      %3825 = vmatprep.subr.mxu0 0.0
      %3826 = vmatpush1.msra.mxu0 0.0
      %3827 = vmatprep.subr.mxu0 0.0
      %3828 = vmatpush1.msra.mxu0 0.0
      %3829 = vmatprep.subr.mxu0 0.0
      %3830 = vmatpush1.msra.mxu0 0.0
      %3831 = vmatprep.subr.mxu0 0.0
      %3832 = vmatpush1.msra.mxu0 0.0
      %3833 = vmatprep.subr.mxu0 0.0
      %3834 = vmatpush1.msra.mxu0 0.0
      %3835 = vmatprep.subr.mxu0 0.0
      %3836 = vmatpush1.msra.mxu0 0.0
      %3837 = vmatprep.subr.mxu0 0.0
      %3838 = vmatpush1.msra.mxu0 0.0
      %3839 = vmatprep.subr.mxu0 0.0
      %3840 = vmatpush1.msra.mxu0 0.0
      %3841 = vmatprep.mubr.f32.mxu0 0.0
      %3842 = vmatmul.mubr.f32.gmra.mrb[0].mxu0 %v3754
      %v3843 = vpop.f32.mrb[0].mxu0
      %v3844 = vadd.f32 %v3751, %v3843
      %v3845 = vpop.f32.mrb[0].mxu0
      %3846 = vmatprep.mubr.f32.mxu0 0.0
      %3847 = vmatmul.mubr.f32.gmra.mrb[0].mxu0 %v3757
      %v3848 = vpop.f32.mrb[0].mxu0
      %v3849 = vadd.f32 %v3751, %v3848
      %v3850 = vpop.f32.mrb[0].mxu0
      %3851 = vmatprep.mubr.f32.mxu0 0.0
      %3852 = vmatmul.mubr.f32.gmra.mrb[0].mxu0 %v3760
      %v3853 = vpop.f32.mrb[0].mxu0
      %v3854 = vadd.f32 %v3751, %v3853
      %v3855 = vpop.f32.mrb[0].mxu0
      %3856 = vmatprep.mubr.f32.mxu0 0.0
      %3857 = vmatmul.mubr.f32.gmra.mrb[0].mxu0 %v3763
      %v3858 = vpop.f32.mrb[0].mxu0
      %v3859 = vadd.f32 %v3751, %v3858
      %v3860 = vpop.f32.mrb[0].mxu0
      %3861 = vmatprep.mubr.f32.mxu0 0.0
      %3862 = vmatmul.mubr.f32.gmra.mrb[0].mxu0 %v3766
      %v3863 = vpop.f32.mrb[0].mxu0
      %v3864 = vadd.f32 %v3751, %v3863
      %v3865 = vpop.f32.mrb[0].mxu0
      %3866 = vmatprep.mubr.f32.mxu0 0.0
      %3867 = vmatmul.mubr.f32.gmra.mrb[0].mxu0 %v3769
      %v3868 = vpop.f32.mrb[0].mxu0
      %v3869 = vadd.f32 %v3751, %v3868
      %v3870 = vpop.f32.mrb[0].mxu0
      %3871 = vmatprep.mubr.f32.mxu0 0.0
      %3872 = vmatmul.mubr.f32.gmra.mrb[0].mxu0 %v3772
      %v3873 = vpop.f32.mrb[0].mxu0
      %v3874 = vadd.f32 %v3751, %v3873
      %v3875 = vpop.f32.mrb[0].mxu0
      %3876 = vmatprep.mubr.f32.mxu0 0.0
      %3877 = vmatmul.mubr.f32.gmra.mrb[0].mxu0 %v3775
      %v3878 = vpop.f32.mrb[0].mxu0
      %v3879 = vadd.f32 %v3751, %v3878
      %v3880 = vpop.f32.mrb[0].mxu0
      %3881 = vdwg.mxu0
      %v3882 = vadd.f32 %v3844, %v3050
      %v3883 = vadd.f32 %v3849, %v3051
      %v3884 = vadd.f32 %v3854, %v3052
      %v3885 = vadd.f32 %v3859, %v3053
      %v3886 = vadd.f32 %v3864, %v3054
      %v3887 = vadd.f32 %v3869, %v3055
      %v3888 = vadd.f32 %v3874, %v3056
      %v3889 = vadd.f32 %v3879, %v3057
      %3890 = vst.msk [vmem:[%s386] sm:$0xff] %vm1892, %v3882
      %3891 = vst.msk [vmem:[%s386 + $0x8] sm:$0xff] %vm1892, %v3883
      %3892 = vst.msk [vmem:[%s386 + $0x10] sm:$0xff] %vm1892, %v3884
      %3893 = vst.msk [vmem:[%s386 + $0x18] sm:$0xff] %vm1892, %v3885
      %3894 = vst.msk [vmem:[%s386 + $0x20] sm:$0xff] %vm1892, %v3886
      %3895 = vst.msk [vmem:[%s386 + $0x28] sm:$0xff] %vm1892, %v3887
      %3896 = vst.msk [vmem:[%s386 + $0x30] sm:$0xff] %vm1892, %v3888
      %3897 = vst.msk [vmem:[%s386 + $0x38] sm:$0xff] %vm1892, %v3889
      %p3898 = scmp.lt.s32.totalorder %s22, 1
      %s3899 = scalar_select %p3898, %s22, 1
      %s3900 = smul.addr %s3899, 8
      %s3901 = smul.addr %s3900, 8
      %s3902 = scalar_lea.vmem %s11, %s3901
      // Predicated region
      $region65: #{impala_conv_sequence.1} parent=63 // pred_check
        %p3903 = pneg %p276
      $region66: #{impala_conv_sequence.1} parent=63 // pred_check_branch
        %3905 = sbr.rel (%p3903) target = $region68
      $region67: #{impala_conv_sequence.1} parent=63 // pred_region
        _
      $region68: #{impala_conv_sequence.1} parent=63 // pred_fallthru
        _
    $region64: #{impala_conv_sequence.1} parent=5 // pred_fallthru
      _
    %p3906 = scmp.le.s32.totalorder 2, %s17
    // Predicated region
    $region69: #{impala_conv_sequence.1} parent=5 // pred_check
      %p3907 = pneg %p3906
    $region70: #{impala_conv_sequence.1} parent=5 // pred_check_branch
      %3909 = sbr.rel (%p3907) target = $region72
    $region71: #{impala_conv_sequence.1} parent=5 // pred_region
      %s3910 = ssub.s32 %s17, 2
      // Predicated region
      $region73: #{impala_conv_sequence.1} parent=71 // pred_check
        %p3911 = pneg %p282
      $region74: #{impala_conv_sequence.1} parent=71 // pred_check_branch
        %3913 = sbr.rel (%p3911) target = $region76
      $region75: #{impala_conv_sequence.1} parent=71 // pred_region
        %p3914 = scmp.lt.s32.totalorder %s23, 1
        %s3915 = scalar_select %p3914, %s23, 1
        %s3916 = smul.addr %s3915, 8
        %s3917 = smul.addr %s3916, 8
        %s3918 = scalar_lea.vmem %s11, %s3917
      $region76: #{impala_conv_sequence.1} parent=71 // pred_fallthru
        _
    $region72: #{impala_conv_sequence.1} parent=5 // pred_fallthru
      _
  $region6: #{impala_conv_sequence.1} parent=0 // loop_footer
    %s21 = sadd.s32 1, %s17
  $region7: #{impala_conv_sequence.1} parent=0 // loop_footer_branch
    %16 = sbr.rel target = $region3
  $region8: #{impala_conv_sequence.1} parent=0 // loop_exit
    _

</llo_original>
